<compile_context>
chip_gen: v7x
topology: tpu7x:2x2x1
jax: 0.10.0
libtpu: 0.0.40
codegen_flags: <defaults>
</compile_context>

<pallas_src>
import functools
from typing import NamedTuple

import jax
import jax.numpy as jnp
from jax.experimental import pallas as pl
from jax.experimental.pallas import tpu as pltpu


def _round_up(x, m):
    return (x + m - 1) // m * m


def _device_config():
    """(default block_k, vmem_limit_bytes) per TPU generation."""
    try:
        kind = jax.devices()[0].device_kind.lower()
    except Exception:
        kind = ""
    if ("v5" in kind) or ("v6" in kind):
        # 128 MiB physical VMEM: bigger w1 tiles (2 exact steps at K=19200).
        return 9600, 96 << 20
    # v7x (64 MiB physical VMEM) and conservative fallback.
    return 6400, 48 << 20


# ----------------------------------------------------------------------------
# Kernel: K-tiled layer-1 accumulation + fused layer-2/3 epilogue
# ----------------------------------------------------------------------------
def mlp_kernel(x_ref, w1_ref, b1_ref, w2_ref, b2_ref, w3_ref, b3_ref,
               o_ref, acc_ref, *, tk):
    k = pl.program_id(0)

    @pl.when(k == 0)
    def _():
        acc_ref[...] = jnp.zeros_like(acc_ref)

    # Layer-1 partial contraction for this K tile (bf16 x bf16 -> f32 on MXU).
    # x is VMEM-resident; slice the current K window in-kernel.
    off = pl.multiple_of(k * tk, 128)
    x_tile = x_ref[:, pl.ds(off, tk)]
    acc_ref[...] += jnp.dot(x_tile, w1_ref[...],
                            preferred_element_type=jnp.float32)

    @pl.when(k == pl.num_programs(0) - 1)
    def _():
        h1 = jnp.maximum(acc_ref[...] + b1_ref[...], 0.0)                 # ReLU
        h2 = jnp.dot(h1.astype(w2_ref.dtype), w2_ref[...],
                     preferred_element_type=jnp.float32)
        h2 = jnp.maximum(h2 + b2_ref[...], 0.0)                           # ReLU
        out = jnp.dot(h2.astype(w3_ref.dtype), w3_ref[...],
                      preferred_element_type=jnp.float32)
        o_ref[...] = (out + b3_ref[...]).astype(o_ref.dtype)


# ----------------------------------------------------------------------------
# One-time weight packing (hoisted out of the per-call path)
# ----------------------------------------------------------------------------
class PackedMLP(NamedTuple):
    w1: jax.Array   # (K_pad, H_pad) weight_dtype
    b1: jax.Array   # (1, H_pad)     f32
    w2: jax.Array   # (H_pad, H_pad) weight_dtype
    b2: jax.Array   # (1, H_pad)     f32
    w3: jax.Array   # (H_pad, C_pad) weight_dtype
    b3: jax.Array   # (1, C_pad)     f32
    K: int
    H: int
    C: int
    K_pad: int
    H_pad: int
    C_pad: int
    tk: int


def pack_mlp_params(w1, b1, w2, b2, w3, b3, *, block_k=None,
                    weight_dtype=jnp.bfloat16):
    """Pre-transpose to (in, out), cast, zero-pad.  Call once, reuse per call."""
    H, K = w1.shape            # PyTorch layout (out, in)
    C = w3.shape[0]

    if block_k is None:
        block_k, _ = _device_config()

    tk = min(_round_up(block_k, 128), _round_up(K, 128))   # K tile, mult. of 128
    K_pad = _round_up(K, tk)
    H_pad = _round_up(H, 128)                               # 1000 -> 1024
    C_pad = _round_up(C, 128)                               # lane-dense output

    def pad2(a, rows, cols, dtype):
        a = a.astype(dtype)
        return jnp.pad(a, ((0, rows - a.shape[0]), (0, cols - a.shape[1])))

    # Zero-padding is numerically inert: padded x cols / w rows are zero,
    # padded biases are zero, ReLU(0)=0, padded output lanes are sliced off.
    return PackedMLP(
        w1=pad2(w1.T, K_pad, H_pad, weight_dtype),
        b1=pad2(b1[None, :], 1, H_pad, jnp.float32),
        w2=pad2(w2.T, H_pad, H_pad, weight_dtype),
        b2=pad2(b2[None, :], 1, H_pad, jnp.float32),
        w3=pad2(w3.T, H_pad, C_pad, weight_dtype),
        b3=pad2(b3[None, :], 1, C_pad, jnp.float32),
        K=K, H=H, C=C, K_pad=K_pad, H_pad=H_pad, C_pad=C_pad, tk=tk,
    )


# ----------------------------------------------------------------------------
# Per-call wrapper: pad x, build grid/BlockSpecs, run the kernel
# ----------------------------------------------------------------------------
def feedforward_mlp(x, packed: PackedMLP, *, vmem_limit_bytes=None,
                    activation_dtype=jnp.bfloat16):
    """x: (B, K) f32.  packed: output of pack_mlp_params.  -> (B, C) f32."""
    B, K = x.shape
    assert K == packed.K, f"input feature dim {K} != packed {packed.K}"

    if vmem_limit_bytes is None:
        _, vmem_limit_bytes = _device_config()

    tk, K_pad, H_pad, C_pad = packed.tk, packed.K_pad, packed.H_pad, packed.C_pad
    n_k = K_pad // tk
    # bf16 packs 16 rows per sublane-packed vreg; keep 8 for tiny batches.
    B_pad = 8 if B <= 8 else _round_up(B, 16)

    x_p = jnp.pad(x.astype(activation_dtype),
                  ((0, B_pad - B), (0, K_pad - K)))

    resident = dict(pipeline_mode=pl.Buffered(1))   # single-buffer constants

    grid_spec = pltpu.PrefetchScalarGridSpec(
        num_scalar_prefetch=0,
        grid=(n_k,),
        in_specs=[
            pl.BlockSpec((B_pad, K_pad), lambda k: (0, 0), **resident),  # x resident
            pl.BlockSpec((tk, H_pad),    lambda k: (k, 0)),              # w1 streamed
            pl.BlockSpec((1, H_pad),     lambda k: (0, 0), **resident),  # b1
            pl.BlockSpec((H_pad, H_pad), lambda k: (0, 0), **resident),  # w2
            pl.BlockSpec((1, H_pad),     lambda k: (0, 0), **resident),  # b2
            pl.BlockSpec((H_pad, C_pad), lambda k: (0, 0), **resident),  # w3
            pl.BlockSpec((1, C_pad),     lambda k: (0, 0), **resident),  # b3
        ],
        out_specs=pl.BlockSpec((B_pad, C_pad), lambda k: (0, 0)),
        scratch_shapes=[pltpu.VMEM((B_pad, H_pad), jnp.float32)],  # layer-1 acc
    )

    out_p = pl.pallas_call(
        functools.partial(mlp_kernel, tk=tk),
        out_shape=jax.ShapeDtypeStruct((B_pad, C_pad), jnp.float32),
        grid_spec=grid_spec,
        compiler_params=pltpu.CompilerParams(
            dimension_semantics=("arbitrary",),   # K reduction, carried acc
            vmem_limit_bytes=vmem_limit_bytes,
        ),
    )(x_p, packed.w1, packed.b1, packed.w2, packed.b2, packed.w3, packed.b3)

    return out_p[:B, :packed.C]


# ----------------------------------------------------------------------------
# Deterministic parameter init (PyTorch nn.Linear-style uniform fan-in init)
# ----------------------------------------------------------------------------
def init_linear(key, in_features, out_features, dtype=jnp.float32):
    kw, kb = jax.random.split(key)
    bound = 1.0 / jnp.sqrt(in_features)
    w = jax.random.uniform(kw, (out_features, in_features), dtype,
                           minval=-bound, maxval=bound)
    b = jax.random.uniform(kb, (out_features,), dtype,
                           minval=-bound, maxval=bound)
    return w, b


if __name__ == "__main__":
    # Small shapes consistent with the module's forward:
    # x: (batch, input_size) -> (batch, 1000) -> (batch, 1000) -> (batch, 3)
    batch = 2
    input_size = 512        # module default is 19200; small synthetic size
    hidden = 1000           # hardcoded in the module
    num_classes = 3

    key = jax.random.PRNGKey(0)
    kx, k1, k2, k3 = jax.random.split(key, 4)

    x = jax.random.normal(kx, (batch, input_size), jnp.float32)
    w1, b1 = init_linear(k1, input_size, hidden)
    w2, b2 = init_linear(k2, hidden, hidden)
    w3, b3 = init_linear(k3, hidden, num_classes)

    # Pack weights once (block_k=256 -> 2 grid steps, exercising K accumulation).
    packed = pack_mlp_params(w1, b1, w2, b2, w3, b3, block_k=256)

    out = feedforward_mlp(x, packed)
    out = jax.block_until_ready(out)

    # Reference with the same bf16 weight/activation quantization (f32 accum),
    # matching the kernel's numerics.
    def q(a):
        return a.astype(jnp.bfloat16).astype(jnp.float32)

    h = jnp.maximum(q(x) @ q(w1).T + b1, 0.0)
    h = jnp.maximum(q(h) @ q(w2).T + b2, 0.0)
    ref = q(h) @ q(w3).T + b3

    assert out.shape == (batch, num_classes)
    assert jnp.allclose(out, ref, atol=1e-2, rtol=1e-2), "mismatch vs reference"

    print("KERNEL_OK")
</pallas_src>

<mosaic_0001>
module attributes {stable_mosaic.version = 11 : i64} {
  func.func @mlp_kernel(%arg0: i32, %arg1: memref<8x512xbf16, #tpu.memory_space<vmem>>, %arg2: memref<256x1024xbf16, #tpu.memory_space<vmem>>, %arg3: memref<1x1024xf32, #tpu.memory_space<vmem>>, %arg4: memref<1024x1024xbf16, #tpu.memory_space<vmem>>, %arg5: memref<1x1024xf32, #tpu.memory_space<vmem>>, %arg6: memref<1024x128xbf16, #tpu.memory_space<vmem>>, %arg7: memref<1x128xf32, #tpu.memory_space<vmem>>, %arg8: memref<8x128xf32, #tpu.memory_space<vmem>>, %arg9: memref<8x1024xf32, #tpu.memory_space<vmem>>) attributes {dimension_semantics = [#tpu.dimension_semantics<arbitrary>], iteration_bounds = array<i64: 2>, scalar_prefetch = 0 : i64, scratch_operands = 1 : i64, tpu.core_type = #tpu.core_type<tc>, window_params = [{pipeline_mode = #tpu.pipeline_mode<synchronous>, transform_indices = @transform_0, window_bounds = array<i64: 8, 512>}, {transform_indices = @transform_1, window_bounds = array<i64: 256, 1024>}, {pipeline_mode = #tpu.pipeline_mode<synchronous>, transform_indices = @transform_2, window_bounds = array<i64: 1, 1024>}, {pipeline_mode = #tpu.pipeline_mode<synchronous>, transform_indices = @transform_3, window_bounds = array<i64: 1024, 1024>}, {pipeline_mode = #tpu.pipeline_mode<synchronous>, transform_indices = @transform_4, window_bounds = array<i64: 1, 1024>}, {pipeline_mode = #tpu.pipeline_mode<synchronous>, transform_indices = @transform_5, window_bounds = array<i64: 1024, 128>}, {pipeline_mode = #tpu.pipeline_mode<synchronous>, transform_indices = @transform_6, window_bounds = array<i64: 1, 128>}, {pipeline_mode = #tpu.pipeline_mode<synchronous>, transform_indices = @transform_7, window_bounds = array<i64: 8, 128>}]} {
    %c0_i32 = arith.constant 0 : i32
    %0 = arith.cmpi eq, %arg0, %c0_i32 : i32
    %1 = arith.extui %0 : i1 to i32
    %c0_i32_0 = arith.constant 0 : i32
    %2 = arith.cmpi ne, %1, %c0_i32_0 : i32
    scf.if %2 {
      %cst_8 = arith.constant 0.000000e+00 : f32
      %15 = vector.broadcast %cst_8 : f32 to vector<8x1024xf32>
      %c0_9 = arith.constant 0 : index
      %c0_10 = arith.constant 0 : index
      %16 = vector.load %arg9[%c0_9, %c0_10] : memref<8x1024xf32, #tpu.memory_space<vmem>>, vector<8x1024xf32>
      tpu.vector_store %arg9[%c0_9, %c0_10], %15 {strides = array<i32>} : memref<8x1024xf32, #tpu.memory_space<vmem>>, vector<8x1024xf32>,
    } else {
    }
    %c256_i32 = arith.constant 256 : i32
    %3 = arith.muli %arg0, %c256_i32 : i32
    %4 = tpu.assume_multiple %3, 128 : i32
    %c0 = arith.constant 0 : index
    %5 = arith.index_cast %4 : i32 to index
    %6 = vector.load %arg1[%c0, %5] : memref<8x512xbf16, #tpu.memory_space<vmem>>, vector<8x256xbf16>
    %c0_1 = arith.constant 0 : index
    %c0_2 = arith.constant 0 : index
    %7 = vector.load %arg9[%c0_1, %c0_2] : memref<8x1024xf32, #tpu.memory_space<vmem>>, vector<8x1024xf32>
    %c0_3 = arith.constant 0 : index
    %c0_4 = arith.constant 0 : index
    %8 = vector.load %arg2[%c0_3, %c0_4] : memref<256x1024xbf16, #tpu.memory_space<vmem>>, vector<256x1024xbf16>
    %cst = arith.constant dense<0.000000e+00> : vector<8x1024xf32>
    %9 = tpu.matmul %6, %8, %cst {dimension_numbers = #tpu.dot_dimension_numbers<[1], [0], [0], [1], [0, 0, 1, 1], [], []>} : vector<8x256xbf16>, vector<256x1024xbf16>, vector<8x1024xf32> -> vector<8x1024xf32>
    %10 = arith.addf %7, %9 : vector<8x1024xf32>
    %c0_5 = arith.constant 0 : index
    %c0_6 = arith.constant 0 : index
    %11 = vector.load %arg9[%c0_5, %c0_6] : memref<8x1024xf32, #tpu.memory_space<vmem>>, vector<8x1024xf32>
    tpu.vector_store %arg9[%c0_5, %c0_6], %10 {strides = array<i32>} : memref<8x1024xf32, #tpu.memory_space<vmem>>, vector<8x1024xf32>,
    %c1_i32 = arith.constant 1 : i32
    %12 = arith.cmpi eq, %arg0, %c1_i32 : i32
    %13 = arith.extui %12 : i1 to i32
    %c0_i32_7 = arith.constant 0 : i32
    %14 = arith.cmpi ne, %13, %c0_i32_7 : i32
    scf.if %14 {
      %c0_8 = arith.constant 0 : index
      %c0_9 = arith.constant 0 : index
      %15 = vector.load %arg9[%c0_8, %c0_9] : memref<8x1024xf32, #tpu.memory_space<vmem>>, vector<8x1024xf32>
      %c0_10 = arith.constant 0 : index
      %c0_11 = arith.constant 0 : index
      %16 = vector.load %arg3[%c0_10, %c0_11] : memref<1x1024xf32, #tpu.memory_space<vmem>>, vector<1x1024xf32>
      %17 = vector.broadcast %16 : vector<1x1024xf32> to vector<8x1024xf32>
      %18 = arith.addf %15, %17 : vector<8x1024xf32>
      %cst_12 = arith.constant 0.000000e+00 : f32
      %19 = vector.broadcast %cst_12 : f32 to vector<8x1024xf32>
      %20 = arith.maximumf %18, %19 : vector<8x1024xf32>
      %21 = arith.truncf %20 : vector<8x1024xf32> to vector<8x1024xbf16>
      %c0_13 = arith.constant 0 : index
      %c0_14 = arith.constant 0 : index
      %22 = vector.load %arg4[%c0_13, %c0_14] : memref<1024x1024xbf16, #tpu.memory_space<vmem>>, vector<1024x1024xbf16>
      %cst_15 = arith.constant dense<0.000000e+00> : vector<8x1024xf32>
      %23 = tpu.matmul %21, %22, %cst_15 {dimension_numbers = #tpu.dot_dimension_numbers<[1], [0], [0], [1], [0, 0, 1, 1], [], []>} : vector<8x1024xbf16>, vector<1024x1024xbf16>, vector<8x1024xf32> -> vector<8x1024xf32>
      %c0_16 = arith.constant 0 : index
      %c0_17 = arith.constant 0 : index
      %24 = vector.load %arg5[%c0_16, %c0_17] : memref<1x1024xf32, #tpu.memory_space<vmem>>, vector<1x1024xf32>
      %25 = vector.broadcast %24 : vector<1x1024xf32> to vector<8x1024xf32>
      %26 = arith.addf %23, %25 : vector<8x1024xf32>
      %cst_18 = arith.constant 0.000000e+00 : f32
      %27 = vector.broadcast %cst_18 : f32 to vector<8x1024xf32>
      %28 = arith.maximumf %26, %27 : vector<8x1024xf32>
      %29 = arith.truncf %28 : vector<8x1024xf32> to vector<8x1024xbf16>
      %c0_19 = arith.constant 0 : index
      %c0_20 = arith.constant 0 : index
      %30 = vector.load %arg6[%c0_19, %c0_20] : memref<1024x128xbf16, #tpu.memory_space<vmem>>, vector<1024x128xbf16>
      %cst_21 = arith.constant dense<0.000000e+00> : vector<8x128xf32>
      %31 = tpu.matmul %29, %30, %cst_21 {dimension_numbers = #tpu.dot_dimension_numbers<[1], [0], [0], [1], [0, 0, 1, 1], [], []>} : vector<8x1024xbf16>, vector<1024x128xbf16>, vector<8x128xf32> -> vector<8x128xf32>
      %c0_22 = arith.constant 0 : index
      %c0_23 = arith.constant 0 : index
      %32 = vector.load %arg7[%c0_22, %c0_23] : memref<1x128xf32, #tpu.memory_space<vmem>>, vector<1x128xf32>
      %33 = vector.broadcast %32 : vector<1x128xf32> to vector<8x128xf32>
      %34 = arith.addf %31, %33 : vector<8x128xf32>
      %c0_24 = arith.constant 0 : index
      %c0_25 = arith.constant 0 : index
      %35 = vector.load %arg8[%c0_24, %c0_25] : memref<8x128xf32, #tpu.memory_space<vmem>>, vector<8x128xf32>
      tpu.vector_store %arg8[%c0_24, %c0_25], %34 {strides = array<i32>} : memref<8x128xf32, #tpu.memory_space<vmem>>, vector<8x128xf32>,
    } else {
    }
    return
  }
  func.func @transform_0(%arg0: i32) -> (i32, i32) {
    %c0_i32 = arith.constant 0 : i32
    %c0_i32_0 = arith.constant 0 : i32
    %c0_i32_1 = arith.constant 0 : i32
    return %c0_i32, %c0_i32_0 : i32, i32
  }
  func.func @transform_1(%arg0: i32) -> (i32, i32) {
    %c0_i32 = arith.constant 0 : i32
    %c0_i32_0 = arith.constant 0 : i32
    return %arg0, %c0_i32 : i32, i32
  }
  func.func @transform_2(%arg0: i32) -> (i32, i32) {
    %c0_i32 = arith.constant 0 : i32
    %c0_i32_0 = arith.constant 0 : i32
    %c0_i32_1 = arith.constant 0 : i32
    return %c0_i32, %c0_i32_0 : i32, i32
  }
  func.func @transform_3(%arg0: i32) -> (i32, i32) {
    %c0_i32 = arith.constant 0 : i32
    %c0_i32_0 = arith.constant 0 : i32
    %c0_i32_1 = arith.constant 0 : i32
    return %c0_i32, %c0_i32_0 : i32, i32
  }
  func.func @transform_4(%arg0: i32) -> (i32, i32) {
    %c0_i32 = arith.constant 0 : i32
    %c0_i32_0 = arith.constant 0 : i32
    %c0_i32_1 = arith.constant 0 : i32
    return %c0_i32, %c0_i32_0 : i32, i32
  }
  func.func @transform_5(%arg0: i32) -> (i32, i32) {
    %c0_i32 = arith.constant 0 : i32
    %c0_i32_0 = arith.constant 0 : i32
    %c0_i32_1 = arith.constant 0 : i32
    return %c0_i32, %c0_i32_0 : i32, i32
  }
  func.func @transform_6(%arg0: i32) -> (i32, i32) {
    %c0_i32 = arith.constant 0 : i32
    %c0_i32_0 = arith.constant 0 : i32
    %c0_i32_1 = arith.constant 0 : i32
    return %c0_i32, %c0_i32_0 : i32, i32
  }
  func.func @transform_7(%arg0: i32) -> (i32, i32) {
    %c0_i32 = arith.constant 0 : i32
    %c0_i32_0 = arith.constant 0 : i32
    %c0_i32_1 = arith.constant 0 : i32
    return %c0_i32, %c0_i32_0 : i32, i32
  }
}

</mosaic_0001>

<llo_original>
// kernel: tpu_custom_call.1
$region0: #{tpu_custom_call.1}
  #allocation0 [shape = 'u32[]', space=smem, size = 0x4, offset = 0x4, fixed_abs, tag = 'smem constant byte address 0x4 - core index']
  #allocation1 [shape = 'u32[144,128]{1,0:T(1,128)}', space=vmem, size = 0x12000, scoped, tag = 'internal scratch']
  #allocation2 [shape = 'f32[8,1024]{1,0:T(8,128)}', space=vmem, size = 0x8000, scoped, tag = 'scratch operand']
  %s0 = inlined_call_operand.hbm [shape: bf16[8,512], index: 0, kind: input, shape index: {}]
  %s1 = inlined_call_operand.hbm [shape: bf16[512,1024], index: 1, kind: input, shape index: {}]
  %s2 = inlined_call_operand.hbm [shape: f32[1,1024], index: 2, kind: input, shape index: {}]
  %s3 = inlined_call_operand.hbm [shape: bf16[1024,1024], index: 3, kind: input, shape index: {}]
  %s4 = inlined_call_operand.hbm [shape: f32[1,1024], index: 4, kind: input, shape index: {}]
  %s5 = inlined_call_operand.hbm [shape: bf16[1024,128], index: 5, kind: input, shape index: {}]
  %s6 = inlined_call_operand.hbm [shape: f32[1,128], index: 6, kind: input, shape index: {}]
  %s7 = inlined_call_operand.hbm [shape: f32[8,128], index: 7, kind: output, shape index: {}]
  %s8 = sld [smem:[#allocation0]]
  $region97: #{tpu_custom_call.1} parent=0
    _
  %s10 = ssub.s32 1, %s8
  %s11 = scalar_select 0, %s10, %s8
  $region1: #{tpu_custom_call.1} parent=0
    #allocation3 [shape = 'u8[8192]{0}', space=vmem, size = 0x2000, scoped, tag = 'input window, operand 0, single buffered']
    #allocation4 [shape = 's32[2]{0}', space=sflag, size = 0x8, scoped, tag = 'scoped memory for tpu_custom_call.1']
    #allocation5 [shape = 's32[2]{0}', space=sflag, size = 0x8, scoped, tag = 'scoped memory for tpu_custom_call.1']
    #allocation6 [shape = 'u8[1048576]{0}', space=vmem, size = 0x100000, scoped, tag = 'input window, operand 1']
    #allocation7 [shape = 's32[2]{0}', space=sflag, size = 0x8, scoped, tag = 'scoped memory for tpu_custom_call.1']
    #allocation8 [shape = 'u8[4096]{0}', space=vmem, size = 0x1000, scoped, tag = 'input window, operand 2, single buffered']
    #allocation9 [shape = 'u8[2097152]{0}', space=vmem, size = 0x200000, scoped, tag = 'input window, operand 3, single buffered']
    #allocation10 [shape = 's32[1]{0}', space=sflag, size = 0x4, scoped, tag = 'scoped memory for tpu_custom_call.1']
    #allocation11 [shape = 'u8[4096]{0}', space=vmem, size = 0x1000, scoped, tag = 'input window, operand 4, single buffered']
    #allocation12 [shape = 'u8[262144]{0}', space=vmem, size = 0x40000, scoped, tag = 'input window, operand 5, single buffered']
    #allocation13 [shape = 's32[1]{0}', space=sflag, size = 0x4, scoped, tag = 'scoped memory for tpu_custom_call.1']
    #allocation14 [shape = 'u8[512]{0}', space=vmem, size = 0x400, scoped, tag = 'input window, operand 6, single buffered']
    #allocation15 [shape = 'u8[4096]{0}', space=vmem, size = 0x1000, scoped, tag = 'output window, operand 0, single buffered']
    %12 = vsyncpa [#allocation4], 0
    %13 = vsyncpa [#allocation7], 0
    %s14 = scalar_lea.sflag [#allocation7], 1
    %15 = vsyncpa %s14, 0
    %16 = vsyncpa [#allocation10], 0
    %17 = vsyncpa [#allocation13], 0
    %18 = vsyncpa [#allocation5], 0
    loop: start=0, step=1, limit=4
    $region2: #{tpu_custom_call.1} parent=1 // loop_pre_header
      _
    $region3: #{tpu_custom_call.1} parent=1 // loop_header
      %s20 = sphi 0, %s24
      %p21 = scmp.ge.s32.totalorder %s20, 4
      %s28 = sphi 0, %s28
      %s30 = sphi 0, %s28
      %s31 = sphi 0, %s30
      %s45 = sphi 0, %s31
      %s51 = sphi 0, %s53
      %s54 = sphi 0, %s51
      %s55 = sphi 0, %s54
      %s71 = sphi 0, %s55
      %s75 = sphi 0, %s75
      %s77 = sphi 0, %s75
      %s78 = sphi 0, %s77
      %s92 = sphi 0, %s78
      %s96 = sphi 0, %s96
      %s98 = sphi 0, %s96
      %s99 = sphi 0, %s98
      %s113 = sphi 0, %s99
      %s117 = sphi 0, %s117
      %s119 = sphi 0, %s117
      %s120 = sphi 0, %s119
      %s134 = sphi 0, %s120
      %s138 = sphi 0, %s138
      %s140 = sphi 0, %s138
      %s141 = sphi 0, %s140
      %s155 = sphi 0, %s141
      %s159 = sphi 0, %s159
      %s161 = sphi 0, %s159
      %s162 = sphi 0, %s161
      %s176 = sphi 0, %s162
      %s180 = sphi 0, %s180
      %s182 = sphi 0, %s180
      %s183 = sphi 0, %s182
      %s197 = sphi 0, %s183
    $region4: #{tpu_custom_call.1} parent=1 // loop_header_branch
      %23 = sbr.rel (%p21) target = $region8
    $region5: #{tpu_custom_call.1} parent=1 // loop_body
      %s25 = ssub.s32 %s20, 1
      %s26 = ssub.s32 %s20, 2
      %s27 = sadd.s32 %s20, 1
      %s29 = sadd.s32 %s28, 1
      %p32 = scmp.eq.s32.totalorder %s20, 1
      %p33 = scmp.ne.s32.totalorder %s28, %s30
      %p34 = scmp.eq.s32.totalorder %s20, 0
      %p35 = por %p33, %p34
      %p36 = scmp.ne.s32.totalorder %s28, %s30
      %p37 = scmp.eq.s32.totalorder %s25, 1
      %p38 = por %p36, %p37
      %p39 = scmp.ne.s32.totalorder %s30, %s31
      %p40 = scmp.eq.s32.totalorder %s25, 0
      %p41 = por %p39, %p40
      %p42 = scmp.ne.s32.totalorder %s30, %s31
      %p43 = scmp.eq.s32.totalorder %s26, 1
      %p44 = por %p42, %p43
      %p46 = scmp.ne.s32.totalorder %s31, %s45
      %p47 = scmp.eq.s32.totalorder %s26, 0
      %p48 = por %p46, %p47
      %s49 = ssub.s32 %s20, %s27
      %p50 = scmp.eq.s32.totalorder %s49, 0
      %s52 = sadd.s32 %s51, 1
      %s53 = scalar_select %p50, %s51, %s52
      %p56 = pneg %p50
      %p57 = scmp.eq.s32.totalorder %s20, 1
      %p58 = por %p56, %p57
      %p59 = scmp.ne.s32.totalorder %s51, %s54
      %p60 = scmp.eq.s32.totalorder %s20, 0
      %p61 = por %p59, %p60
      %p62 = scmp.ne.s32.totalorder %s51, %s54
      %p63 = scmp.eq.s32.totalorder %s25, 1
      %p64 = por %p62, %p63
      %p65 = scmp.ne.s32.totalorder %s54, %s55
      %p66 = scmp.eq.s32.totalorder %s25, 0
      %p67 = por %p65, %p66
      %p68 = scmp.ne.s32.totalorder %s54, %s55
      %p69 = scmp.eq.s32.totalorder %s26, 1
      %p70 = por %p68, %p69
      %p72 = scmp.ne.s32.totalorder %s55, %s71
      %p73 = scmp.eq.s32.totalorder %s26, 0
      %p74 = por %p72, %p73
      %s76 = sadd.s32 %s75, 1
      %p79 = scmp.eq.s32.totalorder %s20, 1
      %p80 = scmp.ne.s32.totalorder %s75, %s77
      %p81 = scmp.eq.s32.totalorder %s20, 0
      %p82 = por %p80, %p81
      %p83 = scmp.ne.s32.totalorder %s75, %s77
      %p84 = scmp.eq.s32.totalorder %s25, 1
      %p85 = por %p83, %p84
      %p86 = scmp.ne.s32.totalorder %s77, %s78
      %p87 = scmp.eq.s32.totalorder %s25, 0
      %p88 = por %p86, %p87
      %p89 = scmp.ne.s32.totalorder %s77, %s78
      %p90 = scmp.eq.s32.totalorder %s26, 1
      %p91 = por %p89, %p90
      %p93 = scmp.ne.s32.totalorder %s78, %s92
      %p94 = scmp.eq.s32.totalorder %s26, 0
      %p95 = por %p93, %p94
      %s97 = sadd.s32 %s96, 1
      %p100 = scmp.eq.s32.totalorder %s20, 1
      %p101 = scmp.ne.s32.totalorder %s96, %s98
      %p102 = scmp.eq.s32.totalorder %s20, 0
      %p103 = por %p101, %p102
      %p104 = scmp.ne.s32.totalorder %s96, %s98
      %p105 = scmp.eq.s32.totalorder %s25, 1
      %p106 = por %p104, %p105
      %p107 = scmp.ne.s32.totalorder %s98, %s99
      %p108 = scmp.eq.s32.totalorder %s25, 0
      %p109 = por %p107, %p108
      %p110 = scmp.ne.s32.totalorder %s98, %s99
      %p111 = scmp.eq.s32.totalorder %s26, 1
      %p112 = por %p110, %p111
      %p114 = scmp.ne.s32.totalorder %s99, %s113
      %p115 = scmp.eq.s32.totalorder %s26, 0
      %p116 = por %p114, %p115
      %s118 = sadd.s32 %s117, 1
      %p121 = scmp.eq.s32.totalorder %s20, 1
      %p122 = scmp.ne.s32.totalorder %s117, %s119
      %p123 = scmp.eq.s32.totalorder %s20, 0
      %p124 = por %p122, %p123
      %p125 = scmp.ne.s32.totalorder %s117, %s119
      %p126 = scmp.eq.s32.totalorder %s25, 1
      %p127 = por %p125, %p126
      %p128 = scmp.ne.s32.totalorder %s119, %s120
      %p129 = scmp.eq.s32.totalorder %s25, 0
      %p130 = por %p128, %p129
      %p131 = scmp.ne.s32.totalorder %s119, %s120
      %p132 = scmp.eq.s32.totalorder %s26, 1
      %p133 = por %p131, %p132
      %p135 = scmp.ne.s32.totalorder %s120, %s134
      %p136 = scmp.eq.s32.totalorder %s26, 0
      %p137 = por %p135, %p136
      %s139 = sadd.s32 %s138, 1
      %p142 = scmp.eq.s32.totalorder %s20, 1
      %p143 = scmp.ne.s32.totalorder %s138, %s140
      %p144 = scmp.eq.s32.totalorder %s20, 0
      %p145 = por %p143, %p144
      %p146 = scmp.ne.s32.totalorder %s138, %s140
      %p147 = scmp.eq.s32.totalorder %s25, 1
      %p148 = por %p146, %p147
      %p149 = scmp.ne.s32.totalorder %s140, %s141
      %p150 = scmp.eq.s32.totalorder %s25, 0
      %p151 = por %p149, %p150
      %p152 = scmp.ne.s32.totalorder %s140, %s141
      %p153 = scmp.eq.s32.totalorder %s26, 1
      %p154 = por %p152, %p153
      %p156 = scmp.ne.s32.totalorder %s141, %s155
      %p157 = scmp.eq.s32.totalorder %s26, 0
      %p158 = por %p156, %p157
      %s160 = sadd.s32 %s159, 1
      %p163 = scmp.eq.s32.totalorder %s20, 1
      %p164 = scmp.ne.s32.totalorder %s159, %s161
      %p165 = scmp.eq.s32.totalorder %s20, 0
      %p166 = por %p164, %p165
      %p167 = scmp.ne.s32.totalorder %s159, %s161
      %p168 = scmp.eq.s32.totalorder %s25, 1
      %p169 = por %p167, %p168
      %p170 = scmp.ne.s32.totalorder %s161, %s162
      %p171 = scmp.eq.s32.totalorder %s25, 0
      %p172 = por %p170, %p171
      %p173 = scmp.ne.s32.totalorder %s161, %s162
      %p174 = scmp.eq.s32.totalorder %s26, 1
      %p175 = por %p173, %p174
      %p177 = scmp.ne.s32.totalorder %s162, %s176
      %p178 = scmp.eq.s32.totalorder %s26, 0
      %p179 = por %p177, %p178
      %s181 = sadd.s32 %s180, 1
      %p184 = scmp.eq.s32.totalorder %s20, 1
      %p185 = scmp.ne.s32.totalorder %s180, %s182
      %p186 = scmp.eq.s32.totalorder %s20, 0
      %p187 = por %p185, %p186
      %p188 = scmp.ne.s32.totalorder %s180, %s182
      %p189 = scmp.eq.s32.totalorder %s25, 1
      %p190 = por %p188, %p189
      %p191 = scmp.ne.s32.totalorder %s182, %s183
      %p192 = scmp.eq.s32.totalorder %s25, 0
      %p193 = por %p191, %p192
      %p194 = scmp.ne.s32.totalorder %s182, %s183
      %p195 = scmp.eq.s32.totalorder %s26, 1
      %p196 = por %p194, %p195
      %p198 = scmp.ne.s32.totalorder %s183, %s197
      %p199 = scmp.eq.s32.totalorder %s26, 0
      %p200 = por %p198, %p199
      %p201 = scmp.le.s32.totalorder 1, %s20
      %p202 = scmp.lt.s32.totalorder %s20, 3
      %p203 = pnand %p201, %p202
      %p204 = pneg %p203
      // Predicated region
      $region9: #{tpu_custom_call.1} parent=5 // pred_check
        _
      $region10: #{tpu_custom_call.1} parent=5 // pred_check_branch
        %206 = sbr.rel (%p203) target = $region12
      $region11: #{tpu_custom_call.1} parent=5 // pred_region
        %s207 = ssub.s32 %s20, 1
        // Predicated region
        $region13: #{tpu_custom_call.1} parent=11 // pred_check
          %p208 = pneg %p41
        $region14: #{tpu_custom_call.1} parent=11 // pred_check_branch
          %210 = sbr.rel (%p208) target = $region16
        $region15: #{tpu_custom_call.1} parent=11 // pred_region
          %s212 = ssub.s32 256, 256
          %213 = vsyncadd [#allocation4], %s212
          %s215 = sshll.u32 [#allocation3], 4
          %s216 = int_to_ptr.vmem [resolvable:$true] %s215
          %218 = dma.hbm_to_vmem [thread:$0]  %s0, 256, %s216, [#allocation4]
        $region16: #{tpu_custom_call.1} parent=11 // pred_fallthru
          _
        // Predicated region
        $region17: #{tpu_custom_call.1} parent=11 // pred_check
          %p219 = pneg %p88
        $region18: #{tpu_custom_call.1} parent=11 // pred_check_branch
          %221 = sbr.rel (%p219) target = $region20
        $region19: #{tpu_custom_call.1} parent=11 // pred_region
          %s223 = ssub.s32 128, 128
          %224 = vsyncadd [#allocation7], %s223
          %s226 = sshll.u32 [#allocation8], 4
          %s227 = int_to_ptr.vmem [resolvable:$true] %s226
          %229 = dma.hbm_to_vmem [thread:$0]  %s2, 128, %s227, [#allocation7]
        $region20: #{tpu_custom_call.1} parent=11 // pred_fallthru
          _
        // Predicated region
        $region21: #{tpu_custom_call.1} parent=11 // pred_check
          %p230 = pneg %p109
        $region22: #{tpu_custom_call.1} parent=11 // pred_check_branch
          %232 = sbr.rel (%p230) target = $region24
        $region23: #{tpu_custom_call.1} parent=11 // pred_region
          %s234 = ssub.s32 65536, 65536
          %235 = vsyncadd [#allocation10], %s234
          %s236 = sshll.u32 [#allocation9], 4
          %s237 = int_to_ptr.vmem [resolvable:$true] %s236
          %242 = dma.hbm_to_vmem [thread:$0]  %s3, 65536, %s237, [#allocation10], 512, 512, 32
        $region24: #{tpu_custom_call.1} parent=11 // pred_fallthru
          _
        // Predicated region
        $region25: #{tpu_custom_call.1} parent=11 // pred_check
          %p243 = pneg %p130
        $region26: #{tpu_custom_call.1} parent=11 // pred_check_branch
          %245 = sbr.rel (%p243) target = $region28
        $region27: #{tpu_custom_call.1} parent=11 // pred_region
          %s247 = ssub.s32 128, 128
          %248 = vsyncadd [#allocation10], %s247
          %s250 = sshll.u32 [#allocation11], 4
          %s251 = int_to_ptr.vmem [resolvable:$true] %s250
          %253 = dma.hbm_to_vmem [thread:$0]  %s4, 128, %s251, [#allocation10]
        $region28: #{tpu_custom_call.1} parent=11 // pred_fallthru
          _
        // Predicated region
        $region29: #{tpu_custom_call.1} parent=11 // pred_check
          %p254 = pneg %p151
        $region30: #{tpu_custom_call.1} parent=11 // pred_check_branch
          %256 = sbr.rel (%p254) target = $region32
        $region31: #{tpu_custom_call.1} parent=11 // pred_region
          %s258 = ssub.s32 8192, 8192
          %259 = vsyncadd [#allocation13], %s258
          %s260 = sshll.u32 [#allocation12], 4
          %s261 = int_to_ptr.vmem [resolvable:$true] %s260
          %266 = dma.hbm_to_vmem [thread:$0]  %s5, 8192, %s261, [#allocation13], 64, 64, 4
        $region32: #{tpu_custom_call.1} parent=11 // pred_fallthru
          _
        // Predicated region
        $region33: #{tpu_custom_call.1} parent=11 // pred_check
          %p267 = pneg %p172
        $region34: #{tpu_custom_call.1} parent=11 // pred_check_branch
          %269 = sbr.rel (%p267) target = $region36
        $region35: #{tpu_custom_call.1} parent=11 // pred_region
          %s271 = ssub.s32 16, 16
          %272 = vsyncadd [#allocation13], %s271
          %s274 = sshll.u32 [#allocation14], 4
          %s275 = int_to_ptr.vmem [resolvable:$true] %s274
          %277 = dma.hbm_to_vmem [thread:$0]  %s6, 16, %s275, [#allocation13]
        $region36: #{tpu_custom_call.1} parent=11 // pred_fallthru
          _
      $region12: #{tpu_custom_call.1} parent=5 // pred_fallthru
        _
      %p278 = scmp.lt.s32.totalorder %s20, 2
      // Predicated region
      $region37: #{tpu_custom_call.1} parent=5 // pred_check
        %p279 = pneg %p278
      $region38: #{tpu_custom_call.1} parent=5 // pred_check_branch
        %281 = sbr.rel (%p279) target = $region40
      $region39: #{tpu_custom_call.1} parent=5 // pred_region
        // Predicated region
        $region41: #{tpu_custom_call.1} parent=39 // pred_check
          %p282 = pneg %p61
        $region42: #{tpu_custom_call.1} parent=39 // pred_check_branch
          %284 = sbr.rel (%p282) target = $region44
        $region43: #{tpu_custom_call.1} parent=39 // pred_region
          %s285 = sand.u32 %s20, 1
          %s286 = scalar_lea.sflag [#allocation7], %s285
          %s287 = sand.u32 %s51, 1
          %s288 = smul.addr %s287, 1024
          %s289 = scalar_lea.vmem [#allocation6], %s288
          %s290 = smul.u32 32, %s20
          %s292 = ssub.s32 16384, 16384
          %293 = vsyncadd %s286, %s292
          %s294 = smul.addr %s290, 8
          %s295 = smul.addr %s294, 64
          %s296 = scalar_lea.hbm %s1, %s295
          %s297 = sshll.u32 %s289, 4
          %s298 = int_to_ptr.vmem [resolvable:$true] %s297
          %303 = dma.hbm_to_vmem [thread:$0]  %s296, 16384, %s298, %s286, 512, 512, 32
        $region44: #{tpu_custom_call.1} parent=39 // pred_fallthru
          _
      $region40: #{tpu_custom_call.1} parent=5 // pred_fallthru
        _
      %p304 = scmp.le.s32.totalorder 1, %s20
      %p305 = scmp.lt.s32.totalorder %s20, 3
      %p306 = pnand %p304, %p305
      %p307 = pneg %p306
      // Predicated region
      $region45: #{tpu_custom_call.1} parent=5 // pred_check
        _
      $region46: #{tpu_custom_call.1} parent=5 // pred_check_branch
        %309 = sbr.rel (%p306) target = $region48
      $region47: #{tpu_custom_call.1} parent=5 // pred_region
        %s310 = ssub.s32 %s20, 1
        // Predicated region
        $region49: #{tpu_custom_call.1} parent=47 // pred_check
          %p311 = pneg %p41
        $region50: #{tpu_custom_call.1} parent=47 // pred_check_branch
          %313 = sbr.rel (%p311) target = $region52
        $region51: #{tpu_custom_call.1} parent=47 // pred_region
          %314 = dma.done [#allocation4], 256
        $region52: #{tpu_custom_call.1} parent=47 // pred_fallthru
          _
        %s315 = sand.u32 %s25, 1
        %s316 = scalar_lea.sflag [#allocation7], %s315
        %s317 = sand.u32 %s54, 1
        %s318 = smul.addr %s317, 1024
        %s319 = scalar_lea.vmem [#allocation6], %s318
        // Predicated region
        $region53: #{tpu_custom_call.1} parent=47 // pred_check
          %p320 = pneg %p67
        $region54: #{tpu_custom_call.1} parent=47 // pred_check_branch
          %322 = sbr.rel (%p320) target = $region56
        $region55: #{tpu_custom_call.1} parent=47 // pred_region
          %323 = dma.done %s316, 16384
        $region56: #{tpu_custom_call.1} parent=47 // pred_fallthru
          _
        // Predicated region
        $region57: #{tpu_custom_call.1} parent=47 // pred_check
          %p324 = pneg %p88
        $region58: #{tpu_custom_call.1} parent=47 // pred_check_branch
          %326 = sbr.rel (%p324) target = $region60
        $region59: #{tpu_custom_call.1} parent=47 // pred_region
          %327 = dma.done [#allocation7], 128
        $region60: #{tpu_custom_call.1} parent=47 // pred_fallthru
          _
        // Predicated region
        $region61: #{tpu_custom_call.1} parent=47 // pred_check
          %p328 = pneg %p109
        $region62: #{tpu_custom_call.1} parent=47 // pred_check_branch
          %330 = sbr.rel (%p328) target = $region64
        $region63: #{tpu_custom_call.1} parent=47 // pred_region
          %331 = dma.done [#allocation10], 65536
        $region64: #{tpu_custom_call.1} parent=47 // pred_fallthru
          _
        // Predicated region
        $region65: #{tpu_custom_call.1} parent=47 // pred_check
          %p332 = pneg %p130
        $region66: #{tpu_custom_call.1} parent=47 // pred_check_branch
          %334 = sbr.rel (%p332) target = $region68
        $region67: #{tpu_custom_call.1} parent=47 // pred_region
          %335 = dma.done [#allocation10], 128
        $region68: #{tpu_custom_call.1} parent=47 // pred_fallthru
          _
        // Predicated region
        $region69: #{tpu_custom_call.1} parent=47 // pred_check
          %p336 = pneg %p151
        $region70: #{tpu_custom_call.1} parent=47 // pred_check_branch
          %338 = sbr.rel (%p336) target = $region72
        $region71: #{tpu_custom_call.1} parent=47 // pred_region
          %339 = dma.done [#allocation13], 8192
        $region72: #{tpu_custom_call.1} parent=47 // pred_fallthru
          _
        // Predicated region
        $region73: #{tpu_custom_call.1} parent=47 // pred_check
          %p340 = pneg %p172
        $region74: #{tpu_custom_call.1} parent=47 // pred_check_branch
          %342 = sbr.rel (%p340) target = $region76
        $region75: #{tpu_custom_call.1} parent=47 // pred_region
          %343 = dma.done [#allocation13], 16
        $region76: #{tpu_custom_call.1} parent=47 // pred_fallthru
          _
        %p344 = pneg %p41
        %p345 = pneg %p38
        %s346 = sand.u32 %s25, 1
        %s347 = scalar_lea.sflag [#allocation7], %s346
        %s348 = sand.u32 %s54, 1
        %s349 = smul.addr %s348, 1024
        %s350 = scalar_lea.vmem [#allocation6], %s349
        %p351 = pneg %p67
        %p352 = pneg %p64
        %p353 = pneg %p88
        %p354 = pneg %p85
        %p355 = pneg %p109
        %p356 = pneg %p106
        %p357 = pneg %p130
        %p358 = pneg %p127
        %p359 = pneg %p151
        %p360 = pneg %p148
        %p361 = pneg %p172
        %p362 = pneg %p169
        %p363 = pneg %p193
        %p364 = pneg %p190
        %s365 = smul.u32 32, %s25
        %p367 = scmp.eq.s32.totalorder %s25, 0
        // Predicated region
        $region77: #{tpu_custom_call.1} parent=47 // pred_check
          %p368 = pneg %p367
        $region78: #{tpu_custom_call.1} parent=47 // pred_check_branch
          %370 = sbr.rel (%p368) target = $region80
        $region79: #{tpu_custom_call.1} parent=47 // pred_region
          %371 = vst [vmem:[#allocation2] sm:$0xff] 0.0
          %372 = vst [vmem:[#allocation2 + $0x8] sm:$0xff] 0.0
          %373 = vst [vmem:[#allocation2 + $0x10] sm:$0xff] 0.0
          %374 = vst [vmem:[#allocation2 + $0x18] sm:$0xff] 0.0
          %375 = vst [vmem:[#allocation2 + $0x20] sm:$0xff] 0.0
          %376 = vst [vmem:[#allocation2 + $0x28] sm:$0xff] 0.0
          %377 = vst [vmem:[#allocation2 + $0x30] sm:$0xff] 0.0
          %378 = vst [vmem:[#allocation2 + $0x38] sm:$0xff] 0.0
        $region80: #{tpu_custom_call.1} parent=47 // pred_fallthru
          _
        %s379 = smul.u32 %s25, 256
        %s380 = sshra.s32 %s379, 7
        %s381 = sand.u32 %s379, 127
        %s382 = smul.addr %s380, 4
        %s383 = scalar_lea.vmem [#allocation3], %s382
        %v384 = vld [vmem:[%s383] sm:$0xff]
        %v385 = vld [vmem:[#allocation2] sm:$0xff]
        %v386 = vld [vmem:[#allocation2 + $0x8] sm:$0xff]
        %v387 = vld [vmem:[#allocation2 + $0x10] sm:$0xff]
        %v388 = vld [vmem:[#allocation2 + $0x18] sm:$0xff]
        %v389 = vld [vmem:[#allocation2 + $0x20] sm:$0xff]
        %v390 = vld [vmem:[#allocation2 + $0x28] sm:$0xff]
        %v391 = vld [vmem:[#allocation2 + $0x30] sm:$0xff]
        %v392 = vld [vmem:[#allocation2 + $0x38] sm:$0xff]
        %v393 = vld [vmem:[%s319] sm:$0xff]
        %v394 = vld [vmem:[%s319 + $0x8] sm:$0xff]
        %v395 = vld [vmem:[%s319 + $0x10] sm:$0xff]
        %v396 = vld [vmem:[%s319 + $0x18] sm:$0xff]
        %v397 = vld [vmem:[%s319 + $0x20] sm:$0xff]
        %v398 = vld [vmem:[%s319 + $0x28] sm:$0xff]
        %v399 = vld [vmem:[%s319 + $0x30] sm:$0xff]
        %v400 = vld [vmem:[%s319 + $0x38] sm:$0xff]
        %v401 = vld [vmem:[%s319 + $0x40] sm:$0xff]
        %v402 = vld [vmem:[%s319 + $0x48] sm:$0xff]
        %v403 = vld [vmem:[%s319 + $0x50] sm:$0xff]
        %v404 = vld [vmem:[%s319 + $0x58] sm:$0xff]
        %v405 = vld [vmem:[%s319 + $0x60] sm:$0xff]
        %v406 = vld [vmem:[%s319 + $0x68] sm:$0xff]
        %v407 = vld [vmem:[%s319 + $0x70] sm:$0xff]
        %v408 = vld [vmem:[%s319 + $0x78] sm:$0xff]
        %v409 = vld [vmem:[%s319 + $0x80] sm:$0xff]
        %v410 = vld [vmem:[%s319 + $0x88] sm:$0xff]
        %v411 = vld [vmem:[%s319 + $0x90] sm:$0xff]
        %v412 = vld [vmem:[%s319 + $0x98] sm:$0xff]
        %v413 = vld [vmem:[%s319 + $0xa0] sm:$0xff]
        %v414 = vld [vmem:[%s319 + $0xa8] sm:$0xff]
        %v415 = vld [vmem:[%s319 + $0xb0] sm:$0xff]
        %v416 = vld [vmem:[%s319 + $0xb8] sm:$0xff]
        %v417 = vld [vmem:[%s319 + $0xc0] sm:$0xff]
        %v418 = vld [vmem:[%s319 + $0xc8] sm:$0xff]
        %v419 = vld [vmem:[%s319 + $0xd0] sm:$0xff]
        %v420 = vld [vmem:[%s319 + $0xd8] sm:$0xff]
        %v421 = vld [vmem:[%s319 + $0xe0] sm:$0xff]
        %v422 = vld [vmem:[%s319 + $0xe8] sm:$0xff]
        %v423 = vld [vmem:[%s319 + $0xf0] sm:$0xff]
        %v424 = vld [vmem:[%s319 + $0xf8] sm:$0xff]
        %v425 = vld [vmem:[%s319 + $0x100] sm:$0xff]
        %v426 = vld [vmem:[%s319 + $0x108] sm:$0xff]
        %v427 = vld [vmem:[%s319 + $0x110] sm:$0xff]
        %v428 = vld [vmem:[%s319 + $0x118] sm:$0xff]
        %v429 = vld [vmem:[%s319 + $0x120] sm:$0xff]
        %v430 = vld [vmem:[%s319 + $0x128] sm:$0xff]
        %v431 = vld [vmem:[%s319 + $0x130] sm:$0xff]
        %v432 = vld [vmem:[%s319 + $0x138] sm:$0xff]
        %v433 = vld [vmem:[%s319 + $0x140] sm:$0xff]
        %v434 = vld [vmem:[%s319 + $0x148] sm:$0xff]
        %v435 = vld [vmem:[%s319 + $0x150] sm:$0xff]
        %v436 = vld [vmem:[%s319 + $0x158] sm:$0xff]
        %v437 = vld [vmem:[%s319 + $0x160] sm:$0xff]
        %v438 = vld [vmem:[%s319 + $0x168] sm:$0xff]
        %v439 = vld [vmem:[%s319 + $0x170] sm:$0xff]
        %v440 = vld [vmem:[%s319 + $0x178] sm:$0xff]
        %v441 = vld [vmem:[%s319 + $0x180] sm:$0xff]
        %v442 = vld [vmem:[%s319 + $0x188] sm:$0xff]
        %v443 = vld [vmem:[%s319 + $0x190] sm:$0xff]
        %v444 = vld [vmem:[%s319 + $0x198] sm:$0xff]
        %v445 = vld [vmem:[%s319 + $0x1a0] sm:$0xff]
        %v446 = vld [vmem:[%s319 + $0x1a8] sm:$0xff]
        %v447 = vld [vmem:[%s319 + $0x1b0] sm:$0xff]
        %v448 = vld [vmem:[%s319 + $0x1b8] sm:$0xff]
        %v449 = vld [vmem:[%s319 + $0x1c0] sm:$0xff]
        %v450 = vld [vmem:[%s319 + $0x1c8] sm:$0xff]
        %v451 = vld [vmem:[%s319 + $0x1d0] sm:$0xff]
        %v452 = vld [vmem:[%s319 + $0x1d8] sm:$0xff]
        %v453 = vld [vmem:[%s319 + $0x1e0] sm:$0xff]
        %v454 = vld [vmem:[%s319 + $0x1e8] sm:$0xff]
        %v455 = vld [vmem:[%s319 + $0x1f0] sm:$0xff]
        %v456 = vld [vmem:[%s319 + $0x1f8] sm:$0xff]
        %v457 = vld [vmem:[%s319 + $0x200] sm:$0xff]
        %v458 = vld [vmem:[%s319 + $0x208] sm:$0xff]
        %v459 = vld [vmem:[%s319 + $0x210] sm:$0xff]
        %v460 = vld [vmem:[%s319 + $0x218] sm:$0xff]
        %v461 = vld [vmem:[%s319 + $0x220] sm:$0xff]
        %v462 = vld [vmem:[%s319 + $0x228] sm:$0xff]
        %v463 = vld [vmem:[%s319 + $0x230] sm:$0xff]
        %v464 = vld [vmem:[%s319 + $0x238] sm:$0xff]
        %v465 = vld [vmem:[%s319 + $0x240] sm:$0xff]
        %v466 = vld [vmem:[%s319 + $0x248] sm:$0xff]
        %v467 = vld [vmem:[%s319 + $0x250] sm:$0xff]
        %v468 = vld [vmem:[%s319 + $0x258] sm:$0xff]
        %v469 = vld [vmem:[%s319 + $0x260] sm:$0xff]
        %v470 = vld [vmem:[%s319 + $0x268] sm:$0xff]
        %v471 = vld [vmem:[%s319 + $0x270] sm:$0xff]
        %v472 = vld [vmem:[%s319 + $0x278] sm:$0xff]
        %v473 = vld [vmem:[%s319 + $0x280] sm:$0xff]
        %v474 = vld [vmem:[%s319 + $0x288] sm:$0xff]
        %v475 = vld [vmem:[%s319 + $0x290] sm:$0xff]
        %v476 = vld [vmem:[%s319 + $0x298] sm:$0xff]
        %v477 = vld [vmem:[%s319 + $0x2a0] sm:$0xff]
        %v478 = vld [vmem:[%s319 + $0x2a8] sm:$0xff]
        %v479 = vld [vmem:[%s319 + $0x2b0] sm:$0xff]
        %v480 = vld [vmem:[%s319 + $0x2b8] sm:$0xff]
        %v481 = vld [vmem:[%s319 + $0x2c0] sm:$0xff]
        %v482 = vld [vmem:[%s319 + $0x2c8] sm:$0xff]
        %v483 = vld [vmem:[%s319 + $0x2d0] sm:$0xff]
        %v484 = vld [vmem:[%s319 + $0x2d8] sm:$0xff]
        %v485 = vld [vmem:[%s319 + $0x2e0] sm:$0xff]
        %v486 = vld [vmem:[%s319 + $0x2e8] sm:$0xff]
        %v487 = vld [vmem:[%s319 + $0x2f0] sm:$0xff]
        %v488 = vld [vmem:[%s319 + $0x2f8] sm:$0xff]
        %v489 = vld [vmem:[%s319 + $0x300] sm:$0xff]
        %v490 = vld [vmem:[%s319 + $0x308] sm:$0xff]
        %v491 = vld [vmem:[%s319 + $0x310] sm:$0xff]
        %v492 = vld [vmem:[%s319 + $0x318] sm:$0xff]
        %v493 = vld [vmem:[%s319 + $0x320] sm:$0xff]
        %v494 = vld [vmem:[%s319 + $0x328] sm:$0xff]
        %v495 = vld [vmem:[%s319 + $0x330] sm:$0xff]
        %v496 = vld [vmem:[%s319 + $0x338] sm:$0xff]
        %v497 = vld [vmem:[%s319 + $0x340] sm:$0xff]
        %v498 = vld [vmem:[%s319 + $0x348] sm:$0xff]
        %v499 = vld [vmem:[%s319 + $0x350] sm:$0xff]
        %v500 = vld [vmem:[%s319 + $0x358] sm:$0xff]
        %v501 = vld [vmem:[%s319 + $0x360] sm:$0xff]
        %v502 = vld [vmem:[%s319 + $0x368] sm:$0xff]
        %v503 = vld [vmem:[%s319 + $0x370] sm:$0xff]
        %v504 = vld [vmem:[%s319 + $0x378] sm:$0xff]
        %v505 = vld [vmem:[%s319 + $0x380] sm:$0xff]
        %v506 = vld [vmem:[%s319 + $0x388] sm:$0xff]
        %v507 = vld [vmem:[%s319 + $0x390] sm:$0xff]
        %v508 = vld [vmem:[%s319 + $0x398] sm:$0xff]
        %v509 = vld [vmem:[%s319 + $0x3a0] sm:$0xff]
        %v510 = vld [vmem:[%s319 + $0x3a8] sm:$0xff]
        %v511 = vld [vmem:[%s319 + $0x3b0] sm:$0xff]
        %v512 = vld [vmem:[%s319 + $0x3b8] sm:$0xff]
        %v513 = vld [vmem:[%s319 + $0x3c0] sm:$0xff]
        %v514 = vld [vmem:[%s319 + $0x3c8] sm:$0xff]
        %v515 = vld [vmem:[%s319 + $0x3d0] sm:$0xff]
        %v516 = vld [vmem:[%s319 + $0x3d8] sm:$0xff]
        %v517 = vld [vmem:[%s319 + $0x3e0] sm:$0xff]
        %v518 = vld [vmem:[%s319 + $0x3e8] sm:$0xff]
        %v519 = vld [vmem:[%s319 + $0x3f0] sm:$0xff]
        %v520 = vld [vmem:[%s319 + $0x3f8] sm:$0xff]
        %v522 = vunpack.c.l.b16 %v384
        %v523 = vunpack.c.h.b16 %v384
        %v524 = vpack.c.b16 %v522, %v522
        %v525 = vpack.c.b16 %v523, %v523
        %v656 = vunpack.c.l.b16 %v393
        %v657 = vunpack.c.h.b16 %v393
        %v658 = vunpack.c.l.b16 %v394
        %v659 = vunpack.c.h.b16 %v394
        %v660 = vunpack.c.l.b16 %v395
        %v661 = vunpack.c.h.b16 %v395
        %v662 = vunpack.c.l.b16 %v396
        %v663 = vunpack.c.h.b16 %v396
        %v664 = vunpack.c.l.b16 %v397
        %v665 = vunpack.c.h.b16 %v397
        %v666 = vunpack.c.l.b16 %v398
        %v667 = vunpack.c.h.b16 %v398
        %v668 = vunpack.c.l.b16 %v399
        %v669 = vunpack.c.h.b16 %v399
        %v670 = vunpack.c.l.b16 %v400
        %v671 = vunpack.c.h.b16 %v400
        %v672 = vunpack.c.l.b16 %v401
        %v673 = vunpack.c.h.b16 %v401
        %v674 = vunpack.c.l.b16 %v402
        %v675 = vunpack.c.h.b16 %v402
        %v676 = vunpack.c.l.b16 %v403
        %v677 = vunpack.c.h.b16 %v403
        %v678 = vunpack.c.l.b16 %v404
        %v679 = vunpack.c.h.b16 %v404
        %v680 = vunpack.c.l.b16 %v405
        %v681 = vunpack.c.h.b16 %v405
        %v682 = vunpack.c.l.b16 %v406
        %v683 = vunpack.c.h.b16 %v406
        %v684 = vunpack.c.l.b16 %v407
        %v685 = vunpack.c.h.b16 %v407
        %v686 = vunpack.c.l.b16 %v408
        %v687 = vunpack.c.h.b16 %v408
        %v688 = vunpack.c.l.b16 %v409
        %v689 = vunpack.c.h.b16 %v409
        %v690 = vunpack.c.l.b16 %v410
        %v691 = vunpack.c.h.b16 %v410
        %v692 = vunpack.c.l.b16 %v411
        %v693 = vunpack.c.h.b16 %v411
        %v694 = vunpack.c.l.b16 %v412
        %v695 = vunpack.c.h.b16 %v412
        %v696 = vunpack.c.l.b16 %v413
        %v697 = vunpack.c.h.b16 %v413
        %v698 = vunpack.c.l.b16 %v414
        %v699 = vunpack.c.h.b16 %v414
        %v700 = vunpack.c.l.b16 %v415
        %v701 = vunpack.c.h.b16 %v415
        %v702 = vunpack.c.l.b16 %v416
        %v703 = vunpack.c.h.b16 %v416
        %v704 = vunpack.c.l.b16 %v417
        %v705 = vunpack.c.h.b16 %v417
        %v706 = vunpack.c.l.b16 %v418
        %v707 = vunpack.c.h.b16 %v418
        %v708 = vunpack.c.l.b16 %v419
        %v709 = vunpack.c.h.b16 %v419
        %v710 = vunpack.c.l.b16 %v420
        %v711 = vunpack.c.h.b16 %v420
        %v712 = vunpack.c.l.b16 %v421
        %v713 = vunpack.c.h.b16 %v421
        %v714 = vunpack.c.l.b16 %v422
        %v715 = vunpack.c.h.b16 %v422
        %v716 = vunpack.c.l.b16 %v423
        %v717 = vunpack.c.h.b16 %v423
        %v718 = vunpack.c.l.b16 %v424
        %v719 = vunpack.c.h.b16 %v424
        %v720 = vunpack.c.l.b16 %v425
        %v721 = vunpack.c.h.b16 %v425
        %v722 = vunpack.c.l.b16 %v426
        %v723 = vunpack.c.h.b16 %v426
        %v724 = vunpack.c.l.b16 %v427
        %v725 = vunpack.c.h.b16 %v427
        %v726 = vunpack.c.l.b16 %v428
        %v727 = vunpack.c.h.b16 %v428
        %v728 = vunpack.c.l.b16 %v429
        %v729 = vunpack.c.h.b16 %v429
        %v730 = vunpack.c.l.b16 %v430
        %v731 = vunpack.c.h.b16 %v430
        %v732 = vunpack.c.l.b16 %v431
        %v733 = vunpack.c.h.b16 %v431
        %v734 = vunpack.c.l.b16 %v432
        %v735 = vunpack.c.h.b16 %v432
        %v736 = vunpack.c.l.b16 %v433
        %v737 = vunpack.c.h.b16 %v433
        %v738 = vunpack.c.l.b16 %v434
        %v739 = vunpack.c.h.b16 %v434
        %v740 = vunpack.c.l.b16 %v435
        %v741 = vunpack.c.h.b16 %v435
        %v742 = vunpack.c.l.b16 %v436
        %v743 = vunpack.c.h.b16 %v436
        %v744 = vunpack.c.l.b16 %v437
        %v745 = vunpack.c.h.b16 %v437
        %v746 = vunpack.c.l.b16 %v438
        %v747 = vunpack.c.h.b16 %v438
        %v748 = vunpack.c.l.b16 %v439
        %v749 = vunpack.c.h.b16 %v439
        %v750 = vunpack.c.l.b16 %v440
        %v751 = vunpack.c.h.b16 %v440
        %v752 = vunpack.c.l.b16 %v441
        %v753 = vunpack.c.h.b16 %v441
        %v754 = vunpack.c.l.b16 %v442
        %v755 = vunpack.c.h.b16 %v442
        %v756 = vunpack.c.l.b16 %v443
        %v757 = vunpack.c.h.b16 %v443
        %v758 = vunpack.c.l.b16 %v444
        %v759 = vunpack.c.h.b16 %v444
        %v760 = vunpack.c.l.b16 %v445
        %v761 = vunpack.c.h.b16 %v445
        %v762 = vunpack.c.l.b16 %v446
        %v763 = vunpack.c.h.b16 %v446
        %v764 = vunpack.c.l.b16 %v447
        %v765 = vunpack.c.h.b16 %v447
        %v766 = vunpack.c.l.b16 %v448
        %v767 = vunpack.c.h.b16 %v448
        %v768 = vunpack.c.l.b16 %v449
        %v769 = vunpack.c.h.b16 %v449
        %v770 = vunpack.c.l.b16 %v450
        %v771 = vunpack.c.h.b16 %v450
        %v772 = vunpack.c.l.b16 %v451
        %v773 = vunpack.c.h.b16 %v451
        %v774 = vunpack.c.l.b16 %v452
        %v775 = vunpack.c.h.b16 %v452
        %v776 = vunpack.c.l.b16 %v453
        %v777 = vunpack.c.h.b16 %v453
        %v778 = vunpack.c.l.b16 %v454
        %v779 = vunpack.c.h.b16 %v454
        %v780 = vunpack.c.l.b16 %v455
        %v781 = vunpack.c.h.b16 %v455
        %v782 = vunpack.c.l.b16 %v456
        %v783 = vunpack.c.h.b16 %v456
        %v784 = vunpack.c.l.b16 %v457
        %v785 = vunpack.c.h.b16 %v457
        %v786 = vunpack.c.l.b16 %v458
        %v787 = vunpack.c.h.b16 %v458
        %v788 = vunpack.c.l.b16 %v459
        %v789 = vunpack.c.h.b16 %v459
        %v790 = vunpack.c.l.b16 %v460
        %v791 = vunpack.c.h.b16 %v460
        %v792 = vunpack.c.l.b16 %v461
        %v793 = vunpack.c.h.b16 %v461
        %v794 = vunpack.c.l.b16 %v462
        %v795 = vunpack.c.h.b16 %v462
        %v796 = vunpack.c.l.b16 %v463
        %v797 = vunpack.c.h.b16 %v463
        %v798 = vunpack.c.l.b16 %v464
        %v799 = vunpack.c.h.b16 %v464
        %v800 = vunpack.c.l.b16 %v465
        %v801 = vunpack.c.h.b16 %v465
        %v802 = vunpack.c.l.b16 %v466
        %v803 = vunpack.c.h.b16 %v466
        %v804 = vunpack.c.l.b16 %v467
        %v805 = vunpack.c.h.b16 %v467
        %v806 = vunpack.c.l.b16 %v468
        %v807 = vunpack.c.h.b16 %v468
        %v808 = vunpack.c.l.b16 %v469
        %v809 = vunpack.c.h.b16 %v469
        %v810 = vunpack.c.l.b16 %v470
        %v811 = vunpack.c.h.b16 %v470
        %v812 = vunpack.c.l.b16 %v471
        %v813 = vunpack.c.h.b16 %v471
        %v814 = vunpack.c.l.b16 %v472
        %v815 = vunpack.c.h.b16 %v472
        %v816 = vunpack.c.l.b16 %v473
        %v817 = vunpack.c.h.b16 %v473
        %v818 = vunpack.c.l.b16 %v474
        %v819 = vunpack.c.h.b16 %v474
        %v820 = vunpack.c.l.b16 %v475
        %v821 = vunpack.c.h.b16 %v475
        %v822 = vunpack.c.l.b16 %v476
        %v823 = vunpack.c.h.b16 %v476
        %v824 = vunpack.c.l.b16 %v477
        %v825 = vunpack.c.h.b16 %v477
        %v826 = vunpack.c.l.b16 %v478
        %v827 = vunpack.c.h.b16 %v478
        %v828 = vunpack.c.l.b16 %v479
        %v829 = vunpack.c.h.b16 %v479
        %v830 = vunpack.c.l.b16 %v480
        %v831 = vunpack.c.h.b16 %v480
        %v832 = vunpack.c.l.b16 %v481
        %v833 = vunpack.c.h.b16 %v481
        %v834 = vunpack.c.l.b16 %v482
        %v835 = vunpack.c.h.b16 %v482
        %v836 = vunpack.c.l.b16 %v483
        %v837 = vunpack.c.h.b16 %v483
        %v838 = vunpack.c.l.b16 %v484
        %v839 = vunpack.c.h.b16 %v484
        %v840 = vunpack.c.l.b16 %v485
        %v841 = vunpack.c.h.b16 %v485
        %v842 = vunpack.c.l.b16 %v486
        %v843 = vunpack.c.h.b16 %v486
        %v844 = vunpack.c.l.b16 %v487
        %v845 = vunpack.c.h.b16 %v487
        %v846 = vunpack.c.l.b16 %v488
        %v847 = vunpack.c.h.b16 %v488
        %v848 = vunpack.c.l.b16 %v489
        %v849 = vunpack.c.h.b16 %v489
        %v850 = vunpack.c.l.b16 %v490
        %v851 = vunpack.c.h.b16 %v490
        %v852 = vunpack.c.l.b16 %v491
        %v853 = vunpack.c.h.b16 %v491
        %v854 = vunpack.c.l.b16 %v492
        %v855 = vunpack.c.h.b16 %v492
        %v856 = vunpack.c.l.b16 %v493
        %v857 = vunpack.c.h.b16 %v493
        %v858 = vunpack.c.l.b16 %v494
        %v859 = vunpack.c.h.b16 %v494
        %v860 = vunpack.c.l.b16 %v495
        %v861 = vunpack.c.h.b16 %v495
        %v862 = vunpack.c.l.b16 %v496
        %v863 = vunpack.c.h.b16 %v496
        %v864 = vunpack.c.l.b16 %v497
        %v865 = vunpack.c.h.b16 %v497
        %v866 = vunpack.c.l.b16 %v498
        %v867 = vunpack.c.h.b16 %v498
        %v868 = vunpack.c.l.b16 %v499
        %v869 = vunpack.c.h.b16 %v499
        %v870 = vunpack.c.l.b16 %v500
        %v871 = vunpack.c.h.b16 %v500
        %v872 = vunpack.c.l.b16 %v501
        %v873 = vunpack.c.h.b16 %v501
        %v874 = vunpack.c.l.b16 %v502
        %v875 = vunpack.c.h.b16 %v502
        %v876 = vunpack.c.l.b16 %v503
        %v877 = vunpack.c.h.b16 %v503
        %v878 = vunpack.c.l.b16 %v504
        %v879 = vunpack.c.h.b16 %v504
        %v880 = vunpack.c.l.b16 %v505
        %v881 = vunpack.c.h.b16 %v505
        %v882 = vunpack.c.l.b16 %v506
        %v883 = vunpack.c.h.b16 %v506
        %v884 = vunpack.c.l.b16 %v507
        %v885 = vunpack.c.h.b16 %v507
        %v886 = vunpack.c.l.b16 %v508
        %v887 = vunpack.c.h.b16 %v508
        %v888 = vunpack.c.l.b16 %v509
        %v889 = vunpack.c.h.b16 %v509
        %v890 = vunpack.c.l.b16 %v510
        %v891 = vunpack.c.h.b16 %v510
        %v892 = vunpack.c.l.b16 %v511
        %v893 = vunpack.c.h.b16 %v511
        %v894 = vunpack.c.l.b16 %v512
        %v895 = vunpack.c.h.b16 %v512
        %v896 = vunpack.c.l.b16 %v513
        %v897 = vunpack.c.h.b16 %v513
        %v898 = vunpack.c.l.b16 %v514
        %v899 = vunpack.c.h.b16 %v514
        %v900 = vunpack.c.l.b16 %v515
        %v901 = vunpack.c.h.b16 %v515
        %v902 = vunpack.c.l.b16 %v516
        %v903 = vunpack.c.h.b16 %v516
        %v904 = vunpack.c.l.b16 %v517
        %v905 = vunpack.c.h.b16 %v517
        %v906 = vunpack.c.l.b16 %v518
        %v907 = vunpack.c.h.b16 %v518
        %v908 = vunpack.c.l.b16 %v519
        %v909 = vunpack.c.h.b16 %v519
        %v910 = vunpack.c.l.b16 %v520
        %v911 = vunpack.c.h.b16 %v520
        %v912 = vpack.c.b16 %v664, %v656
        %v913 = vpack.c.b16 %v665, %v657
        %v914 = vpack.c.b16 %v666, %v658
        %v915 = vpack.c.b16 %v667, %v659
        %v916 = vpack.c.b16 %v668, %v660
        %v917 = vpack.c.b16 %v669, %v661
        %v918 = vpack.c.b16 %v670, %v662
        %v919 = vpack.c.b16 %v671, %v663
        %v920 = vpack.c.b16 %v680, %v672
        %v921 = vpack.c.b16 %v681, %v673
        %v922 = vpack.c.b16 %v682, %v674
        %v923 = vpack.c.b16 %v683, %v675
        %v924 = vpack.c.b16 %v684, %v676
        %v925 = vpack.c.b16 %v685, %v677
        %v926 = vpack.c.b16 %v686, %v678
        %v927 = vpack.c.b16 %v687, %v679
        %v928 = vpack.c.b16 %v696, %v688
        %v929 = vpack.c.b16 %v697, %v689
        %v930 = vpack.c.b16 %v698, %v690
        %v931 = vpack.c.b16 %v699, %v691
        %v932 = vpack.c.b16 %v700, %v692
        %v933 = vpack.c.b16 %v701, %v693
        %v934 = vpack.c.b16 %v702, %v694
        %v935 = vpack.c.b16 %v703, %v695
        %v936 = vpack.c.b16 %v712, %v704
        %v937 = vpack.c.b16 %v713, %v705
        %v938 = vpack.c.b16 %v714, %v706
        %v939 = vpack.c.b16 %v715, %v707
        %v940 = vpack.c.b16 %v716, %v708
        %v941 = vpack.c.b16 %v717, %v709
        %v942 = vpack.c.b16 %v718, %v710
        %v943 = vpack.c.b16 %v719, %v711
        %v944 = vpack.c.b16 %v728, %v720
        %v945 = vpack.c.b16 %v729, %v721
        %v946 = vpack.c.b16 %v730, %v722
        %v947 = vpack.c.b16 %v731, %v723
        %v948 = vpack.c.b16 %v732, %v724
        %v949 = vpack.c.b16 %v733, %v725
        %v950 = vpack.c.b16 %v734, %v726
        %v951 = vpack.c.b16 %v735, %v727
        %v952 = vpack.c.b16 %v744, %v736
        %v953 = vpack.c.b16 %v745, %v737
        %v954 = vpack.c.b16 %v746, %v738
        %v955 = vpack.c.b16 %v747, %v739
        %v956 = vpack.c.b16 %v748, %v740
        %v957 = vpack.c.b16 %v749, %v741
        %v958 = vpack.c.b16 %v750, %v742
        %v959 = vpack.c.b16 %v751, %v743
        %v960 = vpack.c.b16 %v760, %v752
        %v961 = vpack.c.b16 %v761, %v753
        %v962 = vpack.c.b16 %v762, %v754
        %v963 = vpack.c.b16 %v763, %v755
        %v964 = vpack.c.b16 %v764, %v756
        %v965 = vpack.c.b16 %v765, %v757
        %v966 = vpack.c.b16 %v766, %v758
        %v967 = vpack.c.b16 %v767, %v759
        %v968 = vpack.c.b16 %v776, %v768
        %v969 = vpack.c.b16 %v777, %v769
        %v970 = vpack.c.b16 %v778, %v770
        %v971 = vpack.c.b16 %v779, %v771
        %v972 = vpack.c.b16 %v780, %v772
        %v973 = vpack.c.b16 %v781, %v773
        %v974 = vpack.c.b16 %v782, %v774
        %v975 = vpack.c.b16 %v783, %v775
        %v976 = vpack.c.b16 %v792, %v784
        %v977 = vpack.c.b16 %v793, %v785
        %v978 = vpack.c.b16 %v794, %v786
        %v979 = vpack.c.b16 %v795, %v787
        %v980 = vpack.c.b16 %v796, %v788
        %v981 = vpack.c.b16 %v797, %v789
        %v982 = vpack.c.b16 %v798, %v790
        %v983 = vpack.c.b16 %v799, %v791
        %v984 = vpack.c.b16 %v808, %v800
        %v985 = vpack.c.b16 %v809, %v801
        %v986 = vpack.c.b16 %v810, %v802
        %v987 = vpack.c.b16 %v811, %v803
        %v988 = vpack.c.b16 %v812, %v804
        %v989 = vpack.c.b16 %v813, %v805
        %v990 = vpack.c.b16 %v814, %v806
        %v991 = vpack.c.b16 %v815, %v807
        %v992 = vpack.c.b16 %v824, %v816
        %v993 = vpack.c.b16 %v825, %v817
        %v994 = vpack.c.b16 %v826, %v818
        %v995 = vpack.c.b16 %v827, %v819
        %v996 = vpack.c.b16 %v828, %v820
        %v997 = vpack.c.b16 %v829, %v821
        %v998 = vpack.c.b16 %v830, %v822
        %v999 = vpack.c.b16 %v831, %v823
        %v1000 = vpack.c.b16 %v840, %v832
        %v1001 = vpack.c.b16 %v841, %v833
        %v1002 = vpack.c.b16 %v842, %v834
        %v1003 = vpack.c.b16 %v843, %v835
        %v1004 = vpack.c.b16 %v844, %v836
        %v1005 = vpack.c.b16 %v845, %v837
        %v1006 = vpack.c.b16 %v846, %v838
        %v1007 = vpack.c.b16 %v847, %v839
        %v1008 = vpack.c.b16 %v856, %v848
        %v1009 = vpack.c.b16 %v857, %v849
        %v1010 = vpack.c.b16 %v858, %v850
        %v1011 = vpack.c.b16 %v859, %v851
        %v1012 = vpack.c.b16 %v860, %v852
        %v1013 = vpack.c.b16 %v861, %v853
        %v1014 = vpack.c.b16 %v862, %v854
        %v1015 = vpack.c.b16 %v863, %v855
        %v1016 = vpack.c.b16 %v872, %v864
        %v1017 = vpack.c.b16 %v873, %v865
        %v1018 = vpack.c.b16 %v874, %v866
        %v1019 = vpack.c.b16 %v875, %v867
        %v1020 = vpack.c.b16 %v876, %v868
        %v1021 = vpack.c.b16 %v877, %v869
        %v1022 = vpack.c.b16 %v878, %v870
        %v1023 = vpack.c.b16 %v879, %v871
        %v1024 = vpack.c.b16 %v888, %v880
        %v1025 = vpack.c.b16 %v889, %v881
        %v1026 = vpack.c.b16 %v890, %v882
        %v1027 = vpack.c.b16 %v891, %v883
        %v1028 = vpack.c.b16 %v892, %v884
        %v1029 = vpack.c.b16 %v893, %v885
        %v1030 = vpack.c.b16 %v894, %v886
        %v1031 = vpack.c.b16 %v895, %v887
        %v1032 = vpack.c.b16 %v904, %v896
        %v1033 = vpack.c.b16 %v905, %v897
        %v1034 = vpack.c.b16 %v906, %v898
        %v1035 = vpack.c.b16 %v907, %v899
        %v1036 = vpack.c.b16 %v908, %v900
        %v1037 = vpack.c.b16 %v909, %v901
        %v1038 = vpack.c.b16 %v910, %v902
        %v1039 = vpack.c.b16 %v911, %v903
        %1168 = vmatprep.subr.bf16.mxu0 %v913
        %1169 = vmatpush1.bf16.msra.mxu0 %v912
        %1170 = vmatprep.subr.bf16.mxu0 %v921
        %1171 = vmatpush1.bf16.msra.mxu0 %v920
        %1172 = vmatprep.subr.bf16.mxu0 %v929
        %1173 = vmatpush1.bf16.msra.mxu0 %v928
        %1174 = vmatprep.subr.bf16.mxu0 %v937
        %1175 = vmatpush1.bf16.msra.mxu0 %v936
        %1176 = vmatprep.subr.bf16.mxu0 %v945
        %1177 = vmatpush1.bf16.msra.mxu0 %v944
        %1178 = vmatprep.subr.bf16.mxu0 %v953
        %1179 = vmatpush1.bf16.msra.mxu0 %v952
        %1180 = vmatprep.subr.bf16.mxu0 %v961
        %1181 = vmatpush1.bf16.msra.mxu0 %v960
        %1182 = vmatprep.subr.bf16.mxu0 %v969
        %1183 = vmatpush1.bf16.msra.mxu0 %v968
        %1184 = vmatprep.subr.bf16.mxu0 %v977
        %1185 = vmatpush1.bf16.msra.mxu0 %v976
        %1186 = vmatprep.subr.bf16.mxu0 %v985
        %1187 = vmatpush1.bf16.msra.mxu0 %v984
        %1188 = vmatprep.subr.bf16.mxu0 %v993
        %1189 = vmatpush1.bf16.msra.mxu0 %v992
        %1190 = vmatprep.subr.bf16.mxu0 %v1001
        %1191 = vmatpush1.bf16.msra.mxu0 %v1000
        %1192 = vmatprep.subr.bf16.mxu0 %v1009
        %1193 = vmatpush1.bf16.msra.mxu0 %v1008
        %1194 = vmatprep.subr.bf16.mxu0 %v1017
        %1195 = vmatpush1.bf16.msra.mxu0 %v1016
        %1196 = vmatprep.subr.bf16.mxu0 %v1025
        %1197 = vmatpush1.bf16.msra.mxu0 %v1024
        %1198 = vmatprep.subr.bf16.mxu0 %v1033
        %1199 = vmatpush1.bf16.msra.mxu0 %v1032
        %1200 = vmatprep.mubr.bf16.mxu0 %v525
        %1201 = vmatmul.mubr.bf16.gmra.mrb[0].mxu0 %v524
        %v1202 = vpop.f32.mrb[0].mxu0
        %v1203 = vadd.f32 0.0, %v1202
        %v1204 = vpop.f32.mrb[0].mxu0
        %v1205 = vadd.f32 0.0, %v1204
        %v1206 = vpop.f32.mrb[0].mxu0
        %v1207 = vpop.f32.mrb[0].mxu0
        %1208 = vdwg.mxu0
        %1209 = vmatprep.subr.bf16.mxu0 %v915
        %1210 = vmatpush1.bf16.msra.mxu0 %v914
        %1211 = vmatprep.subr.bf16.mxu0 %v923
        %1212 = vmatpush1.bf16.msra.mxu0 %v922
        %1213 = vmatprep.subr.bf16.mxu0 %v931
        %1214 = vmatpush1.bf16.msra.mxu0 %v930
        %1215 = vmatprep.subr.bf16.mxu0 %v939
        %1216 = vmatpush1.bf16.msra.mxu0 %v938
        %1217 = vmatprep.subr.bf16.mxu0 %v947
        %1218 = vmatpush1.bf16.msra.mxu0 %v946
        %1219 = vmatprep.subr.bf16.mxu0 %v955
        %1220 = vmatpush1.bf16.msra.mxu0 %v954
        %1221 = vmatprep.subr.bf16.mxu0 %v963
        %1222 = vmatpush1.bf16.msra.mxu0 %v962
        %1223 = vmatprep.subr.bf16.mxu0 %v971
        %1224 = vmatpush1.bf16.msra.mxu0 %v970
        %1225 = vmatprep.subr.bf16.mxu0 %v979
        %1226 = vmatpush1.bf16.msra.mxu0 %v978
        %1227 = vmatprep.subr.bf16.mxu0 %v987
        %1228 = vmatpush1.bf16.msra.mxu0 %v986
        %1229 = vmatprep.subr.bf16.mxu0 %v995
        %1230 = vmatpush1.bf16.msra.mxu0 %v994
        %1231 = vmatprep.subr.bf16.mxu0 %v1003
        %1232 = vmatpush1.bf16.msra.mxu0 %v1002
        %1233 = vmatprep.subr.bf16.mxu0 %v1011
        %1234 = vmatpush1.bf16.msra.mxu0 %v1010
        %1235 = vmatprep.subr.bf16.mxu0 %v1019
        %1236 = vmatpush1.bf16.msra.mxu0 %v1018
        %1237 = vmatprep.subr.bf16.mxu0 %v1027
        %1238 = vmatpush1.bf16.msra.mxu0 %v1026
        %1239 = vmatprep.subr.bf16.mxu0 %v1035
        %1240 = vmatpush1.bf16.msra.mxu0 %v1034
        %1241 = vmatprep.mubr.bf16.mxu0 %v525
        %1242 = vmatmul.mubr.bf16.gmra.mrb[0].mxu0 %v524
        %v1243 = vpop.f32.mrb[0].mxu0
        %v1244 = vadd.f32 0.0, %v1243
        %v1245 = vpop.f32.mrb[0].mxu0
        %v1246 = vadd.f32 0.0, %v1245
        %v1247 = vpop.f32.mrb[0].mxu0
        %v1248 = vpop.f32.mrb[0].mxu0
        %1249 = vdwg.mxu0
        %1250 = vmatprep.subr.bf16.mxu0 %v917
        %1251 = vmatpush1.bf16.msra.mxu0 %v916
        %1252 = vmatprep.subr.bf16.mxu0 %v925
        %1253 = vmatpush1.bf16.msra.mxu0 %v924
        %1254 = vmatprep.subr.bf16.mxu0 %v933
        %1255 = vmatpush1.bf16.msra.mxu0 %v932
        %1256 = vmatprep.subr.bf16.mxu0 %v941
        %1257 = vmatpush1.bf16.msra.mxu0 %v940
        %1258 = vmatprep.subr.bf16.mxu0 %v949
        %1259 = vmatpush1.bf16.msra.mxu0 %v948
        %1260 = vmatprep.subr.bf16.mxu0 %v957
        %1261 = vmatpush1.bf16.msra.mxu0 %v956
        %1262 = vmatprep.subr.bf16.mxu0 %v965
        %1263 = vmatpush1.bf16.msra.mxu0 %v964
        %1264 = vmatprep.subr.bf16.mxu0 %v973
        %1265 = vmatpush1.bf16.msra.mxu0 %v972
        %1266 = vmatprep.subr.bf16.mxu0 %v981
        %1267 = vmatpush1.bf16.msra.mxu0 %v980
        %1268 = vmatprep.subr.bf16.mxu0 %v989
        %1269 = vmatpush1.bf16.msra.mxu0 %v988
        %1270 = vmatprep.subr.bf16.mxu0 %v997
        %1271 = vmatpush1.bf16.msra.mxu0 %v996
        %1272 = vmatprep.subr.bf16.mxu0 %v1005
        %1273 = vmatpush1.bf16.msra.mxu0 %v1004
        %1274 = vmatprep.subr.bf16.mxu0 %v1013
        %1275 = vmatpush1.bf16.msra.mxu0 %v1012
        %1276 = vmatprep.subr.bf16.mxu0 %v1021
        %1277 = vmatpush1.bf16.msra.mxu0 %v1020
        %1278 = vmatprep.subr.bf16.mxu0 %v1029
        %1279 = vmatpush1.bf16.msra.mxu0 %v1028
        %1280 = vmatprep.subr.bf16.mxu0 %v1037
        %1281 = vmatpush1.bf16.msra.mxu0 %v1036
        %1282 = vmatprep.mubr.bf16.mxu0 %v525
        %1283 = vmatmul.mubr.bf16.gmra.mrb[0].mxu0 %v524
        %v1284 = vpop.f32.mrb[0].mxu0
        %v1285 = vadd.f32 0.0, %v1284
        %v1286 = vpop.f32.mrb[0].mxu0
        %v1287 = vadd.f32 0.0, %v1286
        %v1288 = vpop.f32.mrb[0].mxu0
        %v1289 = vpop.f32.mrb[0].mxu0
        %1290 = vdwg.mxu0
        %1291 = vmatprep.subr.bf16.mxu0 %v919
        %1292 = vmatpush1.bf16.msra.mxu0 %v918
        %1293 = vmatprep.subr.bf16.mxu0 %v927
        %1294 = vmatpush1.bf16.msra.mxu0 %v926
        %1295 = vmatprep.subr.bf16.mxu0 %v935
        %1296 = vmatpush1.bf16.msra.mxu0 %v934
        %1297 = vmatprep.subr.bf16.mxu0 %v943
        %1298 = vmatpush1.bf16.msra.mxu0 %v942
        %1299 = vmatprep.subr.bf16.mxu0 %v951
        %1300 = vmatpush1.bf16.msra.mxu0 %v950
        %1301 = vmatprep.subr.bf16.mxu0 %v959
        %1302 = vmatpush1.bf16.msra.mxu0 %v958
        %1303 = vmatprep.subr.bf16.mxu0 %v967
        %1304 = vmatpush1.bf16.msra.mxu0 %v966
        %1305 = vmatprep.subr.bf16.mxu0 %v975
        %1306 = vmatpush1.bf16.msra.mxu0 %v974
        %1307 = vmatprep.subr.bf16.mxu0 %v983
        %1308 = vmatpush1.bf16.msra.mxu0 %v982
        %1309 = vmatprep.subr.bf16.mxu0 %v991
        %1310 = vmatpush1.bf16.msra.mxu0 %v990
        %1311 = vmatprep.subr.bf16.mxu0 %v999
        %1312 = vmatpush1.bf16.msra.mxu0 %v998
        %1313 = vmatprep.subr.bf16.mxu0 %v1007
        %1314 = vmatpush1.bf16.msra.mxu0 %v1006
        %1315 = vmatprep.subr.bf16.mxu0 %v1015
        %1316 = vmatpush1.bf16.msra.mxu0 %v1014
        %1317 = vmatprep.subr.bf16.mxu0 %v1023
        %1318 = vmatpush1.bf16.msra.mxu0 %v1022
        %1319 = vmatprep.subr.bf16.mxu0 %v1031
        %1320 = vmatpush1.bf16.msra.mxu0 %v1030
        %1321 = vmatprep.subr.bf16.mxu0 %v1039
        %1322 = vmatpush1.bf16.msra.mxu0 %v1038
        %1323 = vmatprep.mubr.bf16.mxu0 %v525
        %1324 = vmatmul.mubr.bf16.gmra.mrb[0].mxu0 %v524
        %v1325 = vpop.f32.mrb[0].mxu0
        %v1326 = vadd.f32 0.0, %v1325
        %v1327 = vpop.f32.mrb[0].mxu0
        %v1328 = vadd.f32 0.0, %v1327
        %v1329 = vpop.f32.mrb[0].mxu0
        %v1330 = vpop.f32.mrb[0].mxu0
        %1331 = vdwg.mxu0
        %v1332 = vadd.f32 %v385, %v1203
        %v1333 = vadd.f32 %v386, %v1205
        %v1334 = vadd.f32 %v387, %v1244
        %v1335 = vadd.f32 %v388, %v1246
        %v1336 = vadd.f32 %v389, %v1285
        %v1337 = vadd.f32 %v390, %v1287
        %v1338 = vadd.f32 %v391, %v1326
        %v1339 = vadd.f32 %v392, %v1328
        %1340 = vst [vmem:[#allocation2] sm:$0xff] %v1332
        %1341 = vst [vmem:[#allocation2 + $0x8] sm:$0xff] %v1333
        %1342 = vst [vmem:[#allocation2 + $0x10] sm:$0xff] %v1334
        %1343 = vst [vmem:[#allocation2 + $0x18] sm:$0xff] %v1335
        %1344 = vst [vmem:[#allocation2 + $0x20] sm:$0xff] %v1336
        %1345 = vst [vmem:[#allocation2 + $0x28] sm:$0xff] %v1337
        %1346 = vst [vmem:[#allocation2 + $0x30] sm:$0xff] %v1338
        %1347 = vst [vmem:[#allocation2 + $0x38] sm:$0xff] %v1339
        %p1348 = scmp.eq.s32.totalorder %s25, 1
        // Predicated region
        $region81: #{tpu_custom_call.1} parent=47 // pred_check
          %p1349 = pneg %p1348
        $region82: #{tpu_custom_call.1} parent=47 // pred_check_branch
          %1351 = sbr.rel (%p1349) target = $region84
        $region83: #{tpu_custom_call.1} parent=47 // pred_region
          %v1352 = vld [vmem:[#allocation2] sm:$0xff]
          %v1353 = vld [vmem:[#allocation2 + $0x8] sm:$0xff]
          %v1354 = vld [vmem:[#allocation2 + $0x10] sm:$0xff]
          %v1355 = vld [vmem:[#allocation2 + $0x18] sm:$0xff]
          %v1356 = vld [vmem:[#allocation2 + $0x20] sm:$0xff]
          %v1357 = vld [vmem:[#allocation2 + $0x28] sm:$0xff]
          %v1358 = vld [vmem:[#allocation2 + $0x30] sm:$0xff]
          %v1359 = vld [vmem:[#allocation2 + $0x38] sm:$0xff]
          %v1360 = vld [vmem:[#allocation8] sm:$0xff]
          %v1362 = vlaneseq
          %v1363 = vshrl.u32 %v1362, 7
          %v1364 = vsub.s32 0, %v1363
          %v1365 = vrot.slane %v1360, %v1364
          %v1366 = vlaneseq
          %v1367 = vshrl.u32 %v1366, 7
          %v1368 = vsub.s32 1, %v1367
          %v1369 = vrot.slane %v1360, %v1368
          %v1370 = vlaneseq
          %v1371 = vshrl.u32 %v1370, 7
          %v1372 = vsub.s32 2, %v1371
          %v1373 = vrot.slane %v1360, %v1372
          %v1374 = vlaneseq
          %v1375 = vshrl.u32 %v1374, 7
          %v1376 = vsub.s32 3, %v1375
          %v1377 = vrot.slane %v1360, %v1376
          %v1378 = vlaneseq
          %v1379 = vshrl.u32 %v1378, 7
          %v1380 = vsub.s32 4, %v1379
          %v1381 = vrot.slane %v1360, %v1380
          %v1382 = vlaneseq
          %v1383 = vshrl.u32 %v1382, 7
          %v1384 = vsub.s32 5, %v1383
          %v1385 = vrot.slane %v1360, %v1384
          %v1386 = vlaneseq
          %v1387 = vshrl.u32 %v1386, 7
          %v1388 = vsub.s32 6, %v1387
          %v1389 = vrot.slane %v1360, %v1388
          %v1390 = vlaneseq
          %v1391 = vshrl.u32 %v1390, 7
          %v1392 = vsub.s32 7, %v1391
          %v1393 = vrot.slane %v1360, %v1392
          %v1402 = vadd.f32 %v1352, %v1365
          %v1403 = vadd.f32 %v1353, %v1369
          %v1404 = vadd.f32 %v1354, %v1373
          %v1405 = vadd.f32 %v1355, %v1377
          %v1406 = vadd.f32 %v1356, %v1381
          %v1407 = vadd.f32 %v1357, %v1385
          %v1408 = vadd.f32 %v1358, %v1389
          %v1409 = vadd.f32 %v1359, %v1393
          %v1410 = vmax.f32 %v1402, 0.0
          %v1411 = vmax.f32 %v1403, 0.0
          %v1412 = vmax.f32 %v1404, 0.0
          %v1413 = vmax.f32 %v1405, 0.0
          %v1414 = vmax.f32 %v1406, 0.0
          %v1415 = vmax.f32 %v1407, 0.0
          %v1416 = vmax.f32 %v1408, 0.0
          %v1417 = vmax.f32 %v1409, 0.0
          %v1418 = vpack.c.bf16 %v1410, %v1410
          %v1419 = vpack.c.bf16 %v1411, %v1411
          %v1420 = vpack.c.bf16 %v1412, %v1412
          %v1421 = vpack.c.bf16 %v1413, %v1413
          %v1422 = vpack.c.bf16 %v1414, %v1414
          %v1423 = vpack.c.bf16 %v1415, %v1415
          %v1424 = vpack.c.bf16 %v1416, %v1416
          %v1425 = vpack.c.bf16 %v1417, %v1417
          %v1426 = vld [vmem:[#allocation9] sm:$0xff]
          %v1427 = vld [vmem:[#allocation9 + $0x8] sm:$0xff]
          %v1428 = vld [vmem:[#allocation9 + $0x10] sm:$0xff]
          %v1429 = vld [vmem:[#allocation9 + $0x18] sm:$0xff]
          %v1430 = vld [vmem:[#allocation9 + $0x20] sm:$0xff]
          %v1431 = vld [vmem:[#allocation9 + $0x28] sm:$0xff]
          %v1432 = vld [vmem:[#allocation9 + $0x30] sm:$0xff]
          %v1433 = vld [vmem:[#allocation9 + $0x38] sm:$0xff]
          %v1434 = vld [vmem:[#allocation9 + $0x40] sm:$0xff]
          %v1435 = vld [vmem:[#allocation9 + $0x48] sm:$0xff]
          %v1436 = vld [vmem:[#allocation9 + $0x50] sm:$0xff]
          %v1437 = vld [vmem:[#allocation9 + $0x58] sm:$0xff]
          %v1438 = vld [vmem:[#allocation9 + $0x60] sm:$0xff]
          %v1439 = vld [vmem:[#allocation9 + $0x68] sm:$0xff]
          %v1440 = vld [vmem:[#allocation9 + $0x70] sm:$0xff]
          %v1441 = vld [vmem:[#allocation9 + $0x78] sm:$0xff]
          %v1442 = vld [vmem:[#allocation9 + $0x80] sm:$0xff]
          %v1443 = vld [vmem:[#allocation9 + $0x88] sm:$0xff]
          %v1444 = vld [vmem:[#allocation9 + $0x90] sm:$0xff]
          %v1445 = vld [vmem:[#allocation9 + $0x98] sm:$0xff]
          %v1446 = vld [vmem:[#allocation9 + $0xa0] sm:$0xff]
          %v1447 = vld [vmem:[#allocation9 + $0xa8] sm:$0xff]
          %v1448 = vld [vmem:[#allocation9 + $0xb0] sm:$0xff]
          %v1449 = vld [vmem:[#allocation9 + $0xb8] sm:$0xff]
          %v1450 = vld [vmem:[#allocation9 + $0xc0] sm:$0xff]
          %v1451 = vld [vmem:[#allocation9 + $0xc8] sm:$0xff]
          %v1452 = vld [vmem:[#allocation9 + $0xd0] sm:$0xff]
          %v1453 = vld [vmem:[#allocation9 + $0xd8] sm:$0xff]
          %v1454 = vld [vmem:[#allocation9 + $0xe0] sm:$0xff]
          %v1455 = vld [vmem:[#allocation9 + $0xe8] sm:$0xff]
          %v1456 = vld [vmem:[#allocation9 + $0xf0] sm:$0xff]
          %v1457 = vld [vmem:[#allocation9 + $0xf8] sm:$0xff]
          %v1458 = vld [vmem:[#allocation9 + $0x100] sm:$0xff]
          %v1459 = vld [vmem:[#allocation9 + $0x108] sm:$0xff]
          %v1460 = vld [vmem:[#allocation9 + $0x110] sm:$0xff]
          %v1461 = vld [vmem:[#allocation9 + $0x118] sm:$0xff]
          %v1462 = vld [vmem:[#allocation9 + $0x120] sm:$0xff]
          %v1463 = vld [vmem:[#allocation9 + $0x128] sm:$0xff]
          %v1464 = vld [vmem:[#allocation9 + $0x130] sm:$0xff]
          %v1465 = vld [vmem:[#allocation9 + $0x138] sm:$0xff]
          %v1466 = vld [vmem:[#allocation9 + $0x140] sm:$0xff]
          %v1467 = vld [vmem:[#allocation9 + $0x148] sm:$0xff]
          %v1468 = vld [vmem:[#allocation9 + $0x150] sm:$0xff]
          %v1469 = vld [vmem:[#allocation9 + $0x158] sm:$0xff]
          %v1470 = vld [vmem:[#allocation9 + $0x160] sm:$0xff]
          %v1471 = vld [vmem:[#allocation9 + $0x168] sm:$0xff]
          %v1472 = vld [vmem:[#allocation9 + $0x170] sm:$0xff]
          %v1473 = vld [vmem:[#allocation9 + $0x178] sm:$0xff]
          %v1474 = vld [vmem:[#allocation9 + $0x180] sm:$0xff]
          %v1475 = vld [vmem:[#allocation9 + $0x188] sm:$0xff]
          %v1476 = vld [vmem:[#allocation9 + $0x190] sm:$0xff]
          %v1477 = vld [vmem:[#allocation9 + $0x198] sm:$0xff]
          %v1478 = vld [vmem:[#allocation9 + $0x1a0] sm:$0xff]
          %v1479 = vld [vmem:[#allocation9 + $0x1a8] sm:$0xff]
          %v1480 = vld [vmem:[#allocation9 + $0x1b0] sm:$0xff]
          %v1481 = vld [vmem:[#allocation9 + $0x1b8] sm:$0xff]
          %v1482 = vld [vmem:[#allocation9 + $0x1c0] sm:$0xff]
          %v1483 = vld [vmem:[#allocation9 + $0x1c8] sm:$0xff]
          %v1484 = vld [vmem:[#allocation9 + $0x1d0] sm:$0xff]
          %v1485 = vld [vmem:[#allocation9 + $0x1d8] sm:$0xff]
          %v1486 = vld [vmem:[#allocation9 + $0x1e0] sm:$0xff]
          %v1487 = vld [vmem:[#allocation9 + $0x1e8] sm:$0xff]
          %v1488 = vld [vmem:[#allocation9 + $0x1f0] sm:$0xff]
          %v1489 = vld [vmem:[#allocation9 + $0x1f8] sm:$0xff]
          %v1490 = vld [vmem:[#allocation9 + $0x200] sm:$0xff]
          %v1491 = vld [vmem:[#allocation9 + $0x208] sm:$0xff]
          %v1492 = vld [vmem:[#allocation9 + $0x210] sm:$0xff]
          %v1493 = vld [vmem:[#allocation9 + $0x218] sm:$0xff]
          %v1494 = vld [vmem:[#allocation9 + $0x220] sm:$0xff]
          %v1495 = vld [vmem:[#allocation9 + $0x228] sm:$0xff]
          %v1496 = vld [vmem:[#allocation9 + $0x230] sm:$0xff]
          %v1497 = vld [vmem:[#allocation9 + $0x238] sm:$0xff]
          %v1498 = vld [vmem:[#allocation9 + $0x240] sm:$0xff]
          %v1499 = vld [vmem:[#allocation9 + $0x248] sm:$0xff]
          %v1500 = vld [vmem:[#allocation9 + $0x250] sm:$0xff]
          %v1501 = vld [vmem:[#allocation9 + $0x258] sm:$0xff]
          %v1502 = vld [vmem:[#allocation9 + $0x260] sm:$0xff]
          %v1503 = vld [vmem:[#allocation9 + $0x268] sm:$0xff]
          %v1504 = vld [vmem:[#allocation9 + $0x270] sm:$0xff]
          %v1505 = vld [vmem:[#allocation9 + $0x278] sm:$0xff]
          %v1506 = vld [vmem:[#allocation9 + $0x280] sm:$0xff]
          %v1507 = vld [vmem:[#allocation9 + $0x288] sm:$0xff]
          %v1508 = vld [vmem:[#allocation9 + $0x290] sm:$0xff]
          %v1509 = vld [vmem:[#allocation9 + $0x298] sm:$0xff]
          %v1510 = vld [vmem:[#allocation9 + $0x2a0] sm:$0xff]
          %v1511 = vld [vmem:[#allocation9 + $0x2a8] sm:$0xff]
          %v1512 = vld [vmem:[#allocation9 + $0x2b0] sm:$0xff]
          %v1513 = vld [vmem:[#allocation9 + $0x2b8] sm:$0xff]
          %v1514 = vld [vmem:[#allocation9 + $0x2c0] sm:$0xff]
          %v1515 = vld [vmem:[#allocation9 + $0x2c8] sm:$0xff]
          %v1516 = vld [vmem:[#allocation9 + $0x2d0] sm:$0xff]
          %v1517 = vld [vmem:[#allocation9 + $0x2d8] sm:$0xff]
          %v1518 = vld [vmem:[#allocation9 + $0x2e0] sm:$0xff]
          %v1519 = vld [vmem:[#allocation9 + $0x2e8] sm:$0xff]
          %v1520 = vld [vmem:[#allocation9 + $0x2f0] sm:$0xff]
          %v1521 = vld [vmem:[#allocation9 + $0x2f8] sm:$0xff]
          %v1522 = vld [vmem:[#allocation9 + $0x300] sm:$0xff]
          %v1523 = vld [vmem:[#allocation9 + $0x308] sm:$0xff]
          %v1524 = vld [vmem:[#allocation9 + $0x310] sm:$0xff]
          %v1525 = vld [vmem:[#allocation9 + $0x318] sm:$0xff]
          %v1526 = vld [vmem:[#allocation9 + $0x320] sm:$0xff]
          %v1527 = vld [vmem:[#allocation9 + $0x328] sm:$0xff]
          %v1528 = vld [vmem:[#allocation9 + $0x330] sm:$0xff]
          %v1529 = vld [vmem:[#allocation9 + $0x338] sm:$0xff]
          %v1530 = vld [vmem:[#allocation9 + $0x340] sm:$0xff]
          %v1531 = vld [vmem:[#allocation9 + $0x348] sm:$0xff]
          %v1532 = vld [vmem:[#allocation9 + $0x350] sm:$0xff]
          %v1533 = vld [vmem:[#allocation9 + $0x358] sm:$0xff]
          %v1534 = vld [vmem:[#allocation9 + $0x360] sm:$0xff]
          %v1535 = vld [vmem:[#allocation9 + $0x368] sm:$0xff]
          %v1536 = vld [vmem:[#allocation9 + $0x370] sm:$0xff]
          %v1537 = vld [vmem:[#allocation9 + $0x378] sm:$0xff]
          %v1538 = vld [vmem:[#allocation9 + $0x380] sm:$0xff]
          %v1539 = vld [vmem:[#allocation9 + $0x388] sm:$0xff]
          %v1540 = vld [vmem:[#allocation9 + $0x390] sm:$0xff]
          %v1541 = vld [vmem:[#allocation9 + $0x398] sm:$0xff]
          %v1542 = vld [vmem:[#allocation9 + $0x3a0] sm:$0xff]
          %v1543 = vld [vmem:[#allocation9 + $0x3a8] sm:$0xff]
          %v1544 = vld [vmem:[#allocation9 + $0x3b0] sm:$0xff]
          %v1545 = vld [vmem:[#allocation9 + $0x3b8] sm:$0xff]
          %v1546 = vld [vmem:[#allocation9 + $0x3c0] sm:$0xff]
          %v1547 = vld [vmem:[#allocation9 + $0x3c8] sm:$0xff]
          %v1548 = vld [vmem:[#allocation9 + $0x3d0] sm:$0xff]
          %v1549 = vld [vmem:[#allocation9 + $0x3d8] sm:$0xff]
          %v1550 = vld [vmem:[#allocation9 + $0x3e0] sm:$0xff]
          %v1551 = vld [vmem:[#allocation9 + $0x3e8] sm:$0xff]
          %v1552 = vld [vmem:[#allocation9 + $0x3f0] sm:$0xff]
          %v1553 = vld [vmem:[#allocation9 + $0x3f8] sm:$0xff]
          %v1554 = vld [vmem:[#allocation9 + $0x400] sm:$0xff]
          %v1555 = vld [vmem:[#allocation9 + $0x408] sm:$0xff]
          %v1556 = vld [vmem:[#allocation9 + $0x410] sm:$0xff]
          %v1557 = vld [vmem:[#allocation9 + $0x418] sm:$0xff]
          %v1558 = vld [vmem:[#allocation9 + $0x420] sm:$0xff]
          %v1559 = vld [vmem:[#allocation9 + $0x428] sm:$0xff]
          %v1560 = vld [vmem:[#allocation9 + $0x430] sm:$0xff]
          %v1561 = vld [vmem:[#allocation9 + $0x438] sm:$0xff]
          %v1562 = vld [vmem:[#allocation9 + $0x440] sm:$0xff]
          %v1563 = vld [vmem:[#allocation9 + $0x448] sm:$0xff]
          %v1564 = vld [vmem:[#allocation9 + $0x450] sm:$0xff]
          %v1565 = vld [vmem:[#allocation9 + $0x458] sm:$0xff]
          %v1566 = vld [vmem:[#allocation9 + $0x460] sm:$0xff]
          %v1567 = vld [vmem:[#allocation9 + $0x468] sm:$0xff]
          %v1568 = vld [vmem:[#allocation9 + $0x470] sm:$0xff]
          %v1569 = vld [vmem:[#allocation9 + $0x478] sm:$0xff]
          %v1570 = vld [vmem:[#allocation9 + $0x480] sm:$0xff]
          %v1571 = vld [vmem:[#allocation9 + $0x488] sm:$0xff]
          %v1572 = vld [vmem:[#allocation9 + $0x490] sm:$0xff]
          %v1573 = vld [vmem:[#allocation9 + $0x498] sm:$0xff]
          %v1574 = vld [vmem:[#allocation9 + $0x4a0] sm:$0xff]
          %v1575 = vld [vmem:[#allocation9 + $0x4a8] sm:$0xff]
          %v1576 = vld [vmem:[#allocation9 + $0x4b0] sm:$0xff]
          %v1577 = vld [vmem:[#allocation9 + $0x4b8] sm:$0xff]
          %v1578 = vld [vmem:[#allocation9 + $0x4c0] sm:$0xff]
          %v1579 = vld [vmem:[#allocation9 + $0x4c8] sm:$0xff]
          %v1580 = vld [vmem:[#allocation9 + $0x4d0] sm:$0xff]
          %v1581 = vld [vmem:[#allocation9 + $0x4d8] sm:$0xff]
          %v1582 = vld [vmem:[#allocation9 + $0x4e0] sm:$0xff]
          %v1583 = vld [vmem:[#allocation9 + $0x4e8] sm:$0xff]
          %v1584 = vld [vmem:[#allocation9 + $0x4f0] sm:$0xff]
          %v1585 = vld [vmem:[#allocation9 + $0x4f8] sm:$0xff]
          %v1586 = vld [vmem:[#allocation9 + $0x500] sm:$0xff]
          %v1587 = vld [vmem:[#allocation9 + $0x508] sm:$0xff]
          %v1588 = vld [vmem:[#allocation9 + $0x510] sm:$0xff]
          %v1589 = vld [vmem:[#allocation9 + $0x518] sm:$0xff]
          %v1590 = vld [vmem:[#allocation9 + $0x520] sm:$0xff]
          %v1591 = vld [vmem:[#allocation9 + $0x528] sm:$0xff]
          %v1592 = vld [vmem:[#allocation9 + $0x530] sm:$0xff]
          %v1593 = vld [vmem:[#allocation9 + $0x538] sm:$0xff]
          %v1594 = vld [vmem:[#allocation9 + $0x540] sm:$0xff]
          %v1595 = vld [vmem:[#allocation9 + $0x548] sm:$0xff]
          %v1596 = vld [vmem:[#allocation9 + $0x550] sm:$0xff]
          %v1597 = vld [vmem:[#allocation9 + $0x558] sm:$0xff]
          %v1598 = vld [vmem:[#allocation9 + $0x560] sm:$0xff]
          %v1599 = vld [vmem:[#allocation9 + $0x568] sm:$0xff]
          %v1600 = vld [vmem:[#allocation9 + $0x570] sm:$0xff]
          %v1601 = vld [vmem:[#allocation9 + $0x578] sm:$0xff]
          %v1602 = vld [vmem:[#allocation9 + $0x580] sm:$0xff]
          %v1603 = vld [vmem:[#allocation9 + $0x588] sm:$0xff]
          %v1604 = vld [vmem:[#allocation9 + $0x590] sm:$0xff]
          %v1605 = vld [vmem:[#allocation9 + $0x598] sm:$0xff]
          %v1606 = vld [vmem:[#allocation9 + $0x5a0] sm:$0xff]
          %v1607 = vld [vmem:[#allocation9 + $0x5a8] sm:$0xff]
          %v1608 = vld [vmem:[#allocation9 + $0x5b0] sm:$0xff]
          %v1609 = vld [vmem:[#allocation9 + $0x5b8] sm:$0xff]
          %v1610 = vld [vmem:[#allocation9 + $0x5c0] sm:$0xff]
          %v1611 = vld [vmem:[#allocation9 + $0x5c8] sm:$0xff]
          %v1612 = vld [vmem:[#allocation9 + $0x5d0] sm:$0xff]
          %v1613 = vld [vmem:[#allocation9 + $0x5d8] sm:$0xff]
          %v1614 = vld [vmem:[#allocation9 + $0x5e0] sm:$0xff]
          %v1615 = vld [vmem:[#allocation9 + $0x5e8] sm:$0xff]
          %v1616 = vld [vmem:[#allocation9 + $0x5f0] sm:$0xff]
          %v1617 = vld [vmem:[#allocation9 + $0x5f8] sm:$0xff]
          %v1618 = vld [vmem:[#allocation9 + $0x600] sm:$0xff]
          %v1619 = vld [vmem:[#allocation9 + $0x608] sm:$0xff]
          %v1620 = vld [vmem:[#allocation9 + $0x610] sm:$0xff]
          %v1621 = vld [vmem:[#allocation9 + $0x618] sm:$0xff]
          %v1622 = vld [vmem:[#allocation9 + $0x620] sm:$0xff]
          %v1623 = vld [vmem:[#allocation9 + $0x628] sm:$0xff]
          %v1624 = vld [vmem:[#allocation9 + $0x630] sm:$0xff]
          %v1625 = vld [vmem:[#allocation9 + $0x638] sm:$0xff]
          %v1626 = vld [vmem:[#allocation9 + $0x640] sm:$0xff]
          %v1627 = vld [vmem:[#allocation9 + $0x648] sm:$0xff]
          %v1628 = vld [vmem:[#allocation9 + $0x650] sm:$0xff]
          %v1629 = vld [vmem:[#allocation9 + $0x658] sm:$0xff]
          %v1630 = vld [vmem:[#allocation9 + $0x660] sm:$0xff]
          %v1631 = vld [vmem:[#allocation9 + $0x668] sm:$0xff]
          %v1632 = vld [vmem:[#allocation9 + $0x670] sm:$0xff]
          %v1633 = vld [vmem:[#allocation9 + $0x678] sm:$0xff]
          %v1634 = vld [vmem:[#allocation9 + $0x680] sm:$0xff]
          %v1635 = vld [vmem:[#allocation9 + $0x688] sm:$0xff]
          %v1636 = vld [vmem:[#allocation9 + $0x690] sm:$0xff]
          %v1637 = vld [vmem:[#allocation9 + $0x698] sm:$0xff]
          %v1638 = vld [vmem:[#allocation9 + $0x6a0] sm:$0xff]
          %v1639 = vld [vmem:[#allocation9 + $0x6a8] sm:$0xff]
          %v1640 = vld [vmem:[#allocation9 + $0x6b0] sm:$0xff]
          %v1641 = vld [vmem:[#allocation9 + $0x6b8] sm:$0xff]
          %v1642 = vld [vmem:[#allocation9 + $0x6c0] sm:$0xff]
          %v1643 = vld [vmem:[#allocation9 + $0x6c8] sm:$0xff]
          %v1644 = vld [vmem:[#allocation9 + $0x6d0] sm:$0xff]
          %v1645 = vld [vmem:[#allocation9 + $0x6d8] sm:$0xff]
          %v1646 = vld [vmem:[#allocation9 + $0x6e0] sm:$0xff]
          %v1647 = vld [vmem:[#allocation9 + $0x6e8] sm:$0xff]
          %v1648 = vld [vmem:[#allocation9 + $0x6f0] sm:$0xff]
          %v1649 = vld [vmem:[#allocation9 + $0x6f8] sm:$0xff]
          %v1650 = vld [vmem:[#allocation9 + $0x700] sm:$0xff]
          %v1651 = vld [vmem:[#allocation9 + $0x708] sm:$0xff]
          %v1652 = vld [vmem:[#allocation9 + $0x710] sm:$0xff]
          %v1653 = vld [vmem:[#allocation9 + $0x718] sm:$0xff]
          %v1654 = vld [vmem:[#allocation9 + $0x720] sm:$0xff]
          %v1655 = vld [vmem:[#allocation9 + $0x728] sm:$0xff]
          %v1656 = vld [vmem:[#allocation9 + $0x730] sm:$0xff]
          %v1657 = vld [vmem:[#allocation9 + $0x738] sm:$0xff]
          %v1658 = vld [vmem:[#allocation9 + $0x740] sm:$0xff]
          %v1659 = vld [vmem:[#allocation9 + $0x748] sm:$0xff]
          %v1660 = vld [vmem:[#allocation9 + $0x750] sm:$0xff]
          %v1661 = vld [vmem:[#allocation9 + $0x758] sm:$0xff]
          %v1662 = vld [vmem:[#allocation9 + $0x760] sm:$0xff]
          %v1663 = vld [vmem:[#allocation9 + $0x768] sm:$0xff]
          %v1664 = vld [vmem:[#allocation9 + $0x770] sm:$0xff]
          %v1665 = vld [vmem:[#allocation9 + $0x778] sm:$0xff]
          %v1666 = vld [vmem:[#allocation9 + $0x780] sm:$0xff]
          %v1667 = vld [vmem:[#allocation9 + $0x788] sm:$0xff]
          %v1668 = vld [vmem:[#allocation9 + $0x790] sm:$0xff]
          %v1669 = vld [vmem:[#allocation9 + $0x798] sm:$0xff]
          %v1670 = vld [vmem:[#allocation9 + $0x7a0] sm:$0xff]
          %v1671 = vld [vmem:[#allocation9 + $0x7a8] sm:$0xff]
          %v1672 = vld [vmem:[#allocation9 + $0x7b0] sm:$0xff]
          %v1673 = vld [vmem:[#allocation9 + $0x7b8] sm:$0xff]
          %v1674 = vld [vmem:[#allocation9 + $0x7c0] sm:$0xff]
          %v1675 = vld [vmem:[#allocation9 + $0x7c8] sm:$0xff]
          %v1676 = vld [vmem:[#allocation9 + $0x7d0] sm:$0xff]
          %v1677 = vld [vmem:[#allocation9 + $0x7d8] sm:$0xff]
          %v1678 = vld [vmem:[#allocation9 + $0x7e0] sm:$0xff]
          %v1679 = vld [vmem:[#allocation9 + $0x7e8] sm:$0xff]
          %v1680 = vld [vmem:[#allocation9 + $0x7f0] sm:$0xff]
          %v1681 = vld [vmem:[#allocation9 + $0x7f8] sm:$0xff]
          %v1682 = vld [vmem:[#allocation9 + $0x800] sm:$0xff]
          %v1683 = vld [vmem:[#allocation9 + $0x808] sm:$0xff]
          %v1684 = vld [vmem:[#allocation9 + $0x810] sm:$0xff]
          %v1685 = vld [vmem:[#allocation9 + $0x818] sm:$0xff]
          %v1686 = vld [vmem:[#allocation9 + $0x820] sm:$0xff]
          %v1687 = vld [vmem:[#allocation9 + $0x828] sm:$0xff]
          %v1688 = vld [vmem:[#allocation9 + $0x830] sm:$0xff]
          %v1689 = vld [vmem:[#allocation9 + $0x838] sm:$0xff]
          %v1690 = vld [vmem:[#allocation9 + $0x840] sm:$0xff]
          %v1691 = vld [vmem:[#allocation9 + $0x848] sm:$0xff]
          %v1692 = vld [vmem:[#allocation9 + $0x850] sm:$0xff]
          %v1693 = vld [vmem:[#allocation9 + $0x858] sm:$0xff]
          %v1694 = vld [vmem:[#allocation9 + $0x860] sm:$0xff]
          %v1695 = vld [vmem:[#allocation9 + $0x868] sm:$0xff]
          %v1696 = vld [vmem:[#allocation9 + $0x870] sm:$0xff]
          %v1697 = vld [vmem:[#allocation9 + $0x878] sm:$0xff]
          %v1698 = vld [vmem:[#allocation9 + $0x880] sm:$0xff]
          %v1699 = vld [vmem:[#allocation9 + $0x888] sm:$0xff]
          %v1700 = vld [vmem:[#allocation9 + $0x890] sm:$0xff]
          %v1701 = vld [vmem:[#allocation9 + $0x898] sm:$0xff]
          %v1702 = vld [vmem:[#allocation9 + $0x8a0] sm:$0xff]
          %v1703 = vld [vmem:[#allocation9 + $0x8a8] sm:$0xff]
          %v1704 = vld [vmem:[#allocation9 + $0x8b0] sm:$0xff]
          %v1705 = vld [vmem:[#allocation9 + $0x8b8] sm:$0xff]
          %v1706 = vld [vmem:[#allocation9 + $0x8c0] sm:$0xff]
          %v1707 = vld [vmem:[#allocation9 + $0x8c8] sm:$0xff]
          %v1708 = vld [vmem:[#allocation9 + $0x8d0] sm:$0xff]
          %v1709 = vld [vmem:[#allocation9 + $0x8d8] sm:$0xff]
          %v1710 = vld [vmem:[#allocation9 + $0x8e0] sm:$0xff]
          %v1711 = vld [vmem:[#allocation9 + $0x8e8] sm:$0xff]
          %v1712 = vld [vmem:[#allocation9 + $0x8f0] sm:$0xff]
          %v1713 = vld [vmem:[#allocation9 + $0x8f8] sm:$0xff]
          %v1714 = vld [vmem:[#allocation9 + $0x900] sm:$0xff]
          %v1715 = vld [vmem:[#allocation9 + $0x908] sm:$0xff]
          %v1716 = vld [vmem:[#allocation9 + $0x910] sm:$0xff]
          %v1717 = vld [vmem:[#allocation9 + $0x918] sm:$0xff]
          %v1718 = vld [vmem:[#allocation9 + $0x920] sm:$0xff]
          %v1719 = vld [vmem:[#allocation9 + $0x928] sm:$0xff]
          %v1720 = vld [vmem:[#allocation9 + $0x930] sm:$0xff]
          %v1721 = vld [vmem:[#allocation9 + $0x938] sm:$0xff]
          %v1722 = vld [vmem:[#allocation9 + $0x940] sm:$0xff]
          %v1723 = vld [vmem:[#allocation9 + $0x948] sm:$0xff]
          %v1724 = vld [vmem:[#allocation9 + $0x950] sm:$0xff]
          %v1725 = vld [vmem:[#allocation9 + $0x958] sm:$0xff]
          %v1726 = vld [vmem:[#allocation9 + $0x960] sm:$0xff]
          %v1727 = vld [vmem:[#allocation9 + $0x968] sm:$0xff]
          %v1728 = vld [vmem:[#allocation9 + $0x970] sm:$0xff]
          %v1729 = vld [vmem:[#allocation9 + $0x978] sm:$0xff]
          %v1730 = vld [vmem:[#allocation9 + $0x980] sm:$0xff]
          %v1731 = vld [vmem:[#allocation9 + $0x988] sm:$0xff]
          %v1732 = vld [vmem:[#allocation9 + $0x990] sm:$0xff]
          %v1733 = vld [vmem:[#allocation9 + $0x998] sm:$0xff]
          %v1734 = vld [vmem:[#allocation9 + $0x9a0] sm:$0xff]
          %v1735 = vld [vmem:[#allocation9 + $0x9a8] sm:$0xff]
          %v1736 = vld [vmem:[#allocation9 + $0x9b0] sm:$0xff]
          %v1737 = vld [vmem:[#allocation9 + $0x9b8] sm:$0xff]
          %v1738 = vld [vmem:[#allocation9 + $0x9c0] sm:$0xff]
          %v1739 = vld [vmem:[#allocation9 + $0x9c8] sm:$0xff]
          %v1740 = vld [vmem:[#allocation9 + $0x9d0] sm:$0xff]
          %v1741 = vld [vmem:[#allocation9 + $0x9d8] sm:$0xff]
          %v1742 = vld [vmem:[#allocation9 + $0x9e0] sm:$0xff]
          %v1743 = vld [vmem:[#allocation9 + $0x9e8] sm:$0xff]
          %v1744 = vld [vmem:[#allocation9 + $0x9f0] sm:$0xff]
          %v1745 = vld [vmem:[#allocation9 + $0x9f8] sm:$0xff]
          %v1746 = vld [vmem:[#allocation9 + $0xa00] sm:$0xff]
          %v1747 = vld [vmem:[#allocation9 + $0xa08] sm:$0xff]
          %v1748 = vld [vmem:[#allocation9 + $0xa10] sm:$0xff]
          %v1749 = vld [vmem:[#allocation9 + $0xa18] sm:$0xff]
          %v1750 = vld [vmem:[#allocation9 + $0xa20] sm:$0xff]
          %v1751 = vld [vmem:[#allocation9 + $0xa28] sm:$0xff]
          %v1752 = vld [vmem:[#allocation9 + $0xa30] sm:$0xff]
          %v1753 = vld [vmem:[#allocation9 + $0xa38] sm:$0xff]
          %v1754 = vld [vmem:[#allocation9 + $0xa40] sm:$0xff]
          %v1755 = vld [vmem:[#allocation9 + $0xa48] sm:$0xff]
          %v1756 = vld [vmem:[#allocation9 + $0xa50] sm:$0xff]
          %v1757 = vld [vmem:[#allocation9 + $0xa58] sm:$0xff]
          %v1758 = vld [vmem:[#allocation9 + $0xa60] sm:$0xff]
          %v1759 = vld [vmem:[#allocation9 + $0xa68] sm:$0xff]
          %v1760 = vld [vmem:[#allocation9 + $0xa70] sm:$0xff]
          %v1761 = vld [vmem:[#allocation9 + $0xa78] sm:$0xff]
          %v1762 = vld [vmem:[#allocation9 + $0xa80] sm:$0xff]
          %v1763 = vld [vmem:[#allocation9 + $0xa88] sm:$0xff]
          %v1764 = vld [vmem:[#allocation9 + $0xa90] sm:$0xff]
          %v1765 = vld [vmem:[#allocation9 + $0xa98] sm:$0xff]
          %v1766 = vld [vmem:[#allocation9 + $0xaa0] sm:$0xff]
          %v1767 = vld [vmem:[#allocation9 + $0xaa8] sm:$0xff]
          %v1768 = vld [vmem:[#allocation9 + $0xab0] sm:$0xff]
          %v1769 = vld [vmem:[#allocation9 + $0xab8] sm:$0xff]
          %v1770 = vld [vmem:[#allocation9 + $0xac0] sm:$0xff]
          %v1771 = vld [vmem:[#allocation9 + $0xac8] sm:$0xff]
          %v1772 = vld [vmem:[#allocation9 + $0xad0] sm:$0xff]
          %v1773 = vld [vmem:[#allocation9 + $0xad8] sm:$0xff]
          %v1774 = vld [vmem:[#allocation9 + $0xae0] sm:$0xff]
          %v1775 = vld [vmem:[#allocation9 + $0xae8] sm:$0xff]
          %v1776 = vld [vmem:[#allocation9 + $0xaf0] sm:$0xff]
          %v1777 = vld [vmem:[#allocation9 + $0xaf8] sm:$0xff]
          %v1778 = vld [vmem:[#allocation9 + $0xb00] sm:$0xff]
          %v1779 = vld [vmem:[#allocation9 + $0xb08] sm:$0xff]
          %v1780 = vld [vmem:[#allocation9 + $0xb10] sm:$0xff]
          %v1781 = vld [vmem:[#allocation9 + $0xb18] sm:$0xff]
          %v1782 = vld [vmem:[#allocation9 + $0xb20] sm:$0xff]
          %v1783 = vld [vmem:[#allocation9 + $0xb28] sm:$0xff]
          %v1784 = vld [vmem:[#allocation9 + $0xb30] sm:$0xff]
          %v1785 = vld [vmem:[#allocation9 + $0xb38] sm:$0xff]
          %v1786 = vld [vmem:[#allocation9 + $0xb40] sm:$0xff]
          %v1787 = vld [vmem:[#allocation9 + $0xb48] sm:$0xff]
          %v1788 = vld [vmem:[#allocation9 + $0xb50] sm:$0xff]
          %v1789 = vld [vmem:[#allocation9 + $0xb58] sm:$0xff]
          %v1790 = vld [vmem:[#allocation9 + $0xb60] sm:$0xff]
          %v1791 = vld [vmem:[#allocation9 + $0xb68] sm:$0xff]
          %v1792 = vld [vmem:[#allocation9 + $0xb70] sm:$0xff]
          %v1793 = vld [vmem:[#allocation9 + $0xb78] sm:$0xff]
          %v1794 = vld [vmem:[#allocation9 + $0xb80] sm:$0xff]
          %v1795 = vld [vmem:[#allocation9 + $0xb88] sm:$0xff]
          %v1796 = vld [vmem:[#allocation9 + $0xb90] sm:$0xff]
          %v1797 = vld [vmem:[#allocation9 + $0xb98] sm:$0xff]
          %v1798 = vld [vmem:[#allocation9 + $0xba0] sm:$0xff]
          %v1799 = vld [vmem:[#allocation9 + $0xba8] sm:$0xff]
          %v1800 = vld [vmem:[#allocation9 + $0xbb0] sm:$0xff]
          %v1801 = vld [vmem:[#allocation9 + $0xbb8] sm:$0xff]
          %v1802 = vld [vmem:[#allocation9 + $0xbc0] sm:$0xff]
          %v1803 = vld [vmem:[#allocation9 + $0xbc8] sm:$0xff]
          %v1804 = vld [vmem:[#allocation9 + $0xbd0] sm:$0xff]
          %v1805 = vld [vmem:[#allocation9 + $0xbd8] sm:$0xff]
          %v1806 = vld [vmem:[#allocation9 + $0xbe0] sm:$0xff]
          %v1807 = vld [vmem:[#allocation9 + $0xbe8] sm:$0xff]
          %v1808 = vld [vmem:[#allocation9 + $0xbf0] sm:$0xff]
          %v1809 = vld [vmem:[#allocation9 + $0xbf8] sm:$0xff]
          %v1810 = vld [vmem:[#allocation9 + $0xc00] sm:$0xff]
          %v1811 = vld [vmem:[#allocation9 + $0xc08] sm:$0xff]
          %v1812 = vld [vmem:[#allocation9 + $0xc10] sm:$0xff]
          %v1813 = vld [vmem:[#allocation9 + $0xc18] sm:$0xff]
          %v1814 = vld [vmem:[#allocation9 + $0xc20] sm:$0xff]
          %v1815 = vld [vmem:[#allocation9 + $0xc28] sm:$0xff]
          %v1816 = vld [vmem:[#allocation9 + $0xc30] sm:$0xff]
          %v1817 = vld [vmem:[#allocation9 + $0xc38] sm:$0xff]
          %v1818 = vld [vmem:[#allocation9 + $0xc40] sm:$0xff]
          %v1819 = vld [vmem:[#allocation9 + $0xc48] sm:$0xff]
          %v1820 = vld [vmem:[#allocation9 + $0xc50] sm:$0xff]
          %v1821 = vld [vmem:[#allocation9 + $0xc58] sm:$0xff]
          %v1822 = vld [vmem:[#allocation9 + $0xc60] sm:$0xff]
          %v1823 = vld [vmem:[#allocation9 + $0xc68] sm:$0xff]
          %v1824 = vld [vmem:[#allocation9 + $0xc70] sm:$0xff]
          %v1825 = vld [vmem:[#allocation9 + $0xc78] sm:$0xff]
          %v1826 = vld [vmem:[#allocation9 + $0xc80] sm:$0xff]
          %v1827 = vld [vmem:[#allocation9 + $0xc88] sm:$0xff]
          %v1828 = vld [vmem:[#allocation9 + $0xc90] sm:$0xff]
          %v1829 = vld [vmem:[#allocation9 + $0xc98] sm:$0xff]
          %v1830 = vld [vmem:[#allocation9 + $0xca0] sm:$0xff]
          %v1831 = vld [vmem:[#allocation9 + $0xca8] sm:$0xff]
          %v1832 = vld [vmem:[#allocation9 + $0xcb0] sm:$0xff]
          %v1833 = vld [vmem:[#allocation9 + $0xcb8] sm:$0xff]
          %v1834 = vld [vmem:[#allocation9 + $0xcc0] sm:$0xff]
          %v1835 = vld [vmem:[#allocation9 + $0xcc8] sm:$0xff]
          %v1836 = vld [vmem:[#allocation9 + $0xcd0] sm:$0xff]
          %v1837 = vld [vmem:[#allocation9 + $0xcd8] sm:$0xff]
          %v1838 = vld [vmem:[#allocation9 + $0xce0] sm:$0xff]
          %v1839 = vld [vmem:[#allocation9 + $0xce8] sm:$0xff]
          %v1840 = vld [vmem:[#allocation9 + $0xcf0] sm:$0xff]
          %v1841 = vld [vmem:[#allocation9 + $0xcf8] sm:$0xff]
          %v1842 = vld [vmem:[#allocation9 + $0xd00] sm:$0xff]
          %v1843 = vld [vmem:[#allocation9 + $0xd08] sm:$0xff]
          %v1844 = vld [vmem:[#allocation9 + $0xd10] sm:$0xff]
          %v1845 = vld [vmem:[#allocation9 + $0xd18] sm:$0xff]
          %v1846 = vld [vmem:[#allocation9 + $0xd20] sm:$0xff]
          %v1847 = vld [vmem:[#allocation9 + $0xd28] sm:$0xff]
          %v1848 = vld [vmem:[#allocation9 + $0xd30] sm:$0xff]
          %v1849 = vld [vmem:[#allocation9 + $0xd38] sm:$0xff]
          %v1850 = vld [vmem:[#allocation9 + $0xd40] sm:$0xff]
          %v1851 = vld [vmem:[#allocation9 + $0xd48] sm:$0xff]
          %v1852 = vld [vmem:[#allocation9 + $0xd50] sm:$0xff]
          %v1853 = vld [vmem:[#allocation9 + $0xd58] sm:$0xff]
          %v1854 = vld [vmem:[#allocation9 + $0xd60] sm:$0xff]
          %v1855 = vld [vmem:[#allocation9 + $0xd68] sm:$0xff]
          %v1856 = vld [vmem:[#allocation9 + $0xd70] sm:$0xff]
          %v1857 = vld [vmem:[#allocation9 + $0xd78] sm:$0xff]
          %v1858 = vld [vmem:[#allocation9 + $0xd80] sm:$0xff]
          %v1859 = vld [vmem:[#allocation9 + $0xd88] sm:$0xff]
          %v1860 = vld [vmem:[#allocation9 + $0xd90] sm:$0xff]
          %v1861 = vld [vmem:[#allocation9 + $0xd98] sm:$0xff]
          %v1862 = vld [vmem:[#allocation9 + $0xda0] sm:$0xff]
          %v1863 = vld [vmem:[#allocation9 + $0xda8] sm:$0xff]
          %v1864 = vld [vmem:[#allocation9 + $0xdb0] sm:$0xff]
          %v1865 = vld [vmem:[#allocation9 + $0xdb8] sm:$0xff]
          %v1866 = vld [vmem:[#allocation9 + $0xdc0] sm:$0xff]
          %v1867 = vld [vmem:[#allocation9 + $0xdc8] sm:$0xff]
          %v1868 = vld [vmem:[#allocation9 + $0xdd0] sm:$0xff]
          %v1869 = vld [vmem:[#allocation9 + $0xdd8] sm:$0xff]
          %v1870 = vld [vmem:[#allocation9 + $0xde0] sm:$0xff]
          %v1871 = vld [vmem:[#allocation9 + $0xde8] sm:$0xff]
          %v1872 = vld [vmem:[#allocation9 + $0xdf0] sm:$0xff]
          %v1873 = vld [vmem:[#allocation9 + $0xdf8] sm:$0xff]
          %v1874 = vld [vmem:[#allocation9 + $0xe00] sm:$0xff]
          %v1875 = vld [vmem:[#allocation9 + $0xe08] sm:$0xff]
          %v1876 = vld [vmem:[#allocation9 + $0xe10] sm:$0xff]
          %v1877 = vld [vmem:[#allocation9 + $0xe18] sm:$0xff]
          %v1878 = vld [vmem:[#allocation9 + $0xe20] sm:$0xff]
          %v1879 = vld [vmem:[#allocation9 + $0xe28] sm:$0xff]
          %v1880 = vld [vmem:[#allocation9 + $0xe30] sm:$0xff]
          %v1881 = vld [vmem:[#allocation9 + $0xe38] sm:$0xff]
          %v1882 = vld [vmem:[#allocation9 + $0xe40] sm:$0xff]
          %v1883 = vld [vmem:[#allocation9 + $0xe48] sm:$0xff]
          %v1884 = vld [vmem:[#allocation9 + $0xe50] sm:$0xff]
          %v1885 = vld [vmem:[#allocation9 + $0xe58] sm:$0xff]
          %v1886 = vld [vmem:[#allocation9 + $0xe60] sm:$0xff]
          %v1887 = vld [vmem:[#allocation9 + $0xe68] sm:$0xff]
          %v1888 = vld [vmem:[#allocation9 + $0xe70] sm:$0xff]
          %v1889 = vld [vmem:[#allocation9 + $0xe78] sm:$0xff]
          %v1890 = vld [vmem:[#allocation9 + $0xe80] sm:$0xff]
          %v1891 = vld [vmem:[#allocation9 + $0xe88] sm:$0xff]
          %v1892 = vld [vmem:[#allocation9 + $0xe90] sm:$0xff]
          %v1893 = vld [vmem:[#allocation9 + $0xe98] sm:$0xff]
          %v1894 = vld [vmem:[#allocation9 + $0xea0] sm:$0xff]
          %v1895 = vld [vmem:[#allocation9 + $0xea8] sm:$0xff]
          %v1896 = vld [vmem:[#allocation9 + $0xeb0] sm:$0xff]
          %v1897 = vld [vmem:[#allocation9 + $0xeb8] sm:$0xff]
          %v1898 = vld [vmem:[#allocation9 + $0xec0] sm:$0xff]
          %v1899 = vld [vmem:[#allocation9 + $0xec8] sm:$0xff]
          %v1900 = vld [vmem:[#allocation9 + $0xed0] sm:$0xff]
          %v1901 = vld [vmem:[#allocation9 + $0xed8] sm:$0xff]
          %v1902 = vld [vmem:[#allocation9 + $0xee0] sm:$0xff]
          %v1903 = vld [vmem:[#allocation9 + $0xee8] sm:$0xff]
          %v1904 = vld [vmem:[#allocation9 + $0xef0] sm:$0xff]
          %v1905 = vld [vmem:[#allocation9 + $0xef8] sm:$0xff]
          %v1906 = vld [vmem:[#allocation9 + $0xf00] sm:$0xff]
          %v1907 = vld [vmem:[#allocation9 + $0xf08] sm:$0xff]
          %v1908 = vld [vmem:[#allocation9 + $0xf10] sm:$0xff]
          %v1909 = vld [vmem:[#allocation9 + $0xf18] sm:$0xff]
          %v1910 = vld [vmem:[#allocation9 + $0xf20] sm:$0xff]
          %v1911 = vld [vmem:[#allocation9 + $0xf28] sm:$0xff]
          %v1912 = vld [vmem:[#allocation9 + $0xf30] sm:$0xff]
          %v1913 = vld [vmem:[#allocation9 + $0xf38] sm:$0xff]
          %v1914 = vld [vmem:[#allocation9 + $0xf40] sm:$0xff]
          %v1915 = vld [vmem:[#allocation9 + $0xf48] sm:$0xff]
          %v1916 = vld [vmem:[#allocation9 + $0xf50] sm:$0xff]
          %v1917 = vld [vmem:[#allocation9 + $0xf58] sm:$0xff]
          %v1918 = vld [vmem:[#allocation9 + $0xf60] sm:$0xff]
          %v1919 = vld [vmem:[#allocation9 + $0xf68] sm:$0xff]
          %v1920 = vld [vmem:[#allocation9 + $0xf70] sm:$0xff]
          %v1921 = vld [vmem:[#allocation9 + $0xf78] sm:$0xff]
          %v1922 = vld [vmem:[#allocation9 + $0xf80] sm:$0xff]
          %v1923 = vld [vmem:[#allocation9 + $0xf88] sm:$0xff]
          %v1924 = vld [vmem:[#allocation9 + $0xf90] sm:$0xff]
          %v1925 = vld [vmem:[#allocation9 + $0xf98] sm:$0xff]
          %v1926 = vld [vmem:[#allocation9 + $0xfa0] sm:$0xff]
          %v1927 = vld [vmem:[#allocation9 + $0xfa8] sm:$0xff]
          %v1928 = vld [vmem:[#allocation9 + $0xfb0] sm:$0xff]
          %v1929 = vld [vmem:[#allocation9 + $0xfb8] sm:$0xff]
          %v1930 = vld [vmem:[#allocation9 + $0xfc0] sm:$0xff]
          %v1931 = vld [vmem:[#allocation9 + $0xfc8] sm:$0xff]
          %v1932 = vld [vmem:[#allocation9 + $0xfd0] sm:$0xff]
          %v1933 = vld [vmem:[#allocation9 + $0xfd8] sm:$0xff]
          %v1934 = vld [vmem:[#allocation9 + $0xfe0] sm:$0xff]
          %v1935 = vld [vmem:[#allocation9 + $0xfe8] sm:$0xff]
          %v1936 = vld [vmem:[#allocation9 + $0xff0] sm:$0xff]
          %v1937 = vld [vmem:[#allocation9 + $0xff8] sm:$0xff]
          %v1938 = vld [vmem:[#allocation11] sm:$0xff]
          %v1940 = vlaneseq
          %v1941 = vshrl.u32 %v1940, 7
          %v1942 = vsub.s32 0, %v1941
          %v1943 = vrot.slane %v1938, %v1942
          %v1944 = vlaneseq
          %v1945 = vshrl.u32 %v1944, 7
          %v1946 = vsub.s32 1, %v1945
          %v1947 = vrot.slane %v1938, %v1946
          %v1948 = vlaneseq
          %v1949 = vshrl.u32 %v1948, 7
          %v1950 = vsub.s32 2, %v1949
          %v1951 = vrot.slane %v1938, %v1950
          %v1952 = vlaneseq
          %v1953 = vshrl.u32 %v1952, 7
          %v1954 = vsub.s32 3, %v1953
          %v1955 = vrot.slane %v1938, %v1954
          %v1956 = vlaneseq
          %v1957 = vshrl.u32 %v1956, 7
          %v1958 = vsub.s32 4, %v1957
          %v1959 = vrot.slane %v1938, %v1958
          %v1960 = vlaneseq
          %v1961 = vshrl.u32 %v1960, 7
          %v1962 = vsub.s32 5, %v1961
          %v1963 = vrot.slane %v1938, %v1962
          %v1964 = vlaneseq
          %v1965 = vshrl.u32 %v1964, 7
          %v1966 = vsub.s32 6, %v1965
          %v1967 = vrot.slane %v1938, %v1966
          %v1968 = vlaneseq
          %v1969 = vshrl.u32 %v1968, 7
          %v1970 = vsub.s32 7, %v1969
          %v1971 = vrot.slane %v1938, %v1970
          %v2492 = vunpack.c.l.b16 %v1426
          %v2493 = vunpack.c.h.b16 %v1426
          %v2494 = vunpack.c.l.b16 %v1427
          %v2495 = vunpack.c.h.b16 %v1427
          %v2496 = vunpack.c.l.b16 %v1428
          %v2497 = vunpack.c.h.b16 %v1428
          %v2498 = vunpack.c.l.b16 %v1429
          %v2499 = vunpack.c.h.b16 %v1429
          %v2500 = vunpack.c.l.b16 %v1430
          %v2501 = vunpack.c.h.b16 %v1430
          %v2502 = vunpack.c.l.b16 %v1431
          %v2503 = vunpack.c.h.b16 %v1431
          %v2504 = vunpack.c.l.b16 %v1432
          %v2505 = vunpack.c.h.b16 %v1432
          %v2506 = vunpack.c.l.b16 %v1433
          %v2507 = vunpack.c.h.b16 %v1433
          %v2508 = vunpack.c.l.b16 %v1434
          %v2509 = vunpack.c.h.b16 %v1434
          %v2510 = vunpack.c.l.b16 %v1435
          %v2511 = vunpack.c.h.b16 %v1435
          %v2512 = vunpack.c.l.b16 %v1436
          %v2513 = vunpack.c.h.b16 %v1436
          %v2514 = vunpack.c.l.b16 %v1437
          %v2515 = vunpack.c.h.b16 %v1437
          %v2516 = vunpack.c.l.b16 %v1438
          %v2517 = vunpack.c.h.b16 %v1438
          %v2518 = vunpack.c.l.b16 %v1439
          %v2519 = vunpack.c.h.b16 %v1439
          %v2520 = vunpack.c.l.b16 %v1440
          %v2521 = vunpack.c.h.b16 %v1440
          %v2522 = vunpack.c.l.b16 %v1441
          %v2523 = vunpack.c.h.b16 %v1441
          %v2524 = vunpack.c.l.b16 %v1442
          %v2525 = vunpack.c.h.b16 %v1442
          %v2526 = vunpack.c.l.b16 %v1443
          %v2527 = vunpack.c.h.b16 %v1443
          %v2528 = vunpack.c.l.b16 %v1444
          %v2529 = vunpack.c.h.b16 %v1444
          %v2530 = vunpack.c.l.b16 %v1445
          %v2531 = vunpack.c.h.b16 %v1445
          %v2532 = vunpack.c.l.b16 %v1446
          %v2533 = vunpack.c.h.b16 %v1446
          %v2534 = vunpack.c.l.b16 %v1447
          %v2535 = vunpack.c.h.b16 %v1447
          %v2536 = vunpack.c.l.b16 %v1448
          %v2537 = vunpack.c.h.b16 %v1448
          %v2538 = vunpack.c.l.b16 %v1449
          %v2539 = vunpack.c.h.b16 %v1449
          %v2540 = vunpack.c.l.b16 %v1450
          %v2541 = vunpack.c.h.b16 %v1450
          %v2542 = vunpack.c.l.b16 %v1451
          %v2543 = vunpack.c.h.b16 %v1451
          %v2544 = vunpack.c.l.b16 %v1452
          %v2545 = vunpack.c.h.b16 %v1452
          %v2546 = vunpack.c.l.b16 %v1453
          %v2547 = vunpack.c.h.b16 %v1453
          %v2548 = vunpack.c.l.b16 %v1454
          %v2549 = vunpack.c.h.b16 %v1454
          %v2550 = vunpack.c.l.b16 %v1455
          %v2551 = vunpack.c.h.b16 %v1455
          %v2552 = vunpack.c.l.b16 %v1456
          %v2553 = vunpack.c.h.b16 %v1456
          %v2554 = vunpack.c.l.b16 %v1457
          %v2555 = vunpack.c.h.b16 %v1457
          %v2556 = vunpack.c.l.b16 %v1458
          %v2557 = vunpack.c.h.b16 %v1458
          %v2558 = vunpack.c.l.b16 %v1459
          %v2559 = vunpack.c.h.b16 %v1459
          %v2560 = vunpack.c.l.b16 %v1460
          %v2561 = vunpack.c.h.b16 %v1460
          %v2562 = vunpack.c.l.b16 %v1461
          %v2563 = vunpack.c.h.b16 %v1461
          %v2564 = vunpack.c.l.b16 %v1462
          %v2565 = vunpack.c.h.b16 %v1462
          %v2566 = vunpack.c.l.b16 %v1463
          %v2567 = vunpack.c.h.b16 %v1463
          %v2568 = vunpack.c.l.b16 %v1464
          %v2569 = vunpack.c.h.b16 %v1464
          %v2570 = vunpack.c.l.b16 %v1465
          %v2571 = vunpack.c.h.b16 %v1465
          %v2572 = vunpack.c.l.b16 %v1466
          %v2573 = vunpack.c.h.b16 %v1466
          %v2574 = vunpack.c.l.b16 %v1467
          %v2575 = vunpack.c.h.b16 %v1467
          %v2576 = vunpack.c.l.b16 %v1468
          %v2577 = vunpack.c.h.b16 %v1468
          %v2578 = vunpack.c.l.b16 %v1469
          %v2579 = vunpack.c.h.b16 %v1469
          %v2580 = vunpack.c.l.b16 %v1470
          %v2581 = vunpack.c.h.b16 %v1470
          %v2582 = vunpack.c.l.b16 %v1471
          %v2583 = vunpack.c.h.b16 %v1471
          %v2584 = vunpack.c.l.b16 %v1472
          %v2585 = vunpack.c.h.b16 %v1472
          %v2586 = vunpack.c.l.b16 %v1473
          %v2587 = vunpack.c.h.b16 %v1473
          %v2588 = vunpack.c.l.b16 %v1474
          %v2589 = vunpack.c.h.b16 %v1474
          %v2590 = vunpack.c.l.b16 %v1475
          %v2591 = vunpack.c.h.b16 %v1475
          %v2592 = vunpack.c.l.b16 %v1476
          %v2593 = vunpack.c.h.b16 %v1476
          %v2594 = vunpack.c.l.b16 %v1477
          %v2595 = vunpack.c.h.b16 %v1477
          %v2596 = vunpack.c.l.b16 %v1478
          %v2597 = vunpack.c.h.b16 %v1478
          %v2598 = vunpack.c.l.b16 %v1479
          %v2599 = vunpack.c.h.b16 %v1479
          %v2600 = vunpack.c.l.b16 %v1480
          %v2601 = vunpack.c.h.b16 %v1480
          %v2602 = vunpack.c.l.b16 %v1481
          %v2603 = vunpack.c.h.b16 %v1481
          %v2604 = vunpack.c.l.b16 %v1482
          %v2605 = vunpack.c.h.b16 %v1482
          %v2606 = vunpack.c.l.b16 %v1483
          %v2607 = vunpack.c.h.b16 %v1483
          %v2608 = vunpack.c.l.b16 %v1484
          %v2609 = vunpack.c.h.b16 %v1484
          %v2610 = vunpack.c.l.b16 %v1485
          %v2611 = vunpack.c.h.b16 %v1485
          %v2612 = vunpack.c.l.b16 %v1486
          %v2613 = vunpack.c.h.b16 %v1486
          %v2614 = vunpack.c.l.b16 %v1487
          %v2615 = vunpack.c.h.b16 %v1487
          %v2616 = vunpack.c.l.b16 %v1488
          %v2617 = vunpack.c.h.b16 %v1488
          %v2618 = vunpack.c.l.b16 %v1489
          %v2619 = vunpack.c.h.b16 %v1489
          %v2620 = vunpack.c.l.b16 %v1490
          %v2621 = vunpack.c.h.b16 %v1490
          %v2622 = vunpack.c.l.b16 %v1491
          %v2623 = vunpack.c.h.b16 %v1491
          %v2624 = vunpack.c.l.b16 %v1492
          %v2625 = vunpack.c.h.b16 %v1492
          %v2626 = vunpack.c.l.b16 %v1493
          %v2627 = vunpack.c.h.b16 %v1493
          %v2628 = vunpack.c.l.b16 %v1494
          %v2629 = vunpack.c.h.b16 %v1494
          %v2630 = vunpack.c.l.b16 %v1495
          %v2631 = vunpack.c.h.b16 %v1495
          %v2632 = vunpack.c.l.b16 %v1496
          %v2633 = vunpack.c.h.b16 %v1496
          %v2634 = vunpack.c.l.b16 %v1497
          %v2635 = vunpack.c.h.b16 %v1497
          %v2636 = vunpack.c.l.b16 %v1498
          %v2637 = vunpack.c.h.b16 %v1498
          %v2638 = vunpack.c.l.b16 %v1499
          %v2639 = vunpack.c.h.b16 %v1499
          %v2640 = vunpack.c.l.b16 %v1500
          %v2641 = vunpack.c.h.b16 %v1500
          %v2642 = vunpack.c.l.b16 %v1501
          %v2643 = vunpack.c.h.b16 %v1501
          %v2644 = vunpack.c.l.b16 %v1502
          %v2645 = vunpack.c.h.b16 %v1502
          %v2646 = vunpack.c.l.b16 %v1503
          %v2647 = vunpack.c.h.b16 %v1503
          %v2648 = vunpack.c.l.b16 %v1504
          %v2649 = vunpack.c.h.b16 %v1504
          %v2650 = vunpack.c.l.b16 %v1505
          %v2651 = vunpack.c.h.b16 %v1505
          %v2652 = vunpack.c.l.b16 %v1506
          %v2653 = vunpack.c.h.b16 %v1506
          %v2654 = vunpack.c.l.b16 %v1507
          %v2655 = vunpack.c.h.b16 %v1507
          %v2656 = vunpack.c.l.b16 %v1508
          %v2657 = vunpack.c.h.b16 %v1508
          %v2658 = vunpack.c.l.b16 %v1509
          %v2659 = vunpack.c.h.b16 %v1509
          %v2660 = vunpack.c.l.b16 %v1510
          %v2661 = vunpack.c.h.b16 %v1510
          %v2662 = vunpack.c.l.b16 %v1511
          %v2663 = vunpack.c.h.b16 %v1511
          %v2664 = vunpack.c.l.b16 %v1512
          %v2665 = vunpack.c.h.b16 %v1512
          %v2666 = vunpack.c.l.b16 %v1513
          %v2667 = vunpack.c.h.b16 %v1513
          %v2668 = vunpack.c.l.b16 %v1514
          %v2669 = vunpack.c.h.b16 %v1514
          %v2670 = vunpack.c.l.b16 %v1515
          %v2671 = vunpack.c.h.b16 %v1515
          %v2672 = vunpack.c.l.b16 %v1516
          %v2673 = vunpack.c.h.b16 %v1516
          %v2674 = vunpack.c.l.b16 %v1517
          %v2675 = vunpack.c.h.b16 %v1517
          %v2676 = vunpack.c.l.b16 %v1518
          %v2677 = vunpack.c.h.b16 %v1518
          %v2678 = vunpack.c.l.b16 %v1519
          %v2679 = vunpack.c.h.b16 %v1519
          %v2680 = vunpack.c.l.b16 %v1520
          %v2681 = vunpack.c.h.b16 %v1520
          %v2682 = vunpack.c.l.b16 %v1521
          %v2683 = vunpack.c.h.b16 %v1521
          %v2684 = vunpack.c.l.b16 %v1522
          %v2685 = vunpack.c.h.b16 %v1522
          %v2686 = vunpack.c.l.b16 %v1523
          %v2687 = vunpack.c.h.b16 %v1523
          %v2688 = vunpack.c.l.b16 %v1524
          %v2689 = vunpack.c.h.b16 %v1524
          %v2690 = vunpack.c.l.b16 %v1525
          %v2691 = vunpack.c.h.b16 %v1525
          %v2692 = vunpack.c.l.b16 %v1526
          %v2693 = vunpack.c.h.b16 %v1526
          %v2694 = vunpack.c.l.b16 %v1527
          %v2695 = vunpack.c.h.b16 %v1527
          %v2696 = vunpack.c.l.b16 %v1528
          %v2697 = vunpack.c.h.b16 %v1528
          %v2698 = vunpack.c.l.b16 %v1529
          %v2699 = vunpack.c.h.b16 %v1529
          %v2700 = vunpack.c.l.b16 %v1530
          %v2701 = vunpack.c.h.b16 %v1530
          %v2702 = vunpack.c.l.b16 %v1531
          %v2703 = vunpack.c.h.b16 %v1531
          %v2704 = vunpack.c.l.b16 %v1532
          %v2705 = vunpack.c.h.b16 %v1532
          %v2706 = vunpack.c.l.b16 %v1533
          %v2707 = vunpack.c.h.b16 %v1533
          %v2708 = vunpack.c.l.b16 %v1534
          %v2709 = vunpack.c.h.b16 %v1534
          %v2710 = vunpack.c.l.b16 %v1535
          %v2711 = vunpack.c.h.b16 %v1535
          %v2712 = vunpack.c.l.b16 %v1536
          %v2713 = vunpack.c.h.b16 %v1536
          %v2714 = vunpack.c.l.b16 %v1537
          %v2715 = vunpack.c.h.b16 %v1537
          %v2716 = vunpack.c.l.b16 %v1538
          %v2717 = vunpack.c.h.b16 %v1538
          %v2718 = vunpack.c.l.b16 %v1539
          %v2719 = vunpack.c.h.b16 %v1539
          %v2720 = vunpack.c.l.b16 %v1540
          %v2721 = vunpack.c.h.b16 %v1540
          %v2722 = vunpack.c.l.b16 %v1541
          %v2723 = vunpack.c.h.b16 %v1541
          %v2724 = vunpack.c.l.b16 %v1542
          %v2725 = vunpack.c.h.b16 %v1542
          %v2726 = vunpack.c.l.b16 %v1543
          %v2727 = vunpack.c.h.b16 %v1543
          %v2728 = vunpack.c.l.b16 %v1544
          %v2729 = vunpack.c.h.b16 %v1544
          %v2730 = vunpack.c.l.b16 %v1545
          %v2731 = vunpack.c.h.b16 %v1545
          %v2732 = vunpack.c.l.b16 %v1546
          %v2733 = vunpack.c.h.b16 %v1546
          %v2734 = vunpack.c.l.b16 %v1547
          %v2735 = vunpack.c.h.b16 %v1547
          %v2736 = vunpack.c.l.b16 %v1548
          %v2737 = vunpack.c.h.b16 %v1548
          %v2738 = vunpack.c.l.b16 %v1549
          %v2739 = vunpack.c.h.b16 %v1549
          %v2740 = vunpack.c.l.b16 %v1550
          %v2741 = vunpack.c.h.b16 %v1550
          %v2742 = vunpack.c.l.b16 %v1551
          %v2743 = vunpack.c.h.b16 %v1551
          %v2744 = vunpack.c.l.b16 %v1552
          %v2745 = vunpack.c.h.b16 %v1552
          %v2746 = vunpack.c.l.b16 %v1553
          %v2747 = vunpack.c.h.b16 %v1553
          %v2748 = vunpack.c.l.b16 %v1554
          %v2749 = vunpack.c.h.b16 %v1554
          %v2750 = vunpack.c.l.b16 %v1555
          %v2751 = vunpack.c.h.b16 %v1555
          %v2752 = vunpack.c.l.b16 %v1556
          %v2753 = vunpack.c.h.b16 %v1556
          %v2754 = vunpack.c.l.b16 %v1557
          %v2755 = vunpack.c.h.b16 %v1557
          %v2756 = vunpack.c.l.b16 %v1558
          %v2757 = vunpack.c.h.b16 %v1558
          %v2758 = vunpack.c.l.b16 %v1559
          %v2759 = vunpack.c.h.b16 %v1559
          %v2760 = vunpack.c.l.b16 %v1560
          %v2761 = vunpack.c.h.b16 %v1560
          %v2762 = vunpack.c.l.b16 %v1561
          %v2763 = vunpack.c.h.b16 %v1561
          %v2764 = vunpack.c.l.b16 %v1562
          %v2765 = vunpack.c.h.b16 %v1562
          %v2766 = vunpack.c.l.b16 %v1563
          %v2767 = vunpack.c.h.b16 %v1563
          %v2768 = vunpack.c.l.b16 %v1564
          %v2769 = vunpack.c.h.b16 %v1564
          %v2770 = vunpack.c.l.b16 %v1565
          %v2771 = vunpack.c.h.b16 %v1565
          %v2772 = vunpack.c.l.b16 %v1566
          %v2773 = vunpack.c.h.b16 %v1566
          %v2774 = vunpack.c.l.b16 %v1567
          %v2775 = vunpack.c.h.b16 %v1567
          %v2776 = vunpack.c.l.b16 %v1568
          %v2777 = vunpack.c.h.b16 %v1568
          %v2778 = vunpack.c.l.b16 %v1569
          %v2779 = vunpack.c.h.b16 %v1569
          %v2780 = vunpack.c.l.b16 %v1570
          %v2781 = vunpack.c.h.b16 %v1570
          %v2782 = vunpack.c.l.b16 %v1571
          %v2783 = vunpack.c.h.b16 %v1571
          %v2784 = vunpack.c.l.b16 %v1572
          %v2785 = vunpack.c.h.b16 %v1572
          %v2786 = vunpack.c.l.b16 %v1573
          %v2787 = vunpack.c.h.b16 %v1573
          %v2788 = vunpack.c.l.b16 %v1574
          %v2789 = vunpack.c.h.b16 %v1574
          %v2790 = vunpack.c.l.b16 %v1575
          %v2791 = vunpack.c.h.b16 %v1575
          %v2792 = vunpack.c.l.b16 %v1576
          %v2793 = vunpack.c.h.b16 %v1576
          %v2794 = vunpack.c.l.b16 %v1577
          %v2795 = vunpack.c.h.b16 %v1577
          %v2796 = vunpack.c.l.b16 %v1578
          %v2797 = vunpack.c.h.b16 %v1578
          %v2798 = vunpack.c.l.b16 %v1579
          %v2799 = vunpack.c.h.b16 %v1579
          %v2800 = vunpack.c.l.b16 %v1580
          %v2801 = vunpack.c.h.b16 %v1580
          %v2802 = vunpack.c.l.b16 %v1581
          %v2803 = vunpack.c.h.b16 %v1581
          %v2804 = vunpack.c.l.b16 %v1582
          %v2805 = vunpack.c.h.b16 %v1582
          %v2806 = vunpack.c.l.b16 %v1583
          %v2807 = vunpack.c.h.b16 %v1583
          %v2808 = vunpack.c.l.b16 %v1584
          %v2809 = vunpack.c.h.b16 %v1584
          %v2810 = vunpack.c.l.b16 %v1585
          %v2811 = vunpack.c.h.b16 %v1585
          %v2812 = vunpack.c.l.b16 %v1586
          %v2813 = vunpack.c.h.b16 %v1586
          %v2814 = vunpack.c.l.b16 %v1587
          %v2815 = vunpack.c.h.b16 %v1587
          %v2816 = vunpack.c.l.b16 %v1588
          %v2817 = vunpack.c.h.b16 %v1588
          %v2818 = vunpack.c.l.b16 %v1589
          %v2819 = vunpack.c.h.b16 %v1589
          %v2820 = vunpack.c.l.b16 %v1590
          %v2821 = vunpack.c.h.b16 %v1590
          %v2822 = vunpack.c.l.b16 %v1591
          %v2823 = vunpack.c.h.b16 %v1591
          %v2824 = vunpack.c.l.b16 %v1592
          %v2825 = vunpack.c.h.b16 %v1592
          %v2826 = vunpack.c.l.b16 %v1593
          %v2827 = vunpack.c.h.b16 %v1593
          %v2828 = vunpack.c.l.b16 %v1594
          %v2829 = vunpack.c.h.b16 %v1594
          %v2830 = vunpack.c.l.b16 %v1595
          %v2831 = vunpack.c.h.b16 %v1595
          %v2832 = vunpack.c.l.b16 %v1596
          %v2833 = vunpack.c.h.b16 %v1596
          %v2834 = vunpack.c.l.b16 %v1597
          %v2835 = vunpack.c.h.b16 %v1597
          %v2836 = vunpack.c.l.b16 %v1598
          %v2837 = vunpack.c.h.b16 %v1598
          %v2838 = vunpack.c.l.b16 %v1599
          %v2839 = vunpack.c.h.b16 %v1599
          %v2840 = vunpack.c.l.b16 %v1600
          %v2841 = vunpack.c.h.b16 %v1600
          %v2842 = vunpack.c.l.b16 %v1601
          %v2843 = vunpack.c.h.b16 %v1601
          %v2844 = vunpack.c.l.b16 %v1602
          %v2845 = vunpack.c.h.b16 %v1602
          %v2846 = vunpack.c.l.b16 %v1603
          %v2847 = vunpack.c.h.b16 %v1603
          %v2848 = vunpack.c.l.b16 %v1604
          %v2849 = vunpack.c.h.b16 %v1604
          %v2850 = vunpack.c.l.b16 %v1605
          %v2851 = vunpack.c.h.b16 %v1605
          %v2852 = vunpack.c.l.b16 %v1606
          %v2853 = vunpack.c.h.b16 %v1606
          %v2854 = vunpack.c.l.b16 %v1607
          %v2855 = vunpack.c.h.b16 %v1607
          %v2856 = vunpack.c.l.b16 %v1608
          %v2857 = vunpack.c.h.b16 %v1608
          %v2858 = vunpack.c.l.b16 %v1609
          %v2859 = vunpack.c.h.b16 %v1609
          %v2860 = vunpack.c.l.b16 %v1610
          %v2861 = vunpack.c.h.b16 %v1610
          %v2862 = vunpack.c.l.b16 %v1611
          %v2863 = vunpack.c.h.b16 %v1611
          %v2864 = vunpack.c.l.b16 %v1612
          %v2865 = vunpack.c.h.b16 %v1612
          %v2866 = vunpack.c.l.b16 %v1613
          %v2867 = vunpack.c.h.b16 %v1613
          %v2868 = vunpack.c.l.b16 %v1614
          %v2869 = vunpack.c.h.b16 %v1614
          %v2870 = vunpack.c.l.b16 %v1615
          %v2871 = vunpack.c.h.b16 %v1615
          %v2872 = vunpack.c.l.b16 %v1616
          %v2873 = vunpack.c.h.b16 %v1616
          %v2874 = vunpack.c.l.b16 %v1617
          %v2875 = vunpack.c.h.b16 %v1617
          %v2876 = vunpack.c.l.b16 %v1618
          %v2877 = vunpack.c.h.b16 %v1618
          %v2878 = vunpack.c.l.b16 %v1619
          %v2879 = vunpack.c.h.b16 %v1619
          %v2880 = vunpack.c.l.b16 %v1620
          %v2881 = vunpack.c.h.b16 %v1620
          %v2882 = vunpack.c.l.b16 %v1621
          %v2883 = vunpack.c.h.b16 %v1621
          %v2884 = vunpack.c.l.b16 %v1622
          %v2885 = vunpack.c.h.b16 %v1622
          %v2886 = vunpack.c.l.b16 %v1623
          %v2887 = vunpack.c.h.b16 %v1623
          %v2888 = vunpack.c.l.b16 %v1624
          %v2889 = vunpack.c.h.b16 %v1624
          %v2890 = vunpack.c.l.b16 %v1625
          %v2891 = vunpack.c.h.b16 %v1625
          %v2892 = vunpack.c.l.b16 %v1626
          %v2893 = vunpack.c.h.b16 %v1626
          %v2894 = vunpack.c.l.b16 %v1627
          %v2895 = vunpack.c.h.b16 %v1627
          %v2896 = vunpack.c.l.b16 %v1628
          %v2897 = vunpack.c.h.b16 %v1628
          %v2898 = vunpack.c.l.b16 %v1629
          %v2899 = vunpack.c.h.b16 %v1629
          %v2900 = vunpack.c.l.b16 %v1630
          %v2901 = vunpack.c.h.b16 %v1630
          %v2902 = vunpack.c.l.b16 %v1631
          %v2903 = vunpack.c.h.b16 %v1631
          %v2904 = vunpack.c.l.b16 %v1632
          %v2905 = vunpack.c.h.b16 %v1632
          %v2906 = vunpack.c.l.b16 %v1633
          %v2907 = vunpack.c.h.b16 %v1633
          %v2908 = vunpack.c.l.b16 %v1634
          %v2909 = vunpack.c.h.b16 %v1634
          %v2910 = vunpack.c.l.b16 %v1635
          %v2911 = vunpack.c.h.b16 %v1635
          %v2912 = vunpack.c.l.b16 %v1636
          %v2913 = vunpack.c.h.b16 %v1636
          %v2914 = vunpack.c.l.b16 %v1637
          %v2915 = vunpack.c.h.b16 %v1637
          %v2916 = vunpack.c.l.b16 %v1638
          %v2917 = vunpack.c.h.b16 %v1638
          %v2918 = vunpack.c.l.b16 %v1639
          %v2919 = vunpack.c.h.b16 %v1639
          %v2920 = vunpack.c.l.b16 %v1640
          %v2921 = vunpack.c.h.b16 %v1640
          %v2922 = vunpack.c.l.b16 %v1641
          %v2923 = vunpack.c.h.b16 %v1641
          %v2924 = vunpack.c.l.b16 %v1642
          %v2925 = vunpack.c.h.b16 %v1642
          %v2926 = vunpack.c.l.b16 %v1643
          %v2927 = vunpack.c.h.b16 %v1643
          %v2928 = vunpack.c.l.b16 %v1644
          %v2929 = vunpack.c.h.b16 %v1644
          %v2930 = vunpack.c.l.b16 %v1645
          %v2931 = vunpack.c.h.b16 %v1645
          %v2932 = vunpack.c.l.b16 %v1646
          %v2933 = vunpack.c.h.b16 %v1646
          %v2934 = vunpack.c.l.b16 %v1647
          %v2935 = vunpack.c.h.b16 %v1647
          %v2936 = vunpack.c.l.b16 %v1648
          %v2937 = vunpack.c.h.b16 %v1648
          %v2938 = vunpack.c.l.b16 %v1649
          %v2939 = vunpack.c.h.b16 %v1649
          %v2940 = vunpack.c.l.b16 %v1650
          %v2941 = vunpack.c.h.b16 %v1650
          %v2942 = vunpack.c.l.b16 %v1651
          %v2943 = vunpack.c.h.b16 %v1651
          %v2944 = vunpack.c.l.b16 %v1652
          %v2945 = vunpack.c.h.b16 %v1652
          %v2946 = vunpack.c.l.b16 %v1653
          %v2947 = vunpack.c.h.b16 %v1653
          %v2948 = vunpack.c.l.b16 %v1654
          %v2949 = vunpack.c.h.b16 %v1654
          %v2950 = vunpack.c.l.b16 %v1655
          %v2951 = vunpack.c.h.b16 %v1655
          %v2952 = vunpack.c.l.b16 %v1656
          %v2953 = vunpack.c.h.b16 %v1656
          %v2954 = vunpack.c.l.b16 %v1657
          %v2955 = vunpack.c.h.b16 %v1657
          %v2956 = vunpack.c.l.b16 %v1658
          %v2957 = vunpack.c.h.b16 %v1658
          %v2958 = vunpack.c.l.b16 %v1659
          %v2959 = vunpack.c.h.b16 %v1659
          %v2960 = vunpack.c.l.b16 %v1660
          %v2961 = vunpack.c.h.b16 %v1660
          %v2962 = vunpack.c.l.b16 %v1661
          %v2963 = vunpack.c.h.b16 %v1661
          %v2964 = vunpack.c.l.b16 %v1662
          %v2965 = vunpack.c.h.b16 %v1662
          %v2966 = vunpack.c.l.b16 %v1663
          %v2967 = vunpack.c.h.b16 %v1663
          %v2968 = vunpack.c.l.b16 %v1664
          %v2969 = vunpack.c.h.b16 %v1664
          %v2970 = vunpack.c.l.b16 %v1665
          %v2971 = vunpack.c.h.b16 %v1665
          %v2972 = vunpack.c.l.b16 %v1666
          %v2973 = vunpack.c.h.b16 %v1666
          %v2974 = vunpack.c.l.b16 %v1667
          %v2975 = vunpack.c.h.b16 %v1667
          %v2976 = vunpack.c.l.b16 %v1668
          %v2977 = vunpack.c.h.b16 %v1668
          %v2978 = vunpack.c.l.b16 %v1669
          %v2979 = vunpack.c.h.b16 %v1669
          %v2980 = vunpack.c.l.b16 %v1670
          %v2981 = vunpack.c.h.b16 %v1670
          %v2982 = vunpack.c.l.b16 %v1671
          %v2983 = vunpack.c.h.b16 %v1671
          %v2984 = vunpack.c.l.b16 %v1672
          %v2985 = vunpack.c.h.b16 %v1672
          %v2986 = vunpack.c.l.b16 %v1673
          %v2987 = vunpack.c.h.b16 %v1673
          %v2988 = vunpack.c.l.b16 %v1674
          %v2989 = vunpack.c.h.b16 %v1674
          %v2990 = vunpack.c.l.b16 %v1675
          %v2991 = vunpack.c.h.b16 %v1675
          %v2992 = vunpack.c.l.b16 %v1676
          %v2993 = vunpack.c.h.b16 %v1676
          %v2994 = vunpack.c.l.b16 %v1677
          %v2995 = vunpack.c.h.b16 %v1677
          %v2996 = vunpack.c.l.b16 %v1678
          %v2997 = vunpack.c.h.b16 %v1678
          %v2998 = vunpack.c.l.b16 %v1679
          %v2999 = vunpack.c.h.b16 %v1679
          %v3000 = vunpack.c.l.b16 %v1680
          %v3001 = vunpack.c.h.b16 %v1680
          %v3002 = vunpack.c.l.b16 %v1681
          %v3003 = vunpack.c.h.b16 %v1681
          %v3004 = vunpack.c.l.b16 %v1682
          %v3005 = vunpack.c.h.b16 %v1682
          %v3006 = vunpack.c.l.b16 %v1683
          %v3007 = vunpack.c.h.b16 %v1683
          %v3008 = vunpack.c.l.b16 %v1684
          %v3009 = vunpack.c.h.b16 %v1684
          %v3010 = vunpack.c.l.b16 %v1685
          %v3011 = vunpack.c.h.b16 %v1685
          %v3012 = vunpack.c.l.b16 %v1686
          %v3013 = vunpack.c.h.b16 %v1686
          %v3014 = vunpack.c.l.b16 %v1687
          %v3015 = vunpack.c.h.b16 %v1687
          %v3016 = vunpack.c.l.b16 %v1688
          %v3017 = vunpack.c.h.b16 %v1688
          %v3018 = vunpack.c.l.b16 %v1689
          %v3019 = vunpack.c.h.b16 %v1689
          %v3020 = vunpack.c.l.b16 %v1690
          %v3021 = vunpack.c.h.b16 %v1690
          %v3022 = vunpack.c.l.b16 %v1691
          %v3023 = vunpack.c.h.b16 %v1691
          %v3024 = vunpack.c.l.b16 %v1692
          %v3025 = vunpack.c.h.b16 %v1692
          %v3026 = vunpack.c.l.b16 %v1693
          %v3027 = vunpack.c.h.b16 %v1693
          %v3028 = vunpack.c.l.b16 %v1694
          %v3029 = vunpack.c.h.b16 %v1694
          %v3030 = vunpack.c.l.b16 %v1695
          %v3031 = vunpack.c.h.b16 %v1695
          %v3032 = vunpack.c.l.b16 %v1696
          %v3033 = vunpack.c.h.b16 %v1696
          %v3034 = vunpack.c.l.b16 %v1697
          %v3035 = vunpack.c.h.b16 %v1697
          %v3036 = vunpack.c.l.b16 %v1698
          %v3037 = vunpack.c.h.b16 %v1698
          %v3038 = vunpack.c.l.b16 %v1699
          %v3039 = vunpack.c.h.b16 %v1699
          %v3040 = vunpack.c.l.b16 %v1700
          %v3041 = vunpack.c.h.b16 %v1700
          %v3042 = vunpack.c.l.b16 %v1701
          %v3043 = vunpack.c.h.b16 %v1701
          %v3044 = vunpack.c.l.b16 %v1702
          %v3045 = vunpack.c.h.b16 %v1702
          %v3046 = vunpack.c.l.b16 %v1703
          %v3047 = vunpack.c.h.b16 %v1703
          %v3048 = vunpack.c.l.b16 %v1704
          %v3049 = vunpack.c.h.b16 %v1704
          %v3050 = vunpack.c.l.b16 %v1705
          %v3051 = vunpack.c.h.b16 %v1705
          %v3052 = vunpack.c.l.b16 %v1706
          %v3053 = vunpack.c.h.b16 %v1706
          %v3054 = vunpack.c.l.b16 %v1707
          %v3055 = vunpack.c.h.b16 %v1707
          %v3056 = vunpack.c.l.b16 %v1708
          %v3057 = vunpack.c.h.b16 %v1708
          %v3058 = vunpack.c.l.b16 %v1709
          %v3059 = vunpack.c.h.b16 %v1709
          %v3060 = vunpack.c.l.b16 %v1710
          %v3061 = vunpack.c.h.b16 %v1710
          %v3062 = vunpack.c.l.b16 %v1711
          %v3063 = vunpack.c.h.b16 %v1711
          %v3064 = vunpack.c.l.b16 %v1712
          %v3065 = vunpack.c.h.b16 %v1712
          %v3066 = vunpack.c.l.b16 %v1713
          %v3067 = vunpack.c.h.b16 %v1713
          %v3068 = vunpack.c.l.b16 %v1714
          %v3069 = vunpack.c.h.b16 %v1714
          %v3070 = vunpack.c.l.b16 %v1715
          %v3071 = vunpack.c.h.b16 %v1715
          %v3072 = vunpack.c.l.b16 %v1716
          %v3073 = vunpack.c.h.b16 %v1716
          %v3074 = vunpack.c.l.b16 %v1717
          %v3075 = vunpack.c.h.b16 %v1717
          %v3076 = vunpack.c.l.b16 %v1718
          %v3077 = vunpack.c.h.b16 %v1718
          %v3078 = vunpack.c.l.b16 %v1719
          %v3079 = vunpack.c.h.b16 %v1719
          %v3080 = vunpack.c.l.b16 %v1720
          %v3081 = vunpack.c.h.b16 %v1720
          %v3082 = vunpack.c.l.b16 %v1721
          %v3083 = vunpack.c.h.b16 %v1721
          %v3084 = vunpack.c.l.b16 %v1722
          %v3085 = vunpack.c.h.b16 %v1722
          %v3086 = vunpack.c.l.b16 %v1723
          %v3087 = vunpack.c.h.b16 %v1723
          %v3088 = vunpack.c.l.b16 %v1724
          %v3089 = vunpack.c.h.b16 %v1724
          %v3090 = vunpack.c.l.b16 %v1725
          %v3091 = vunpack.c.h.b16 %v1725
          %v3092 = vunpack.c.l.b16 %v1726
          %v3093 = vunpack.c.h.b16 %v1726
          %v3094 = vunpack.c.l.b16 %v1727
          %v3095 = vunpack.c.h.b16 %v1727
          %v3096 = vunpack.c.l.b16 %v1728
          %v3097 = vunpack.c.h.b16 %v1728
          %v3098 = vunpack.c.l.b16 %v1729
          %v3099 = vunpack.c.h.b16 %v1729
          %v3100 = vunpack.c.l.b16 %v1730
          %v3101 = vunpack.c.h.b16 %v1730
          %v3102 = vunpack.c.l.b16 %v1731
          %v3103 = vunpack.c.h.b16 %v1731
          %v3104 = vunpack.c.l.b16 %v1732
          %v3105 = vunpack.c.h.b16 %v1732
          %v3106 = vunpack.c.l.b16 %v1733
          %v3107 = vunpack.c.h.b16 %v1733
          %v3108 = vunpack.c.l.b16 %v1734
          %v3109 = vunpack.c.h.b16 %v1734
          %v3110 = vunpack.c.l.b16 %v1735
          %v3111 = vunpack.c.h.b16 %v1735
          %v3112 = vunpack.c.l.b16 %v1736
          %v3113 = vunpack.c.h.b16 %v1736
          %v3114 = vunpack.c.l.b16 %v1737
          %v3115 = vunpack.c.h.b16 %v1737
          %v3116 = vunpack.c.l.b16 %v1738
          %v3117 = vunpack.c.h.b16 %v1738
          %v3118 = vunpack.c.l.b16 %v1739
          %v3119 = vunpack.c.h.b16 %v1739
          %v3120 = vunpack.c.l.b16 %v1740
          %v3121 = vunpack.c.h.b16 %v1740
          %v3122 = vunpack.c.l.b16 %v1741
          %v3123 = vunpack.c.h.b16 %v1741
          %v3124 = vunpack.c.l.b16 %v1742
          %v3125 = vunpack.c.h.b16 %v1742
          %v3126 = vunpack.c.l.b16 %v1743
          %v3127 = vunpack.c.h.b16 %v1743
          %v3128 = vunpack.c.l.b16 %v1744
          %v3129 = vunpack.c.h.b16 %v1744
          %v3130 = vunpack.c.l.b16 %v1745
          %v3131 = vunpack.c.h.b16 %v1745
          %v3132 = vunpack.c.l.b16 %v1746
          %v3133 = vunpack.c.h.b16 %v1746
          %v3134 = vunpack.c.l.b16 %v1747
          %v3135 = vunpack.c.h.b16 %v1747
          %v3136 = vunpack.c.l.b16 %v1748
          %v3137 = vunpack.c.h.b16 %v1748
          %v3138 = vunpack.c.l.b16 %v1749
          %v3139 = vunpack.c.h.b16 %v1749
          %v3140 = vunpack.c.l.b16 %v1750
          %v3141 = vunpack.c.h.b16 %v1750
          %v3142 = vunpack.c.l.b16 %v1751
          %v3143 = vunpack.c.h.b16 %v1751
          %v3144 = vunpack.c.l.b16 %v1752
          %v3145 = vunpack.c.h.b16 %v1752
          %v3146 = vunpack.c.l.b16 %v1753
          %v3147 = vunpack.c.h.b16 %v1753
          %v3148 = vunpack.c.l.b16 %v1754
          %v3149 = vunpack.c.h.b16 %v1754
          %v3150 = vunpack.c.l.b16 %v1755
          %v3151 = vunpack.c.h.b16 %v1755
          %v3152 = vunpack.c.l.b16 %v1756
          %v3153 = vunpack.c.h.b16 %v1756
          %v3154 = vunpack.c.l.b16 %v1757
          %v3155 = vunpack.c.h.b16 %v1757
          %v3156 = vunpack.c.l.b16 %v1758
          %v3157 = vunpack.c.h.b16 %v1758
          %v3158 = vunpack.c.l.b16 %v1759
          %v3159 = vunpack.c.h.b16 %v1759
          %v3160 = vunpack.c.l.b16 %v1760
          %v3161 = vunpack.c.h.b16 %v1760
          %v3162 = vunpack.c.l.b16 %v1761
          %v3163 = vunpack.c.h.b16 %v1761
          %v3164 = vunpack.c.l.b16 %v1762
          %v3165 = vunpack.c.h.b16 %v1762
          %v3166 = vunpack.c.l.b16 %v1763
          %v3167 = vunpack.c.h.b16 %v1763
          %v3168 = vunpack.c.l.b16 %v1764
          %v3169 = vunpack.c.h.b16 %v1764
          %v3170 = vunpack.c.l.b16 %v1765
          %v3171 = vunpack.c.h.b16 %v1765
          %v3172 = vunpack.c.l.b16 %v1766
          %v3173 = vunpack.c.h.b16 %v1766
          %v3174 = vunpack.c.l.b16 %v1767
          %v3175 = vunpack.c.h.b16 %v1767
          %v3176 = vunpack.c.l.b16 %v1768
          %v3177 = vunpack.c.h.b16 %v1768
          %v3178 = vunpack.c.l.b16 %v1769
          %v3179 = vunpack.c.h.b16 %v1769
          %v3180 = vunpack.c.l.b16 %v1770
          %v3181 = vunpack.c.h.b16 %v1770
          %v3182 = vunpack.c.l.b16 %v1771
          %v3183 = vunpack.c.h.b16 %v1771
          %v3184 = vunpack.c.l.b16 %v1772
          %v3185 = vunpack.c.h.b16 %v1772
          %v3186 = vunpack.c.l.b16 %v1773
          %v3187 = vunpack.c.h.b16 %v1773
          %v3188 = vunpack.c.l.b16 %v1774
          %v3189 = vunpack.c.h.b16 %v1774
          %v3190 = vunpack.c.l.b16 %v1775
          %v3191 = vunpack.c.h.b16 %v1775
          %v3192 = vunpack.c.l.b16 %v1776
          %v3193 = vunpack.c.h.b16 %v1776
          %v3194 = vunpack.c.l.b16 %v1777
          %v3195 = vunpack.c.h.b16 %v1777
          %v3196 = vunpack.c.l.b16 %v1778
          %v3197 = vunpack.c.h.b16 %v1778
          %v3198 = vunpack.c.l.b16 %v1779
          %v3199 = vunpack.c.h.b16 %v1779
          %v3200 = vunpack.c.l.b16 %v1780
          %v3201 = vunpack.c.h.b16 %v1780
          %v3202 = vunpack.c.l.b16 %v1781
          %v3203 = vunpack.c.h.b16 %v1781
          %v3204 = vunpack.c.l.b16 %v1782
          %v3205 = vunpack.c.h.b16 %v1782
          %v3206 = vunpack.c.l.b16 %v1783
          %v3207 = vunpack.c.h.b16 %v1783
          %v3208 = vunpack.c.l.b16 %v1784
          %v3209 = vunpack.c.h.b16 %v1784
          %v3210 = vunpack.c.l.b16 %v1785
          %v3211 = vunpack.c.h.b16 %v1785
          %v3212 = vunpack.c.l.b16 %v1786
          %v3213 = vunpack.c.h.b16 %v1786
          %v3214 = vunpack.c.l.b16 %v1787
          %v3215 = vunpack.c.h.b16 %v1787
          %v3216 = vunpack.c.l.b16 %v1788
          %v3217 = vunpack.c.h.b16 %v1788
          %v3218 = vunpack.c.l.b16 %v1789
          %v3219 = vunpack.c.h.b16 %v1789
          %v3220 = vunpack.c.l.b16 %v1790
          %v3221 = vunpack.c.h.b16 %v1790
          %v3222 = vunpack.c.l.b16 %v1791
          %v3223 = vunpack.c.h.b16 %v1791
          %v3224 = vunpack.c.l.b16 %v1792
          %v3225 = vunpack.c.h.b16 %v1792
          %v3226 = vunpack.c.l.b16 %v1793
          %v3227 = vunpack.c.h.b16 %v1793
          %v3228 = vunpack.c.l.b16 %v1794
          %v3229 = vunpack.c.h.b16 %v1794
          %v3230 = vunpack.c.l.b16 %v1795
          %v3231 = vunpack.c.h.b16 %v1795
          %v3232 = vunpack.c.l.b16 %v1796
          %v3233 = vunpack.c.h.b16 %v1796
          %v3234 = vunpack.c.l.b16 %v1797
          %v3235 = vunpack.c.h.b16 %v1797
          %v3236 = vunpack.c.l.b16 %v1798
          %v3237 = vunpack.c.h.b16 %v1798
          %v3238 = vunpack.c.l.b16 %v1799
          %v3239 = vunpack.c.h.b16 %v1799
          %v3240 = vunpack.c.l.b16 %v1800
          %v3241 = vunpack.c.h.b16 %v1800
          %v3242 = vunpack.c.l.b16 %v1801
          %v3243 = vunpack.c.h.b16 %v1801
          %v3244 = vunpack.c.l.b16 %v1802
          %v3245 = vunpack.c.h.b16 %v1802
          %v3246 = vunpack.c.l.b16 %v1803
          %v3247 = vunpack.c.h.b16 %v1803
          %v3248 = vunpack.c.l.b16 %v1804
          %v3249 = vunpack.c.h.b16 %v1804
          %v3250 = vunpack.c.l.b16 %v1805
          %v3251 = vunpack.c.h.b16 %v1805
          %v3252 = vunpack.c.l.b16 %v1806
          %v3253 = vunpack.c.h.b16 %v1806
          %v3254 = vunpack.c.l.b16 %v1807
          %v3255 = vunpack.c.h.b16 %v1807
          %v3256 = vunpack.c.l.b16 %v1808
          %v3257 = vunpack.c.h.b16 %v1808
          %v3258 = vunpack.c.l.b16 %v1809
          %v3259 = vunpack.c.h.b16 %v1809
          %v3260 = vunpack.c.l.b16 %v1810
          %v3261 = vunpack.c.h.b16 %v1810
          %v3262 = vunpack.c.l.b16 %v1811
          %v3263 = vunpack.c.h.b16 %v1811
          %v3264 = vunpack.c.l.b16 %v1812
          %v3265 = vunpack.c.h.b16 %v1812
          %v3266 = vunpack.c.l.b16 %v1813
          %v3267 = vunpack.c.h.b16 %v1813
          %v3268 = vunpack.c.l.b16 %v1814
          %v3269 = vunpack.c.h.b16 %v1814
          %v3270 = vunpack.c.l.b16 %v1815
          %v3271 = vunpack.c.h.b16 %v1815
          %v3272 = vunpack.c.l.b16 %v1816
          %v3273 = vunpack.c.h.b16 %v1816
          %v3274 = vunpack.c.l.b16 %v1817
          %v3275 = vunpack.c.h.b16 %v1817
          %v3276 = vunpack.c.l.b16 %v1818
          %v3277 = vunpack.c.h.b16 %v1818
          %v3278 = vunpack.c.l.b16 %v1819
          %v3279 = vunpack.c.h.b16 %v1819
          %v3280 = vunpack.c.l.b16 %v1820
          %v3281 = vunpack.c.h.b16 %v1820
          %v3282 = vunpack.c.l.b16 %v1821
          %v3283 = vunpack.c.h.b16 %v1821
          %v3284 = vunpack.c.l.b16 %v1822
          %v3285 = vunpack.c.h.b16 %v1822
          %v3286 = vunpack.c.l.b16 %v1823
          %v3287 = vunpack.c.h.b16 %v1823
          %v3288 = vunpack.c.l.b16 %v1824
          %v3289 = vunpack.c.h.b16 %v1824
          %v3290 = vunpack.c.l.b16 %v1825
          %v3291 = vunpack.c.h.b16 %v1825
          %v3292 = vunpack.c.l.b16 %v1826
          %v3293 = vunpack.c.h.b16 %v1826
          %v3294 = vunpack.c.l.b16 %v1827
          %v3295 = vunpack.c.h.b16 %v1827
          %v3296 = vunpack.c.l.b16 %v1828
          %v3297 = vunpack.c.h.b16 %v1828
          %v3298 = vunpack.c.l.b16 %v1829
          %v3299 = vunpack.c.h.b16 %v1829
          %v3300 = vunpack.c.l.b16 %v1830
          %v3301 = vunpack.c.h.b16 %v1830
          %v3302 = vunpack.c.l.b16 %v1831
          %v3303 = vunpack.c.h.b16 %v1831
          %v3304 = vunpack.c.l.b16 %v1832
          %v3305 = vunpack.c.h.b16 %v1832
          %v3306 = vunpack.c.l.b16 %v1833
          %v3307 = vunpack.c.h.b16 %v1833
          %v3308 = vunpack.c.l.b16 %v1834
          %v3309 = vunpack.c.h.b16 %v1834
          %v3310 = vunpack.c.l.b16 %v1835
          %v3311 = vunpack.c.h.b16 %v1835
          %v3312 = vunpack.c.l.b16 %v1836
          %v3313 = vunpack.c.h.b16 %v1836
          %v3314 = vunpack.c.l.b16 %v1837
          %v3315 = vunpack.c.h.b16 %v1837
          %v3316 = vunpack.c.l.b16 %v1838
          %v3317 = vunpack.c.h.b16 %v1838
          %v3318 = vunpack.c.l.b16 %v1839
          %v3319 = vunpack.c.h.b16 %v1839
          %v3320 = vunpack.c.l.b16 %v1840
          %v3321 = vunpack.c.h.b16 %v1840
          %v3322 = vunpack.c.l.b16 %v1841
          %v3323 = vunpack.c.h.b16 %v1841
          %v3324 = vunpack.c.l.b16 %v1842
          %v3325 = vunpack.c.h.b16 %v1842
          %v3326 = vunpack.c.l.b16 %v1843
          %v3327 = vunpack.c.h.b16 %v1843
          %v3328 = vunpack.c.l.b16 %v1844
          %v3329 = vunpack.c.h.b16 %v1844
          %v3330 = vunpack.c.l.b16 %v1845
          %v3331 = vunpack.c.h.b16 %v1845
          %v3332 = vunpack.c.l.b16 %v1846
          %v3333 = vunpack.c.h.b16 %v1846
          %v3334 = vunpack.c.l.b16 %v1847
          %v3335 = vunpack.c.h.b16 %v1847
          %v3336 = vunpack.c.l.b16 %v1848
          %v3337 = vunpack.c.h.b16 %v1848
          %v3338 = vunpack.c.l.b16 %v1849
          %v3339 = vunpack.c.h.b16 %v1849
          %v3340 = vunpack.c.l.b16 %v1850
          %v3341 = vunpack.c.h.b16 %v1850
          %v3342 = vunpack.c.l.b16 %v1851
          %v3343 = vunpack.c.h.b16 %v1851
          %v3344 = vunpack.c.l.b16 %v1852
          %v3345 = vunpack.c.h.b16 %v1852
          %v3346 = vunpack.c.l.b16 %v1853
          %v3347 = vunpack.c.h.b16 %v1853
          %v3348 = vunpack.c.l.b16 %v1854
          %v3349 = vunpack.c.h.b16 %v1854
          %v3350 = vunpack.c.l.b16 %v1855
          %v3351 = vunpack.c.h.b16 %v1855
          %v3352 = vunpack.c.l.b16 %v1856
          %v3353 = vunpack.c.h.b16 %v1856
          %v3354 = vunpack.c.l.b16 %v1857
          %v3355 = vunpack.c.h.b16 %v1857
          %v3356 = vunpack.c.l.b16 %v1858
          %v3357 = vunpack.c.h.b16 %v1858
          %v3358 = vunpack.c.l.b16 %v1859
          %v3359 = vunpack.c.h.b16 %v1859
          %v3360 = vunpack.c.l.b16 %v1860
          %v3361 = vunpack.c.h.b16 %v1860
          %v3362 = vunpack.c.l.b16 %v1861
          %v3363 = vunpack.c.h.b16 %v1861
          %v3364 = vunpack.c.l.b16 %v1862
          %v3365 = vunpack.c.h.b16 %v1862
          %v3366 = vunpack.c.l.b16 %v1863
          %v3367 = vunpack.c.h.b16 %v1863
          %v3368 = vunpack.c.l.b16 %v1864
          %v3369 = vunpack.c.h.b16 %v1864
          %v3370 = vunpack.c.l.b16 %v1865
          %v3371 = vunpack.c.h.b16 %v1865
          %v3372 = vunpack.c.l.b16 %v1866
          %v3373 = vunpack.c.h.b16 %v1866
          %v3374 = vunpack.c.l.b16 %v1867
          %v3375 = vunpack.c.h.b16 %v1867
          %v3376 = vunpack.c.l.b16 %v1868
          %v3377 = vunpack.c.h.b16 %v1868
          %v3378 = vunpack.c.l.b16 %v1869
          %v3379 = vunpack.c.h.b16 %v1869
          %v3380 = vunpack.c.l.b16 %v1870
          %v3381 = vunpack.c.h.b16 %v1870
          %v3382 = vunpack.c.l.b16 %v1871
          %v3383 = vunpack.c.h.b16 %v1871
          %v3384 = vunpack.c.l.b16 %v1872
          %v3385 = vunpack.c.h.b16 %v1872
          %v3386 = vunpack.c.l.b16 %v1873
          %v3387 = vunpack.c.h.b16 %v1873
          %v3388 = vunpack.c.l.b16 %v1874
          %v3389 = vunpack.c.h.b16 %v1874
          %v3390 = vunpack.c.l.b16 %v1875
          %v3391 = vunpack.c.h.b16 %v1875
          %v3392 = vunpack.c.l.b16 %v1876
          %v3393 = vunpack.c.h.b16 %v1876
          %v3394 = vunpack.c.l.b16 %v1877
          %v3395 = vunpack.c.h.b16 %v1877
          %v3396 = vunpack.c.l.b16 %v1878
          %v3397 = vunpack.c.h.b16 %v1878
          %v3398 = vunpack.c.l.b16 %v1879
          %v3399 = vunpack.c.h.b16 %v1879
          %v3400 = vunpack.c.l.b16 %v1880
          %v3401 = vunpack.c.h.b16 %v1880
          %v3402 = vunpack.c.l.b16 %v1881
          %v3403 = vunpack.c.h.b16 %v1881
          %v3404 = vunpack.c.l.b16 %v1882
          %v3405 = vunpack.c.h.b16 %v1882
          %v3406 = vunpack.c.l.b16 %v1883
          %v3407 = vunpack.c.h.b16 %v1883
          %v3408 = vunpack.c.l.b16 %v1884
          %v3409 = vunpack.c.h.b16 %v1884
          %v3410 = vunpack.c.l.b16 %v1885
          %v3411 = vunpack.c.h.b16 %v1885
          %v3412 = vunpack.c.l.b16 %v1886
          %v3413 = vunpack.c.h.b16 %v1886
          %v3414 = vunpack.c.l.b16 %v1887
          %v3415 = vunpack.c.h.b16 %v1887
          %v3416 = vunpack.c.l.b16 %v1888
          %v3417 = vunpack.c.h.b16 %v1888
          %v3418 = vunpack.c.l.b16 %v1889
          %v3419 = vunpack.c.h.b16 %v1889
          %v3420 = vunpack.c.l.b16 %v1890
          %v3421 = vunpack.c.h.b16 %v1890
          %v3422 = vunpack.c.l.b16 %v1891
          %v3423 = vunpack.c.h.b16 %v1891
          %v3424 = vunpack.c.l.b16 %v1892
          %v3425 = vunpack.c.h.b16 %v1892
          %v3426 = vunpack.c.l.b16 %v1893
          %v3427 = vunpack.c.h.b16 %v1893
          %v3428 = vunpack.c.l.b16 %v1894
          %v3429 = vunpack.c.h.b16 %v1894
          %v3430 = vunpack.c.l.b16 %v1895
          %v3431 = vunpack.c.h.b16 %v1895
          %v3432 = vunpack.c.l.b16 %v1896
          %v3433 = vunpack.c.h.b16 %v1896
          %v3434 = vunpack.c.l.b16 %v1897
          %v3435 = vunpack.c.h.b16 %v1897
          %v3436 = vunpack.c.l.b16 %v1898
          %v3437 = vunpack.c.h.b16 %v1898
          %v3438 = vunpack.c.l.b16 %v1899
          %v3439 = vunpack.c.h.b16 %v1899
          %v3440 = vunpack.c.l.b16 %v1900
          %v3441 = vunpack.c.h.b16 %v1900
          %v3442 = vunpack.c.l.b16 %v1901
          %v3443 = vunpack.c.h.b16 %v1901
          %v3444 = vunpack.c.l.b16 %v1902
          %v3445 = vunpack.c.h.b16 %v1902
          %v3446 = vunpack.c.l.b16 %v1903
          %v3447 = vunpack.c.h.b16 %v1903
          %v3448 = vunpack.c.l.b16 %v1904
          %v3449 = vunpack.c.h.b16 %v1904
          %v3450 = vunpack.c.l.b16 %v1905
          %v3451 = vunpack.c.h.b16 %v1905
          %v3452 = vunpack.c.l.b16 %v1906
          %v3453 = vunpack.c.h.b16 %v1906
          %v3454 = vunpack.c.l.b16 %v1907
          %v3455 = vunpack.c.h.b16 %v1907
          %v3456 = vunpack.c.l.b16 %v1908
          %v3457 = vunpack.c.h.b16 %v1908
          %v3458 = vunpack.c.l.b16 %v1909
          %v3459 = vunpack.c.h.b16 %v1909
          %v3460 = vunpack.c.l.b16 %v1910
          %v3461 = vunpack.c.h.b16 %v1910
          %v3462 = vunpack.c.l.b16 %v1911
          %v3463 = vunpack.c.h.b16 %v1911
          %v3464 = vunpack.c.l.b16 %v1912
          %v3465 = vunpack.c.h.b16 %v1912
          %v3466 = vunpack.c.l.b16 %v1913
          %v3467 = vunpack.c.h.b16 %v1913
          %v3468 = vunpack.c.l.b16 %v1914
          %v3469 = vunpack.c.h.b16 %v1914
          %v3470 = vunpack.c.l.b16 %v1915
          %v3471 = vunpack.c.h.b16 %v1915
          %v3472 = vunpack.c.l.b16 %v1916
          %v3473 = vunpack.c.h.b16 %v1916
          %v3474 = vunpack.c.l.b16 %v1917
          %v3475 = vunpack.c.h.b16 %v1917
          %v3476 = vunpack.c.l.b16 %v1918
          %v3477 = vunpack.c.h.b16 %v1918
          %v3478 = vunpack.c.l.b16 %v1919
          %v3479 = vunpack.c.h.b16 %v1919
          %v3480 = vunpack.c.l.b16 %v1920
          %v3481 = vunpack.c.h.b16 %v1920
          %v3482 = vunpack.c.l.b16 %v1921
          %v3483 = vunpack.c.h.b16 %v1921
          %v3484 = vunpack.c.l.b16 %v1922
          %v3485 = vunpack.c.h.b16 %v1922
          %v3486 = vunpack.c.l.b16 %v1923
          %v3487 = vunpack.c.h.b16 %v1923
          %v3488 = vunpack.c.l.b16 %v1924
          %v3489 = vunpack.c.h.b16 %v1924
          %v3490 = vunpack.c.l.b16 %v1925
          %v3491 = vunpack.c.h.b16 %v1925
          %v3492 = vunpack.c.l.b16 %v1926
          %v3493 = vunpack.c.h.b16 %v1926
          %v3494 = vunpack.c.l.b16 %v1927
          %v3495 = vunpack.c.h.b16 %v1927
          %v3496 = vunpack.c.l.b16 %v1928
          %v3497 = vunpack.c.h.b16 %v1928
          %v3498 = vunpack.c.l.b16 %v1929
          %v3499 = vunpack.c.h.b16 %v1929
          %v3500 = vunpack.c.l.b16 %v1930
          %v3501 = vunpack.c.h.b16 %v1930
          %v3502 = vunpack.c.l.b16 %v1931
          %v3503 = vunpack.c.h.b16 %v1931
          %v3504 = vunpack.c.l.b16 %v1932
          %v3505 = vunpack.c.h.b16 %v1932
          %v3506 = vunpack.c.l.b16 %v1933
          %v3507 = vunpack.c.h.b16 %v1933
          %v3508 = vunpack.c.l.b16 %v1934
          %v3509 = vunpack.c.h.b16 %v1934
          %v3510 = vunpack.c.l.b16 %v1935
          %v3511 = vunpack.c.h.b16 %v1935
          %v3512 = vunpack.c.l.b16 %v1936
          %v3513 = vunpack.c.h.b16 %v1936
          %v3514 = vunpack.c.l.b16 %v1937
          %v3515 = vunpack.c.h.b16 %v1937
          %v3516 = vpack.c.b16 %v2500, %v2492
          %v3517 = vpack.c.b16 %v2501, %v2493
          %v3518 = vpack.c.b16 %v2502, %v2494
          %v3519 = vpack.c.b16 %v2503, %v2495
          %v3520 = vpack.c.b16 %v2504, %v2496
          %v3521 = vpack.c.b16 %v2505, %v2497
          %v3522 = vpack.c.b16 %v2506, %v2498
          %v3523 = vpack.c.b16 %v2507, %v2499
          %v3524 = vpack.c.b16 %v2516, %v2508
          %v3525 = vpack.c.b16 %v2517, %v2509
          %v3526 = vpack.c.b16 %v2518, %v2510
          %v3527 = vpack.c.b16 %v2519, %v2511
          %v3528 = vpack.c.b16 %v2520, %v2512
          %v3529 = vpack.c.b16 %v2521, %v2513
          %v3530 = vpack.c.b16 %v2522, %v2514
          %v3531 = vpack.c.b16 %v2523, %v2515
          %v3532 = vpack.c.b16 %v2532, %v2524
          %v3533 = vpack.c.b16 %v2533, %v2525
          %v3534 = vpack.c.b16 %v2534, %v2526
          %v3535 = vpack.c.b16 %v2535, %v2527
          %v3536 = vpack.c.b16 %v2536, %v2528
          %v3537 = vpack.c.b16 %v2537, %v2529
          %v3538 = vpack.c.b16 %v2538, %v2530
          %v3539 = vpack.c.b16 %v2539, %v2531
          %v3540 = vpack.c.b16 %v2548, %v2540
          %v3541 = vpack.c.b16 %v2549, %v2541
          %v3542 = vpack.c.b16 %v2550, %v2542
          %v3543 = vpack.c.b16 %v2551, %v2543
          %v3544 = vpack.c.b16 %v2552, %v2544
          %v3545 = vpack.c.b16 %v2553, %v2545
          %v3546 = vpack.c.b16 %v2554, %v2546
          %v3547 = vpack.c.b16 %v2555, %v2547
          %v3548 = vpack.c.b16 %v2564, %v2556
          %v3549 = vpack.c.b16 %v2565, %v2557
          %v3550 = vpack.c.b16 %v2566, %v2558
          %v3551 = vpack.c.b16 %v2567, %v2559
          %v3552 = vpack.c.b16 %v2568, %v2560
          %v3553 = vpack.c.b16 %v2569, %v2561
          %v3554 = vpack.c.b16 %v2570, %v2562
          %v3555 = vpack.c.b16 %v2571, %v2563
          %v3556 = vpack.c.b16 %v2580, %v2572
          %v3557 = vpack.c.b16 %v2581, %v2573
          %v3558 = vpack.c.b16 %v2582, %v2574
          %v3559 = vpack.c.b16 %v2583, %v2575
          %v3560 = vpack.c.b16 %v2584, %v2576
          %v3561 = vpack.c.b16 %v2585, %v2577
          %v3562 = vpack.c.b16 %v2586, %v2578
          %v3563 = vpack.c.b16 %v2587, %v2579
          %v3564 = vpack.c.b16 %v2596, %v2588
          %v3565 = vpack.c.b16 %v2597, %v2589
          %v3566 = vpack.c.b16 %v2598, %v2590
          %v3567 = vpack.c.b16 %v2599, %v2591
          %v3568 = vpack.c.b16 %v2600, %v2592
          %v3569 = vpack.c.b16 %v2601, %v2593
          %v3570 = vpack.c.b16 %v2602, %v2594
          %v3571 = vpack.c.b16 %v2603, %v2595
          %v3572 = vpack.c.b16 %v2612, %v2604
          %v3573 = vpack.c.b16 %v2613, %v2605
          %v3574 = vpack.c.b16 %v2614, %v2606
          %v3575 = vpack.c.b16 %v2615, %v2607
          %v3576 = vpack.c.b16 %v2616, %v2608
          %v3577 = vpack.c.b16 %v2617, %v2609
          %v3578 = vpack.c.b16 %v2618, %v2610
          %v3579 = vpack.c.b16 %v2619, %v2611
          %v3580 = vpack.c.b16 %v2628, %v2620
          %v3581 = vpack.c.b16 %v2629, %v2621
          %v3582 = vpack.c.b16 %v2630, %v2622
          %v3583 = vpack.c.b16 %v2631, %v2623
          %v3584 = vpack.c.b16 %v2632, %v2624
          %v3585 = vpack.c.b16 %v2633, %v2625
          %v3586 = vpack.c.b16 %v2634, %v2626
          %v3587 = vpack.c.b16 %v2635, %v2627
          %v3588 = vpack.c.b16 %v2644, %v2636
          %v3589 = vpack.c.b16 %v2645, %v2637
          %v3590 = vpack.c.b16 %v2646, %v2638
          %v3591 = vpack.c.b16 %v2647, %v2639
          %v3592 = vpack.c.b16 %v2648, %v2640
          %v3593 = vpack.c.b16 %v2649, %v2641
          %v3594 = vpack.c.b16 %v2650, %v2642
          %v3595 = vpack.c.b16 %v2651, %v2643
          %v3596 = vpack.c.b16 %v2660, %v2652
          %v3597 = vpack.c.b16 %v2661, %v2653
          %v3598 = vpack.c.b16 %v2662, %v2654
          %v3599 = vpack.c.b16 %v2663, %v2655
          %v3600 = vpack.c.b16 %v2664, %v2656
          %v3601 = vpack.c.b16 %v2665, %v2657
          %v3602 = vpack.c.b16 %v2666, %v2658
          %v3603 = vpack.c.b16 %v2667, %v2659
          %v3604 = vpack.c.b16 %v2676, %v2668
          %v3605 = vpack.c.b16 %v2677, %v2669
          %v3606 = vpack.c.b16 %v2678, %v2670
          %v3607 = vpack.c.b16 %v2679, %v2671
          %v3608 = vpack.c.b16 %v2680, %v2672
          %v3609 = vpack.c.b16 %v2681, %v2673
          %v3610 = vpack.c.b16 %v2682, %v2674
          %v3611 = vpack.c.b16 %v2683, %v2675
          %v3612 = vpack.c.b16 %v2692, %v2684
          %v3613 = vpack.c.b16 %v2693, %v2685
          %v3614 = vpack.c.b16 %v2694, %v2686
          %v3615 = vpack.c.b16 %v2695, %v2687
          %v3616 = vpack.c.b16 %v2696, %v2688
          %v3617 = vpack.c.b16 %v2697, %v2689
          %v3618 = vpack.c.b16 %v2698, %v2690
          %v3619 = vpack.c.b16 %v2699, %v2691
          %v3620 = vpack.c.b16 %v2708, %v2700
          %v3621 = vpack.c.b16 %v2709, %v2701
          %v3622 = vpack.c.b16 %v2710, %v2702
          %v3623 = vpack.c.b16 %v2711, %v2703
          %v3624 = vpack.c.b16 %v2712, %v2704
          %v3625 = vpack.c.b16 %v2713, %v2705
          %v3626 = vpack.c.b16 %v2714, %v2706
          %v3627 = vpack.c.b16 %v2715, %v2707
          %v3628 = vpack.c.b16 %v2724, %v2716
          %v3629 = vpack.c.b16 %v2725, %v2717
          %v3630 = vpack.c.b16 %v2726, %v2718
          %v3631 = vpack.c.b16 %v2727, %v2719
          %v3632 = vpack.c.b16 %v2728, %v2720
          %v3633 = vpack.c.b16 %v2729, %v2721
          %v3634 = vpack.c.b16 %v2730, %v2722
          %v3635 = vpack.c.b16 %v2731, %v2723
          %v3636 = vpack.c.b16 %v2740, %v2732
          %v3637 = vpack.c.b16 %v2741, %v2733
          %v3638 = vpack.c.b16 %v2742, %v2734
          %v3639 = vpack.c.b16 %v2743, %v2735
          %v3640 = vpack.c.b16 %v2744, %v2736
          %v3641 = vpack.c.b16 %v2745, %v2737
          %v3642 = vpack.c.b16 %v2746, %v2738
          %v3643 = vpack.c.b16 %v2747, %v2739
          %v3644 = vpack.c.b16 %v2756, %v2748
          %v3645 = vpack.c.b16 %v2757, %v2749
          %v3646 = vpack.c.b16 %v2758, %v2750
          %v3647 = vpack.c.b16 %v2759, %v2751
          %v3648 = vpack.c.b16 %v2760, %v2752
          %v3649 = vpack.c.b16 %v2761, %v2753
          %v3650 = vpack.c.b16 %v2762, %v2754
          %v3651 = vpack.c.b16 %v2763, %v2755
          %v3652 = vpack.c.b16 %v2772, %v2764
          %v3653 = vpack.c.b16 %v2773, %v2765
          %v3654 = vpack.c.b16 %v2774, %v2766
          %v3655 = vpack.c.b16 %v2775, %v2767
          %v3656 = vpack.c.b16 %v2776, %v2768
          %v3657 = vpack.c.b16 %v2777, %v2769
          %v3658 = vpack.c.b16 %v2778, %v2770
          %v3659 = vpack.c.b16 %v2779, %v2771
          %v3660 = vpack.c.b16 %v2788, %v2780
          %v3661 = vpack.c.b16 %v2789, %v2781
          %v3662 = vpack.c.b16 %v2790, %v2782
          %v3663 = vpack.c.b16 %v2791, %v2783
          %v3664 = vpack.c.b16 %v2792, %v2784
          %v3665 = vpack.c.b16 %v2793, %v2785
          %v3666 = vpack.c.b16 %v2794, %v2786
          %v3667 = vpack.c.b16 %v2795, %v2787
          %v3668 = vpack.c.b16 %v2804, %v2796
          %v3669 = vpack.c.b16 %v2805, %v2797
          %v3670 = vpack.c.b16 %v2806, %v2798
          %v3671 = vpack.c.b16 %v2807, %v2799
          %v3672 = vpack.c.b16 %v2808, %v2800
          %v3673 = vpack.c.b16 %v2809, %v2801
          %v3674 = vpack.c.b16 %v2810, %v2802
          %v3675 = vpack.c.b16 %v2811, %v2803
          %v3676 = vpack.c.b16 %v2820, %v2812
          %v3677 = vpack.c.b16 %v2821, %v2813
          %v3678 = vpack.c.b16 %v2822, %v2814
          %v3679 = vpack.c.b16 %v2823, %v2815
          %v3680 = vpack.c.b16 %v2824, %v2816
          %v3681 = vpack.c.b16 %v2825, %v2817
          %v3682 = vpack.c.b16 %v2826, %v2818
          %v3683 = vpack.c.b16 %v2827, %v2819
          %v3684 = vpack.c.b16 %v2836, %v2828
          %v3685 = vpack.c.b16 %v2837, %v2829
          %v3686 = vpack.c.b16 %v2838, %v2830
          %v3687 = vpack.c.b16 %v2839, %v2831
          %v3688 = vpack.c.b16 %v2840, %v2832
          %v3689 = vpack.c.b16 %v2841, %v2833
          %v3690 = vpack.c.b16 %v2842, %v2834
          %v3691 = vpack.c.b16 %v2843, %v2835
          %v3692 = vpack.c.b16 %v2852, %v2844
          %v3693 = vpack.c.b16 %v2853, %v2845
          %v3694 = vpack.c.b16 %v2854, %v2846
          %v3695 = vpack.c.b16 %v2855, %v2847
          %v3696 = vpack.c.b16 %v2856, %v2848
          %v3697 = vpack.c.b16 %v2857, %v2849
          %v3698 = vpack.c.b16 %v2858, %v2850
          %v3699 = vpack.c.b16 %v2859, %v2851
          %v3700 = vpack.c.b16 %v2868, %v2860
          %v3701 = vpack.c.b16 %v2869, %v2861
          %v3702 = vpack.c.b16 %v2870, %v2862
          %v3703 = vpack.c.b16 %v2871, %v2863
          %v3704 = vpack.c.b16 %v2872, %v2864
          %v3705 = vpack.c.b16 %v2873, %v2865
          %v3706 = vpack.c.b16 %v2874, %v2866
          %v3707 = vpack.c.b16 %v2875, %v2867
          %v3708 = vpack.c.b16 %v2884, %v2876
          %v3709 = vpack.c.b16 %v2885, %v2877
          %v3710 = vpack.c.b16 %v2886, %v2878
          %v3711 = vpack.c.b16 %v2887, %v2879
          %v3712 = vpack.c.b16 %v2888, %v2880
          %v3713 = vpack.c.b16 %v2889, %v2881
          %v3714 = vpack.c.b16 %v2890, %v2882
          %v3715 = vpack.c.b16 %v2891, %v2883
          %v3716 = vpack.c.b16 %v2900, %v2892
          %v3717 = vpack.c.b16 %v2901, %v2893
          %v3718 = vpack.c.b16 %v2902, %v2894
          %v3719 = vpack.c.b16 %v2903, %v2895
          %v3720 = vpack.c.b16 %v2904, %v2896
          %v3721 = vpack.c.b16 %v2905, %v2897
          %v3722 = vpack.c.b16 %v2906, %v2898
          %v3723 = vpack.c.b16 %v2907, %v2899
          %v3724 = vpack.c.b16 %v2916, %v2908
          %v3725 = vpack.c.b16 %v2917, %v2909
          %v3726 = vpack.c.b16 %v2918, %v2910
          %v3727 = vpack.c.b16 %v2919, %v2911
          %v3728 = vpack.c.b16 %v2920, %v2912
          %v3729 = vpack.c.b16 %v2921, %v2913
          %v3730 = vpack.c.b16 %v2922, %v2914
          %v3731 = vpack.c.b16 %v2923, %v2915
          %v3732 = vpack.c.b16 %v2932, %v2924
          %v3733 = vpack.c.b16 %v2933, %v2925
          %v3734 = vpack.c.b16 %v2934, %v2926
          %v3735 = vpack.c.b16 %v2935, %v2927
          %v3736 = vpack.c.b16 %v2936, %v2928
          %v3737 = vpack.c.b16 %v2937, %v2929
          %v3738 = vpack.c.b16 %v2938, %v2930
          %v3739 = vpack.c.b16 %v2939, %v2931
          %v3740 = vpack.c.b16 %v2948, %v2940
          %v3741 = vpack.c.b16 %v2949, %v2941
          %v3742 = vpack.c.b16 %v2950, %v2942
          %v3743 = vpack.c.b16 %v2951, %v2943
          %v3744 = vpack.c.b16 %v2952, %v2944
          %v3745 = vpack.c.b16 %v2953, %v2945
          %v3746 = vpack.c.b16 %v2954, %v2946
          %v3747 = vpack.c.b16 %v2955, %v2947
          %v3748 = vpack.c.b16 %v2964, %v2956
          %v3749 = vpack.c.b16 %v2965, %v2957
          %v3750 = vpack.c.b16 %v2966, %v2958
          %v3751 = vpack.c.b16 %v2967, %v2959
          %v3752 = vpack.c.b16 %v2968, %v2960
          %v3753 = vpack.c.b16 %v2969, %v2961
          %v3754 = vpack.c.b16 %v2970, %v2962
          %v3755 = vpack.c.b16 %v2971, %v2963
          %v3756 = vpack.c.b16 %v2980, %v2972
          %v3757 = vpack.c.b16 %v2981, %v2973
          %v3758 = vpack.c.b16 %v2982, %v2974
          %v3759 = vpack.c.b16 %v2983, %v2975
          %v3760 = vpack.c.b16 %v2984, %v2976
          %v3761 = vpack.c.b16 %v2985, %v2977
          %v3762 = vpack.c.b16 %v2986, %v2978
          %v3763 = vpack.c.b16 %v2987, %v2979
          %v3764 = vpack.c.b16 %v2996, %v2988
          %v3765 = vpack.c.b16 %v2997, %v2989
          %v3766 = vpack.c.b16 %v2998, %v2990
          %v3767 = vpack.c.b16 %v2999, %v2991
          %v3768 = vpack.c.b16 %v3000, %v2992
          %v3769 = vpack.c.b16 %v3001, %v2993
          %v3770 = vpack.c.b16 %v3002, %v2994
          %v3771 = vpack.c.b16 %v3003, %v2995
          %v3772 = vpack.c.b16 %v3012, %v3004
          %v3773 = vpack.c.b16 %v3013, %v3005
          %v3774 = vpack.c.b16 %v3014, %v3006
          %v3775 = vpack.c.b16 %v3015, %v3007
          %v3776 = vpack.c.b16 %v3016, %v3008
          %v3777 = vpack.c.b16 %v3017, %v3009
          %v3778 = vpack.c.b16 %v3018, %v3010
          %v3779 = vpack.c.b16 %v3019, %v3011
          %v3780 = vpack.c.b16 %v3028, %v3020
          %v3781 = vpack.c.b16 %v3029, %v3021
          %v3782 = vpack.c.b16 %v3030, %v3022
          %v3783 = vpack.c.b16 %v3031, %v3023
          %v3784 = vpack.c.b16 %v3032, %v3024
          %v3785 = vpack.c.b16 %v3033, %v3025
          %v3786 = vpack.c.b16 %v3034, %v3026
          %v3787 = vpack.c.b16 %v3035, %v3027
          %v3788 = vpack.c.b16 %v3044, %v3036
          %v3789 = vpack.c.b16 %v3045, %v3037
          %v3790 = vpack.c.b16 %v3046, %v3038
          %v3791 = vpack.c.b16 %v3047, %v3039
          %v3792 = vpack.c.b16 %v3048, %v3040
          %v3793 = vpack.c.b16 %v3049, %v3041
          %v3794 = vpack.c.b16 %v3050, %v3042
          %v3795 = vpack.c.b16 %v3051, %v3043
          %v3796 = vpack.c.b16 %v3060, %v3052
          %v3797 = vpack.c.b16 %v3061, %v3053
          %v3798 = vpack.c.b16 %v3062, %v3054
          %v3799 = vpack.c.b16 %v3063, %v3055
          %v3800 = vpack.c.b16 %v3064, %v3056
          %v3801 = vpack.c.b16 %v3065, %v3057
          %v3802 = vpack.c.b16 %v3066, %v3058
          %v3803 = vpack.c.b16 %v3067, %v3059
          %v3804 = vpack.c.b16 %v3076, %v3068
          %v3805 = vpack.c.b16 %v3077, %v3069
          %v3806 = vpack.c.b16 %v3078, %v3070
          %v3807 = vpack.c.b16 %v3079, %v3071
          %v3808 = vpack.c.b16 %v3080, %v3072
          %v3809 = vpack.c.b16 %v3081, %v3073
          %v3810 = vpack.c.b16 %v3082, %v3074
          %v3811 = vpack.c.b16 %v3083, %v3075
          %v3812 = vpack.c.b16 %v3092, %v3084
          %v3813 = vpack.c.b16 %v3093, %v3085
          %v3814 = vpack.c.b16 %v3094, %v3086
          %v3815 = vpack.c.b16 %v3095, %v3087
          %v3816 = vpack.c.b16 %v3096, %v3088
          %v3817 = vpack.c.b16 %v3097, %v3089
          %v3818 = vpack.c.b16 %v3098, %v3090
          %v3819 = vpack.c.b16 %v3099, %v3091
          %v3820 = vpack.c.b16 %v3108, %v3100
          %v3821 = vpack.c.b16 %v3109, %v3101
          %v3822 = vpack.c.b16 %v3110, %v3102
          %v3823 = vpack.c.b16 %v3111, %v3103
          %v3824 = vpack.c.b16 %v3112, %v3104
          %v3825 = vpack.c.b16 %v3113, %v3105
          %v3826 = vpack.c.b16 %v3114, %v3106
          %v3827 = vpack.c.b16 %v3115, %v3107
          %v3828 = vpack.c.b16 %v3124, %v3116
          %v3829 = vpack.c.b16 %v3125, %v3117
          %v3830 = vpack.c.b16 %v3126, %v3118
          %v3831 = vpack.c.b16 %v3127, %v3119
          %v3832 = vpack.c.b16 %v3128, %v3120
          %v3833 = vpack.c.b16 %v3129, %v3121
          %v3834 = vpack.c.b16 %v3130, %v3122
          %v3835 = vpack.c.b16 %v3131, %v3123
          %v3836 = vpack.c.b16 %v3140, %v3132
          %v3837 = vpack.c.b16 %v3141, %v3133
          %v3838 = vpack.c.b16 %v3142, %v3134
          %v3839 = vpack.c.b16 %v3143, %v3135
          %v3840 = vpack.c.b16 %v3144, %v3136
          %v3841 = vpack.c.b16 %v3145, %v3137
          %v3842 = vpack.c.b16 %v3146, %v3138
          %v3843 = vpack.c.b16 %v3147, %v3139
          %v3844 = vpack.c.b16 %v3156, %v3148
          %v3845 = vpack.c.b16 %v3157, %v3149
          %v3846 = vpack.c.b16 %v3158, %v3150
          %v3847 = vpack.c.b16 %v3159, %v3151
          %v3848 = vpack.c.b16 %v3160, %v3152
          %v3849 = vpack.c.b16 %v3161, %v3153
          %v3850 = vpack.c.b16 %v3162, %v3154
          %v3851 = vpack.c.b16 %v3163, %v3155
          %v3852 = vpack.c.b16 %v3172, %v3164
          %v3853 = vpack.c.b16 %v3173, %v3165
          %v3854 = vpack.c.b16 %v3174, %v3166
          %v3855 = vpack.c.b16 %v3175, %v3167
          %v3856 = vpack.c.b16 %v3176, %v3168
          %v3857 = vpack.c.b16 %v3177, %v3169
          %v3858 = vpack.c.b16 %v3178, %v3170
          %v3859 = vpack.c.b16 %v3179, %v3171
          %v3860 = vpack.c.b16 %v3188, %v3180
          %v3861 = vpack.c.b16 %v3189, %v3181
          %v3862 = vpack.c.b16 %v3190, %v3182
          %v3863 = vpack.c.b16 %v3191, %v3183
          %v3864 = vpack.c.b16 %v3192, %v3184
          %v3865 = vpack.c.b16 %v3193, %v3185
          %v3866 = vpack.c.b16 %v3194, %v3186
          %v3867 = vpack.c.b16 %v3195, %v3187
          %v3868 = vpack.c.b16 %v3204, %v3196
          %v3869 = vpack.c.b16 %v3205, %v3197
          %v3870 = vpack.c.b16 %v3206, %v3198
          %v3871 = vpack.c.b16 %v3207, %v3199
          %v3872 = vpack.c.b16 %v3208, %v3200
          %v3873 = vpack.c.b16 %v3209, %v3201
          %v3874 = vpack.c.b16 %v3210, %v3202
          %v3875 = vpack.c.b16 %v3211, %v3203
          %v3876 = vpack.c.b16 %v3220, %v3212
          %v3877 = vpack.c.b16 %v3221, %v3213
          %v3878 = vpack.c.b16 %v3222, %v3214
          %v3879 = vpack.c.b16 %v3223, %v3215
          %v3880 = vpack.c.b16 %v3224, %v3216
          %v3881 = vpack.c.b16 %v3225, %v3217
          %v3882 = vpack.c.b16 %v3226, %v3218
          %v3883 = vpack.c.b16 %v3227, %v3219
          %v3884 = vpack.c.b16 %v3236, %v3228
          %v3885 = vpack.c.b16 %v3237, %v3229
          %v3886 = vpack.c.b16 %v3238, %v3230
          %v3887 = vpack.c.b16 %v3239, %v3231
          %v3888 = vpack.c.b16 %v3240, %v3232
          %v3889 = vpack.c.b16 %v3241, %v3233
          %v3890 = vpack.c.b16 %v3242, %v3234
          %v3891 = vpack.c.b16 %v3243, %v3235
          %v3892 = vpack.c.b16 %v3252, %v3244
          %v3893 = vpack.c.b16 %v3253, %v3245
          %v3894 = vpack.c.b16 %v3254, %v3246
          %v3895 = vpack.c.b16 %v3255, %v3247
          %v3896 = vpack.c.b16 %v3256, %v3248
          %v3897 = vpack.c.b16 %v3257, %v3249
          %v3898 = vpack.c.b16 %v3258, %v3250
          %v3899 = vpack.c.b16 %v3259, %v3251
          %v3900 = vpack.c.b16 %v3268, %v3260
          %v3901 = vpack.c.b16 %v3269, %v3261
          %v3902 = vpack.c.b16 %v3270, %v3262
          %v3903 = vpack.c.b16 %v3271, %v3263
          %v3904 = vpack.c.b16 %v3272, %v3264
          %v3905 = vpack.c.b16 %v3273, %v3265
          %v3906 = vpack.c.b16 %v3274, %v3266
          %v3907 = vpack.c.b16 %v3275, %v3267
          %v3908 = vpack.c.b16 %v3284, %v3276
          %v3909 = vpack.c.b16 %v3285, %v3277
          %v3910 = vpack.c.b16 %v3286, %v3278
          %v3911 = vpack.c.b16 %v3287, %v3279
          %v3912 = vpack.c.b16 %v3288, %v3280
          %v3913 = vpack.c.b16 %v3289, %v3281
          %v3914 = vpack.c.b16 %v3290, %v3282
          %v3915 = vpack.c.b16 %v3291, %v3283
          %v3916 = vpack.c.b16 %v3300, %v3292
          %v3917 = vpack.c.b16 %v3301, %v3293
          %v3918 = vpack.c.b16 %v3302, %v3294
          %v3919 = vpack.c.b16 %v3303, %v3295
          %v3920 = vpack.c.b16 %v3304, %v3296
          %v3921 = vpack.c.b16 %v3305, %v3297
          %v3922 = vpack.c.b16 %v3306, %v3298
          %v3923 = vpack.c.b16 %v3307, %v3299
          %v3924 = vpack.c.b16 %v3316, %v3308
          %v3925 = vpack.c.b16 %v3317, %v3309
          %v3926 = vpack.c.b16 %v3318, %v3310
          %v3927 = vpack.c.b16 %v3319, %v3311
          %v3928 = vpack.c.b16 %v3320, %v3312
          %v3929 = vpack.c.b16 %v3321, %v3313
          %v3930 = vpack.c.b16 %v3322, %v3314
          %v3931 = vpack.c.b16 %v3323, %v3315
          %v3932 = vpack.c.b16 %v3332, %v3324
          %v3933 = vpack.c.b16 %v3333, %v3325
          %v3934 = vpack.c.b16 %v3334, %v3326
          %v3935 = vpack.c.b16 %v3335, %v3327
          %v3936 = vpack.c.b16 %v3336, %v3328
          %v3937 = vpack.c.b16 %v3337, %v3329
          %v3938 = vpack.c.b16 %v3338, %v3330
          %v3939 = vpack.c.b16 %v3339, %v3331
          %v3940 = vpack.c.b16 %v3348, %v3340
          %v3941 = vpack.c.b16 %v3349, %v3341
          %v3942 = vpack.c.b16 %v3350, %v3342
          %v3943 = vpack.c.b16 %v3351, %v3343
          %v3944 = vpack.c.b16 %v3352, %v3344
          %v3945 = vpack.c.b16 %v3353, %v3345
          %v3946 = vpack.c.b16 %v3354, %v3346
          %v3947 = vpack.c.b16 %v3355, %v3347
          %v3948 = vpack.c.b16 %v3364, %v3356
          %v3949 = vpack.c.b16 %v3365, %v3357
          %v3950 = vpack.c.b16 %v3366, %v3358
          %v3951 = vpack.c.b16 %v3367, %v3359
          %v3952 = vpack.c.b16 %v3368, %v3360
          %v3953 = vpack.c.b16 %v3369, %v3361
          %v3954 = vpack.c.b16 %v3370, %v3362
          %v3955 = vpack.c.b16 %v3371, %v3363
          %v3956 = vpack.c.b16 %v3380, %v3372
          %v3957 = vpack.c.b16 %v3381, %v3373
          %v3958 = vpack.c.b16 %v3382, %v3374
          %v3959 = vpack.c.b16 %v3383, %v3375
          %v3960 = vpack.c.b16 %v3384, %v3376
          %v3961 = vpack.c.b16 %v3385, %v3377
          %v3962 = vpack.c.b16 %v3386, %v3378
          %v3963 = vpack.c.b16 %v3387, %v3379
          %v3964 = vpack.c.b16 %v3396, %v3388
          %v3965 = vpack.c.b16 %v3397, %v3389
          %v3966 = vpack.c.b16 %v3398, %v3390
          %v3967 = vpack.c.b16 %v3399, %v3391
          %v3968 = vpack.c.b16 %v3400, %v3392
          %v3969 = vpack.c.b16 %v3401, %v3393
          %v3970 = vpack.c.b16 %v3402, %v3394
          %v3971 = vpack.c.b16 %v3403, %v3395
          %v3972 = vpack.c.b16 %v3412, %v3404
          %v3973 = vpack.c.b16 %v3413, %v3405
          %v3974 = vpack.c.b16 %v3414, %v3406
          %v3975 = vpack.c.b16 %v3415, %v3407
          %v3976 = vpack.c.b16 %v3416, %v3408
          %v3977 = vpack.c.b16 %v3417, %v3409
          %v3978 = vpack.c.b16 %v3418, %v3410
          %v3979 = vpack.c.b16 %v3419, %v3411
          %v3980 = vpack.c.b16 %v3428, %v3420
          %v3981 = vpack.c.b16 %v3429, %v3421
          %v3982 = vpack.c.b16 %v3430, %v3422
          %v3983 = vpack.c.b16 %v3431, %v3423
          %v3984 = vpack.c.b16 %v3432, %v3424
          %v3985 = vpack.c.b16 %v3433, %v3425
          %v3986 = vpack.c.b16 %v3434, %v3426
          %v3987 = vpack.c.b16 %v3435, %v3427
          %v3988 = vpack.c.b16 %v3444, %v3436
          %v3989 = vpack.c.b16 %v3445, %v3437
          %v3990 = vpack.c.b16 %v3446, %v3438
          %v3991 = vpack.c.b16 %v3447, %v3439
          %v3992 = vpack.c.b16 %v3448, %v3440
          %v3993 = vpack.c.b16 %v3449, %v3441
          %v3994 = vpack.c.b16 %v3450, %v3442
          %v3995 = vpack.c.b16 %v3451, %v3443
          %v3996 = vpack.c.b16 %v3460, %v3452
          %v3997 = vpack.c.b16 %v3461, %v3453
          %v3998 = vpack.c.b16 %v3462, %v3454
          %v3999 = vpack.c.b16 %v3463, %v3455
          %v4000 = vpack.c.b16 %v3464, %v3456
          %v4001 = vpack.c.b16 %v3465, %v3457
          %v4002 = vpack.c.b16 %v3466, %v3458
          %v4003 = vpack.c.b16 %v3467, %v3459
          %v4004 = vpack.c.b16 %v3476, %v3468
          %v4005 = vpack.c.b16 %v3477, %v3469
          %v4006 = vpack.c.b16 %v3478, %v3470
          %v4007 = vpack.c.b16 %v3479, %v3471
          %v4008 = vpack.c.b16 %v3480, %v3472
          %v4009 = vpack.c.b16 %v3481, %v3473
          %v4010 = vpack.c.b16 %v3482, %v3474
          %v4011 = vpack.c.b16 %v3483, %v3475
          %v4012 = vpack.c.b16 %v3492, %v3484
          %v4013 = vpack.c.b16 %v3493, %v3485
          %v4014 = vpack.c.b16 %v3494, %v3486
          %v4015 = vpack.c.b16 %v3495, %v3487
          %v4016 = vpack.c.b16 %v3496, %v3488
          %v4017 = vpack.c.b16 %v3497, %v3489
          %v4018 = vpack.c.b16 %v3498, %v3490
          %v4019 = vpack.c.b16 %v3499, %v3491
          %v4020 = vpack.c.b16 %v3508, %v3500
          %v4021 = vpack.c.b16 %v3509, %v3501
          %v4022 = vpack.c.b16 %v3510, %v3502
          %v4023 = vpack.c.b16 %v3511, %v3503
          %v4024 = vpack.c.b16 %v3512, %v3504
          %v4025 = vpack.c.b16 %v3513, %v3505
          %v4026 = vpack.c.b16 %v3514, %v3506
          %v4027 = vpack.c.b16 %v3515, %v3507
          %4540 = vmatprep.subr.bf16.mxu0 %v3517
          %4541 = vmatpush1.bf16.msra.mxu0 %v3516
          %4542 = vmatprep.subr.bf16.mxu0 %v3525
          %4543 = vmatpush1.bf16.msra.mxu0 %v3524
          %4544 = vmatprep.subr.bf16.mxu0 %v3533
          %4545 = vmatpush1.bf16.msra.mxu0 %v3532
          %4546 = vmatprep.subr.bf16.mxu0 %v3541
          %4547 = vmatpush1.bf16.msra.mxu0 %v3540
          %4548 = vmatprep.subr.bf16.mxu0 %v3549
          %4549 = vmatpush1.bf16.msra.mxu0 %v3548
          %4550 = vmatprep.subr.bf16.mxu0 %v3557
          %4551 = vmatpush1.bf16.msra.mxu0 %v3556
          %4552 = vmatprep.subr.bf16.mxu0 %v3565
          %4553 = vmatpush1.bf16.msra.mxu0 %v3564
          %4554 = vmatprep.subr.bf16.mxu0 %v3573
          %4555 = vmatpush1.bf16.msra.mxu0 %v3572
          %4556 = vmatprep.subr.bf16.mxu0 %v3581
          %4557 = vmatpush1.bf16.msra.mxu0 %v3580
          %4558 = vmatprep.subr.bf16.mxu0 %v3589
          %4559 = vmatpush1.bf16.msra.mxu0 %v3588
          %4560 = vmatprep.subr.bf16.mxu0 %v3597
          %4561 = vmatpush1.bf16.msra.mxu0 %v3596
          %4562 = vmatprep.subr.bf16.mxu0 %v3605
          %4563 = vmatpush1.bf16.msra.mxu0 %v3604
          %4564 = vmatprep.subr.bf16.mxu0 %v3613
          %4565 = vmatpush1.bf16.msra.mxu0 %v3612
          %4566 = vmatprep.subr.bf16.mxu0 %v3621
          %4567 = vmatpush1.bf16.msra.mxu0 %v3620
          %4568 = vmatprep.subr.bf16.mxu0 %v3629
          %4569 = vmatpush1.bf16.msra.mxu0 %v3628
          %4570 = vmatprep.subr.bf16.mxu0 %v3637
          %4571 = vmatpush1.bf16.msra.mxu0 %v3636
          %4572 = vmatprep.mubr.bf16.mxu0 %v1419
          %4573 = vmatmul.mubr.bf16.gmra.mrb[0].mxu0 %v1418
          %v4574 = vpop.f32.mrb[0].mxu0
          %v4575 = vadd.f32 %v1943, %v4574
          %v4576 = vpop.f32.mrb[0].mxu0
          %v4577 = vadd.f32 %v1947, %v4576
          %v4578 = vpop.f32.mrb[0].mxu0
          %v4579 = vpop.f32.mrb[0].mxu0
          %4580 = vdwg.mxu0
          %4581 = vmatprep.subr.bf16.mxu0 %v3645
          %4582 = vmatpush1.bf16.msra.mxu0 %v3644
          %4583 = vmatprep.subr.bf16.mxu0 %v3653
          %4584 = vmatpush1.bf16.msra.mxu0 %v3652
          %4585 = vmatprep.subr.bf16.mxu0 %v3661
          %4586 = vmatpush1.bf16.msra.mxu0 %v3660
          %4587 = vmatprep.subr.bf16.mxu0 %v3669
          %4588 = vmatpush1.bf16.msra.mxu0 %v3668
          %4589 = vmatprep.subr.bf16.mxu0 %v3677
          %4590 = vmatpush1.bf16.msra.mxu0 %v3676
          %4591 = vmatprep.subr.bf16.mxu0 %v3685
          %4592 = vmatpush1.bf16.msra.mxu0 %v3684
          %4593 = vmatprep.subr.bf16.mxu0 %v3693
          %4594 = vmatpush1.bf16.msra.mxu0 %v3692
          %4595 = vmatprep.subr.bf16.mxu0 %v3701
          %4596 = vmatpush1.bf16.msra.mxu0 %v3700
          %4597 = vmatprep.subr.bf16.mxu0 %v3709
          %4598 = vmatpush1.bf16.msra.mxu0 %v3708
          %4599 = vmatprep.subr.bf16.mxu0 %v3717
          %4600 = vmatpush1.bf16.msra.mxu0 %v3716
          %4601 = vmatprep.subr.bf16.mxu0 %v3725
          %4602 = vmatpush1.bf16.msra.mxu0 %v3724
          %4603 = vmatprep.subr.bf16.mxu0 %v3733
          %4604 = vmatpush1.bf16.msra.mxu0 %v3732
          %4605 = vmatprep.subr.bf16.mxu0 %v3741
          %4606 = vmatpush1.bf16.msra.mxu0 %v3740
          %4607 = vmatprep.subr.bf16.mxu0 %v3749
          %4608 = vmatpush1.bf16.msra.mxu0 %v3748
          %4609 = vmatprep.subr.bf16.mxu0 %v3757
          %4610 = vmatpush1.bf16.msra.mxu0 %v3756
          %4611 = vmatprep.subr.bf16.mxu0 %v3765
          %4612 = vmatpush1.bf16.msra.mxu0 %v3764
          %4613 = vmatprep.mubr.bf16.mxu0 %v1421
          %4614 = vmatmul.mubr.bf16.gmra.mrb[0].mxu0 %v1420
          %v4615 = vpop.f32.mrb[0].mxu0
          %v4616 = vadd.f32 %v4575, %v4615
          %v4617 = vpop.f32.mrb[0].mxu0
          %v4618 = vadd.f32 %v4577, %v4617
          %v4619 = vpop.f32.mrb[0].mxu0
          %v4620 = vpop.f32.mrb[0].mxu0
          %4621 = vdwg.mxu0
          %4622 = vmatprep.subr.bf16.mxu0 %v3773
          %4623 = vmatpush1.bf16.msra.mxu0 %v3772
          %4624 = vmatprep.subr.bf16.mxu0 %v3781
          %4625 = vmatpush1.bf16.msra.mxu0 %v3780
          %4626 = vmatprep.subr.bf16.mxu0 %v3789
          %4627 = vmatpush1.bf16.msra.mxu0 %v3788
          %4628 = vmatprep.subr.bf16.mxu0 %v3797
          %4629 = vmatpush1.bf16.msra.mxu0 %v3796
          %4630 = vmatprep.subr.bf16.mxu0 %v3805
          %4631 = vmatpush1.bf16.msra.mxu0 %v3804
          %4632 = vmatprep.subr.bf16.mxu0 %v3813
          %4633 = vmatpush1.bf16.msra.mxu0 %v3812
          %4634 = vmatprep.subr.bf16.mxu0 %v3821
          %4635 = vmatpush1.bf16.msra.mxu0 %v3820
          %4636 = vmatprep.subr.bf16.mxu0 %v3829
          %4637 = vmatpush1.bf16.msra.mxu0 %v3828
          %4638 = vmatprep.subr.bf16.mxu0 %v3837
          %4639 = vmatpush1.bf16.msra.mxu0 %v3836
          %4640 = vmatprep.subr.bf16.mxu0 %v3845
          %4641 = vmatpush1.bf16.msra.mxu0 %v3844
          %4642 = vmatprep.subr.bf16.mxu0 %v3853
          %4643 = vmatpush1.bf16.msra.mxu0 %v3852
          %4644 = vmatprep.subr.bf16.mxu0 %v3861
          %4645 = vmatpush1.bf16.msra.mxu0 %v3860
          %4646 = vmatprep.subr.bf16.mxu0 %v3869
          %4647 = vmatpush1.bf16.msra.mxu0 %v3868
          %4648 = vmatprep.subr.bf16.mxu0 %v3877
          %4649 = vmatpush1.bf16.msra.mxu0 %v3876
          %4650 = vmatprep.subr.bf16.mxu0 %v3885
          %4651 = vmatpush1.bf16.msra.mxu0 %v3884
          %4652 = vmatprep.subr.bf16.mxu0 %v3893
          %4653 = vmatpush1.bf16.msra.mxu0 %v3892
          %4654 = vmatprep.mubr.bf16.mxu0 %v1423
          %4655 = vmatmul.mubr.bf16.gmra.mrb[0].mxu0 %v1422
          %v4656 = vpop.f32.mrb[0].mxu0
          %v4657 = vadd.f32 %v4616, %v4656
          %v4658 = vpop.f32.mrb[0].mxu0
          %v4659 = vadd.f32 %v4618, %v4658
          %v4660 = vpop.f32.mrb[0].mxu0
          %v4661 = vpop.f32.mrb[0].mxu0
          %4662 = vdwg.mxu0
          %4663 = vmatprep.subr.bf16.mxu0 %v3901
          %4664 = vmatpush1.bf16.msra.mxu0 %v3900
          %4665 = vmatprep.subr.bf16.mxu0 %v3909
          %4666 = vmatpush1.bf16.msra.mxu0 %v3908
          %4667 = vmatprep.subr.bf16.mxu0 %v3917
          %4668 = vmatpush1.bf16.msra.mxu0 %v3916
          %4669 = vmatprep.subr.bf16.mxu0 %v3925
          %4670 = vmatpush1.bf16.msra.mxu0 %v3924
          %4671 = vmatprep.subr.bf16.mxu0 %v3933
          %4672 = vmatpush1.bf16.msra.mxu0 %v3932
          %4673 = vmatprep.subr.bf16.mxu0 %v3941
          %4674 = vmatpush1.bf16.msra.mxu0 %v3940
          %4675 = vmatprep.subr.bf16.mxu0 %v3949
          %4676 = vmatpush1.bf16.msra.mxu0 %v3948
          %4677 = vmatprep.subr.bf16.mxu0 %v3957
          %4678 = vmatpush1.bf16.msra.mxu0 %v3956
          %4679 = vmatprep.subr.bf16.mxu0 %v3965
          %4680 = vmatpush1.bf16.msra.mxu0 %v3964
          %4681 = vmatprep.subr.bf16.mxu0 %v3973
          %4682 = vmatpush1.bf16.msra.mxu0 %v3972
          %4683 = vmatprep.subr.bf16.mxu0 %v3981
          %4684 = vmatpush1.bf16.msra.mxu0 %v3980
          %4685 = vmatprep.subr.bf16.mxu0 %v3989
          %4686 = vmatpush1.bf16.msra.mxu0 %v3988
          %4687 = vmatprep.subr.bf16.mxu0 %v3997
          %4688 = vmatpush1.bf16.msra.mxu0 %v3996
          %4689 = vmatprep.subr.bf16.mxu0 %v4005
          %4690 = vmatpush1.bf16.msra.mxu0 %v4004
          %4691 = vmatprep.subr.bf16.mxu0 %v4013
          %4692 = vmatpush1.bf16.msra.mxu0 %v4012
          %4693 = vmatprep.subr.bf16.mxu0 %v4021
          %4694 = vmatpush1.bf16.msra.mxu0 %v4020
          %4695 = vmatprep.mubr.bf16.mxu0 %v1425
          %4696 = vmatmul.mubr.bf16.gmra.mrb[0].mxu0 %v1424
          %v4697 = vpop.f32.mrb[0].mxu0
          %v4698 = vadd.f32 %v4657, %v4697
          %v4699 = vpop.f32.mrb[0].mxu0
          %v4700 = vadd.f32 %v4659, %v4699
          %v4701 = vpop.f32.mrb[0].mxu0
          %v4702 = vpop.f32.mrb[0].mxu0
          %4703 = vdwg.mxu0
          %4704 = vmatprep.subr.bf16.mxu0 %v3519
          %4705 = vmatpush1.bf16.msra.mxu0 %v3518
          %4706 = vmatprep.subr.bf16.mxu0 %v3527
          %4707 = vmatpush1.bf16.msra.mxu0 %v3526
          %4708 = vmatprep.subr.bf16.mxu0 %v3535
          %4709 = vmatpush1.bf16.msra.mxu0 %v3534
          %4710 = vmatprep.subr.bf16.mxu0 %v3543
          %4711 = vmatpush1.bf16.msra.mxu0 %v3542
          %4712 = vmatprep.subr.bf16.mxu0 %v3551
          %4713 = vmatpush1.bf16.msra.mxu0 %v3550
          %4714 = vmatprep.subr.bf16.mxu0 %v3559
          %4715 = vmatpush1.bf16.msra.mxu0 %v3558
          %4716 = vmatprep.subr.bf16.mxu0 %v3567
          %4717 = vmatpush1.bf16.msra.mxu0 %v3566
          %4718 = vmatprep.subr.bf16.mxu0 %v3575
          %4719 = vmatpush1.bf16.msra.mxu0 %v3574
          %4720 = vmatprep.subr.bf16.mxu0 %v3583
          %4721 = vmatpush1.bf16.msra.mxu0 %v3582
          %4722 = vmatprep.subr.bf16.mxu0 %v3591
          %4723 = vmatpush1.bf16.msra.mxu0 %v3590
          %4724 = vmatprep.subr.bf16.mxu0 %v3599
          %4725 = vmatpush1.bf16.msra.mxu0 %v3598
          %4726 = vmatprep.subr.bf16.mxu0 %v3607
          %4727 = vmatpush1.bf16.msra.mxu0 %v3606
          %4728 = vmatprep.subr.bf16.mxu0 %v3615
          %4729 = vmatpush1.bf16.msra.mxu0 %v3614
          %4730 = vmatprep.subr.bf16.mxu0 %v3623
          %4731 = vmatpush1.bf16.msra.mxu0 %v3622
          %4732 = vmatprep.subr.bf16.mxu0 %v3631
          %4733 = vmatpush1.bf16.msra.mxu0 %v3630
          %4734 = vmatprep.subr.bf16.mxu0 %v3639
          %4735 = vmatpush1.bf16.msra.mxu0 %v3638
          %4736 = vmatprep.mubr.bf16.mxu0 %v1419
          %4737 = vmatmul.mubr.bf16.gmra.mrb[0].mxu0 %v1418
          %v4738 = vpop.f32.mrb[0].mxu0
          %v4739 = vadd.f32 %v1951, %v4738
          %v4740 = vpop.f32.mrb[0].mxu0
          %v4741 = vadd.f32 %v1955, %v4740
          %v4742 = vpop.f32.mrb[0].mxu0
          %v4743 = vpop.f32.mrb[0].mxu0
          %4744 = vdwg.mxu0
          %4745 = vmatprep.subr.bf16.mxu0 %v3647
          %4746 = vmatpush1.bf16.msra.mxu0 %v3646
          %4747 = vmatprep.subr.bf16.mxu0 %v3655
          %4748 = vmatpush1.bf16.msra.mxu0 %v3654
          %4749 = vmatprep.subr.bf16.mxu0 %v3663
          %4750 = vmatpush1.bf16.msra.mxu0 %v3662
          %4751 = vmatprep.subr.bf16.mxu0 %v3671
          %4752 = vmatpush1.bf16.msra.mxu0 %v3670
          %4753 = vmatprep.subr.bf16.mxu0 %v3679
          %4754 = vmatpush1.bf16.msra.mxu0 %v3678
          %4755 = vmatprep.subr.bf16.mxu0 %v3687
          %4756 = vmatpush1.bf16.msra.mxu0 %v3686
          %4757 = vmatprep.subr.bf16.mxu0 %v3695
          %4758 = vmatpush1.bf16.msra.mxu0 %v3694
          %4759 = vmatprep.subr.bf16.mxu0 %v3703
          %4760 = vmatpush1.bf16.msra.mxu0 %v3702
          %4761 = vmatprep.subr.bf16.mxu0 %v3711
          %4762 = vmatpush1.bf16.msra.mxu0 %v3710
          %4763 = vmatprep.subr.bf16.mxu0 %v3719
          %4764 = vmatpush1.bf16.msra.mxu0 %v3718
          %4765 = vmatprep.subr.bf16.mxu0 %v3727
          %4766 = vmatpush1.bf16.msra.mxu0 %v3726
          %4767 = vmatprep.subr.bf16.mxu0 %v3735
          %4768 = vmatpush1.bf16.msra.mxu0 %v3734
          %4769 = vmatprep.subr.bf16.mxu0 %v3743
          %4770 = vmatpush1.bf16.msra.mxu0 %v3742
          %4771 = vmatprep.subr.bf16.mxu0 %v3751
          %4772 = vmatpush1.bf16.msra.mxu0 %v3750
          %4773 = vmatprep.subr.bf16.mxu0 %v3759
          %4774 = vmatpush1.bf16.msra.mxu0 %v3758
          %4775 = vmatprep.subr.bf16.mxu0 %v3767
          %4776 = vmatpush1.bf16.msra.mxu0 %v3766
          %4777 = vmatprep.mubr.bf16.mxu0 %v1421
          %4778 = vmatmul.mubr.bf16.gmra.mrb[0].mxu0 %v1420
          %v4779 = vpop.f32.mrb[0].mxu0
          %v4780 = vadd.f32 %v4739, %v4779
          %v4781 = vpop.f32.mrb[0].mxu0
          %v4782 = vadd.f32 %v4741, %v4781
          %v4783 = vpop.f32.mrb[0].mxu0
          %v4784 = vpop.f32.mrb[0].mxu0
          %4785 = vdwg.mxu0
          %4786 = vmatprep.subr.bf16.mxu0 %v3775
          %4787 = vmatpush1.bf16.msra.mxu0 %v3774
          %4788 = vmatprep.subr.bf16.mxu0 %v3783
          %4789 = vmatpush1.bf16.msra.mxu0 %v3782
          %4790 = vmatprep.subr.bf16.mxu0 %v3791
          %4791 = vmatpush1.bf16.msra.mxu0 %v3790
          %4792 = vmatprep.subr.bf16.mxu0 %v3799
          %4793 = vmatpush1.bf16.msra.mxu0 %v3798
          %4794 = vmatprep.subr.bf16.mxu0 %v3807
          %4795 = vmatpush1.bf16.msra.mxu0 %v3806
          %4796 = vmatprep.subr.bf16.mxu0 %v3815
          %4797 = vmatpush1.bf16.msra.mxu0 %v3814
          %4798 = vmatprep.subr.bf16.mxu0 %v3823
          %4799 = vmatpush1.bf16.msra.mxu0 %v3822
          %4800 = vmatprep.subr.bf16.mxu0 %v3831
          %4801 = vmatpush1.bf16.msra.mxu0 %v3830
          %4802 = vmatprep.subr.bf16.mxu0 %v3839
          %4803 = vmatpush1.bf16.msra.mxu0 %v3838
          %4804 = vmatprep.subr.bf16.mxu0 %v3847
          %4805 = vmatpush1.bf16.msra.mxu0 %v3846
          %4806 = vmatprep.subr.bf16.mxu0 %v3855
          %4807 = vmatpush1.bf16.msra.mxu0 %v3854
          %4808 = vmatprep.subr.bf16.mxu0 %v3863
          %4809 = vmatpush1.bf16.msra.mxu0 %v3862
          %4810 = vmatprep.subr.bf16.mxu0 %v3871
          %4811 = vmatpush1.bf16.msra.mxu0 %v3870
          %4812 = vmatprep.subr.bf16.mxu0 %v3879
          %4813 = vmatpush1.bf16.msra.mxu0 %v3878
          %4814 = vmatprep.subr.bf16.mxu0 %v3887
          %4815 = vmatpush1.bf16.msra.mxu0 %v3886
          %4816 = vmatprep.subr.bf16.mxu0 %v3895
          %4817 = vmatpush1.bf16.msra.mxu0 %v3894
          %4818 = vmatprep.mubr.bf16.mxu0 %v1423
          %4819 = vmatmul.mubr.bf16.gmra.mrb[0].mxu0 %v1422
          %v4820 = vpop.f32.mrb[0].mxu0
          %v4821 = vadd.f32 %v4780, %v4820
          %v4822 = vpop.f32.mrb[0].mxu0
          %v4823 = vadd.f32 %v4782, %v4822
          %v4824 = vpop.f32.mrb[0].mxu0
          %v4825 = vpop.f32.mrb[0].mxu0
          %4826 = vdwg.mxu0
          %4827 = vmatprep.subr.bf16.mxu0 %v3903
          %4828 = vmatpush1.bf16.msra.mxu0 %v3902
          %4829 = vmatprep.subr.bf16.mxu0 %v3911
          %4830 = vmatpush1.bf16.msra.mxu0 %v3910
          %4831 = vmatprep.subr.bf16.mxu0 %v3919
          %4832 = vmatpush1.bf16.msra.mxu0 %v3918
          %4833 = vmatprep.subr.bf16.mxu0 %v3927
          %4834 = vmatpush1.bf16.msra.mxu0 %v3926
          %4835 = vmatprep.subr.bf16.mxu0 %v3935
          %4836 = vmatpush1.bf16.msra.mxu0 %v3934
          %4837 = vmatprep.subr.bf16.mxu0 %v3943
          %4838 = vmatpush1.bf16.msra.mxu0 %v3942
          %4839 = vmatprep.subr.bf16.mxu0 %v3951
          %4840 = vmatpush1.bf16.msra.mxu0 %v3950
          %4841 = vmatprep.subr.bf16.mxu0 %v3959
          %4842 = vmatpush1.bf16.msra.mxu0 %v3958
          %4843 = vmatprep.subr.bf16.mxu0 %v3967
          %4844 = vmatpush1.bf16.msra.mxu0 %v3966
          %4845 = vmatprep.subr.bf16.mxu0 %v3975
          %4846 = vmatpush1.bf16.msra.mxu0 %v3974
          %4847 = vmatprep.subr.bf16.mxu0 %v3983
          %4848 = vmatpush1.bf16.msra.mxu0 %v3982
          %4849 = vmatprep.subr.bf16.mxu0 %v3991
          %4850 = vmatpush1.bf16.msra.mxu0 %v3990
          %4851 = vmatprep.subr.bf16.mxu0 %v3999
          %4852 = vmatpush1.bf16.msra.mxu0 %v3998
          %4853 = vmatprep.subr.bf16.mxu0 %v4007
          %4854 = vmatpush1.bf16.msra.mxu0 %v4006
          %4855 = vmatprep.subr.bf16.mxu0 %v4015
          %4856 = vmatpush1.bf16.msra.mxu0 %v4014
          %4857 = vmatprep.subr.bf16.mxu0 %v4023
          %4858 = vmatpush1.bf16.msra.mxu0 %v4022
          %4859 = vmatprep.mubr.bf16.mxu0 %v1425
          %4860 = vmatmul.mubr.bf16.gmra.mrb[0].mxu0 %v1424
          %v4861 = vpop.f32.mrb[0].mxu0
          %v4862 = vadd.f32 %v4821, %v4861
          %v4863 = vpop.f32.mrb[0].mxu0
          %v4864 = vadd.f32 %v4823, %v4863
          %v4865 = vpop.f32.mrb[0].mxu0
          %v4866 = vpop.f32.mrb[0].mxu0
          %4867 = vdwg.mxu0
          %4868 = vmatprep.subr.bf16.mxu0 %v3521
          %4869 = vmatpush1.bf16.msra.mxu0 %v3520
          %4870 = vmatprep.subr.bf16.mxu0 %v3529
          %4871 = vmatpush1.bf16.msra.mxu0 %v3528
          %4872 = vmatprep.subr.bf16.mxu0 %v3537
          %4873 = vmatpush1.bf16.msra.mxu0 %v3536
          %4874 = vmatprep.subr.bf16.mxu0 %v3545
          %4875 = vmatpush1.bf16.msra.mxu0 %v3544
          %4876 = vmatprep.subr.bf16.mxu0 %v3553
          %4877 = vmatpush1.bf16.msra.mxu0 %v3552
          %4878 = vmatprep.subr.bf16.mxu0 %v3561
          %4879 = vmatpush1.bf16.msra.mxu0 %v3560
          %4880 = vmatprep.subr.bf16.mxu0 %v3569
          %4881 = vmatpush1.bf16.msra.mxu0 %v3568
          %4882 = vmatprep.subr.bf16.mxu0 %v3577
          %4883 = vmatpush1.bf16.msra.mxu0 %v3576
          %4884 = vmatprep.subr.bf16.mxu0 %v3585
          %4885 = vmatpush1.bf16.msra.mxu0 %v3584
          %4886 = vmatprep.subr.bf16.mxu0 %v3593
          %4887 = vmatpush1.bf16.msra.mxu0 %v3592
          %4888 = vmatprep.subr.bf16.mxu0 %v3601
          %4889 = vmatpush1.bf16.msra.mxu0 %v3600
          %4890 = vmatprep.subr.bf16.mxu0 %v3609
          %4891 = vmatpush1.bf16.msra.mxu0 %v3608
          %4892 = vmatprep.subr.bf16.mxu0 %v3617
          %4893 = vmatpush1.bf16.msra.mxu0 %v3616
          %4894 = vmatprep.subr.bf16.mxu0 %v3625
          %4895 = vmatpush1.bf16.msra.mxu0 %v3624
          %4896 = vmatprep.subr.bf16.mxu0 %v3633
          %4897 = vmatpush1.bf16.msra.mxu0 %v3632
          %4898 = vmatprep.subr.bf16.mxu0 %v3641
          %4899 = vmatpush1.bf16.msra.mxu0 %v3640
          %4900 = vmatprep.mubr.bf16.mxu0 %v1419
          %4901 = vmatmul.mubr.bf16.gmra.mrb[0].mxu0 %v1418
          %v4902 = vpop.f32.mrb[0].mxu0
          %v4903 = vadd.f32 %v1959, %v4902
          %v4904 = vpop.f32.mrb[0].mxu0
          %v4905 = vadd.f32 %v1963, %v4904
          %v4906 = vpop.f32.mrb[0].mxu0
          %v4907 = vpop.f32.mrb[0].mxu0
          %4908 = vdwg.mxu0
          %4909 = vmatprep.subr.bf16.mxu0 %v3649
          %4910 = vmatpush1.bf16.msra.mxu0 %v3648
          %4911 = vmatprep.subr.bf16.mxu0 %v3657
          %4912 = vmatpush1.bf16.msra.mxu0 %v3656
          %4913 = vmatprep.subr.bf16.mxu0 %v3665
          %4914 = vmatpush1.bf16.msra.mxu0 %v3664
          %4915 = vmatprep.subr.bf16.mxu0 %v3673
          %4916 = vmatpush1.bf16.msra.mxu0 %v3672
          %4917 = vmatprep.subr.bf16.mxu0 %v3681
          %4918 = vmatpush1.bf16.msra.mxu0 %v3680
          %4919 = vmatprep.subr.bf16.mxu0 %v3689
          %4920 = vmatpush1.bf16.msra.mxu0 %v3688
          %4921 = vmatprep.subr.bf16.mxu0 %v3697
          %4922 = vmatpush1.bf16.msra.mxu0 %v3696
          %4923 = vmatprep.subr.bf16.mxu0 %v3705
          %4924 = vmatpush1.bf16.msra.mxu0 %v3704
          %4925 = vmatprep.subr.bf16.mxu0 %v3713
          %4926 = vmatpush1.bf16.msra.mxu0 %v3712
          %4927 = vmatprep.subr.bf16.mxu0 %v3721
          %4928 = vmatpush1.bf16.msra.mxu0 %v3720
          %4929 = vmatprep.subr.bf16.mxu0 %v3729
          %4930 = vmatpush1.bf16.msra.mxu0 %v3728
          %4931 = vmatprep.subr.bf16.mxu0 %v3737
          %4932 = vmatpush1.bf16.msra.mxu0 %v3736
          %4933 = vmatprep.subr.bf16.mxu0 %v3745
          %4934 = vmatpush1.bf16.msra.mxu0 %v3744
          %4935 = vmatprep.subr.bf16.mxu0 %v3753
          %4936 = vmatpush1.bf16.msra.mxu0 %v3752
          %4937 = vmatprep.subr.bf16.mxu0 %v3761
          %4938 = vmatpush1.bf16.msra.mxu0 %v3760
          %4939 = vmatprep.subr.bf16.mxu0 %v3769
          %4940 = vmatpush1.bf16.msra.mxu0 %v3768
          %4941 = vmatprep.mubr.bf16.mxu0 %v1421
          %4942 = vmatmul.mubr.bf16.gmra.mrb[0].mxu0 %v1420
          %v4943 = vpop.f32.mrb[0].mxu0
          %v4944 = vadd.f32 %v4903, %v4943
          %v4945 = vpop.f32.mrb[0].mxu0
          %v4946 = vadd.f32 %v4905, %v4945
          %v4947 = vpop.f32.mrb[0].mxu0
          %v4948 = vpop.f32.mrb[0].mxu0
          %4949 = vdwg.mxu0
          %4950 = vmatprep.subr.bf16.mxu0 %v3777
          %4951 = vmatpush1.bf16.msra.mxu0 %v3776
          %4952 = vmatprep.subr.bf16.mxu0 %v3785
          %4953 = vmatpush1.bf16.msra.mxu0 %v3784
          %4954 = vmatprep.subr.bf16.mxu0 %v3793
          %4955 = vmatpush1.bf16.msra.mxu0 %v3792
          %4956 = vmatprep.subr.bf16.mxu0 %v3801
          %4957 = vmatpush1.bf16.msra.mxu0 %v3800
          %4958 = vmatprep.subr.bf16.mxu0 %v3809
          %4959 = vmatpush1.bf16.msra.mxu0 %v3808
          %4960 = vmatprep.subr.bf16.mxu0 %v3817
          %4961 = vmatpush1.bf16.msra.mxu0 %v3816
          %4962 = vmatprep.subr.bf16.mxu0 %v3825
          %4963 = vmatpush1.bf16.msra.mxu0 %v3824
          %4964 = vmatprep.subr.bf16.mxu0 %v3833
          %4965 = vmatpush1.bf16.msra.mxu0 %v3832
          %4966 = vmatprep.subr.bf16.mxu0 %v3841
          %4967 = vmatpush1.bf16.msra.mxu0 %v3840
          %4968 = vmatprep.subr.bf16.mxu0 %v3849
          %4969 = vmatpush1.bf16.msra.mxu0 %v3848
          %4970 = vmatprep.subr.bf16.mxu0 %v3857
          %4971 = vmatpush1.bf16.msra.mxu0 %v3856
          %4972 = vmatprep.subr.bf16.mxu0 %v3865
          %4973 = vmatpush1.bf16.msra.mxu0 %v3864
          %4974 = vmatprep.subr.bf16.mxu0 %v3873
          %4975 = vmatpush1.bf16.msra.mxu0 %v3872
          %4976 = vmatprep.subr.bf16.mxu0 %v3881
          %4977 = vmatpush1.bf16.msra.mxu0 %v3880
          %4978 = vmatprep.subr.bf16.mxu0 %v3889
          %4979 = vmatpush1.bf16.msra.mxu0 %v3888
          %4980 = vmatprep.subr.bf16.mxu0 %v3897
          %4981 = vmatpush1.bf16.msra.mxu0 %v3896
          %4982 = vmatprep.mubr.bf16.mxu0 %v1423
          %4983 = vmatmul.mubr.bf16.gmra.mrb[0].mxu0 %v1422
          %v4984 = vpop.f32.mrb[0].mxu0
          %v4985 = vadd.f32 %v4944, %v4984
          %v4986 = vpop.f32.mrb[0].mxu0
          %v4987 = vadd.f32 %v4946, %v4986
          %v4988 = vpop.f32.mrb[0].mxu0
          %v4989 = vpop.f32.mrb[0].mxu0
          %4990 = vdwg.mxu0
          %4991 = vmatprep.subr.bf16.mxu0 %v3905
          %4992 = vmatpush1.bf16.msra.mxu0 %v3904
          %4993 = vmatprep.subr.bf16.mxu0 %v3913
          %4994 = vmatpush1.bf16.msra.mxu0 %v3912
          %4995 = vmatprep.subr.bf16.mxu0 %v3921
          %4996 = vmatpush1.bf16.msra.mxu0 %v3920
          %4997 = vmatprep.subr.bf16.mxu0 %v3929
          %4998 = vmatpush1.bf16.msra.mxu0 %v3928
          %4999 = vmatprep.subr.bf16.mxu0 %v3937
          %5000 = vmatpush1.bf16.msra.mxu0 %v3936
          %5001 = vmatprep.subr.bf16.mxu0 %v3945
          %5002 = vmatpush1.bf16.msra.mxu0 %v3944
          %5003 = vmatprep.subr.bf16.mxu0 %v3953
          %5004 = vmatpush1.bf16.msra.mxu0 %v3952
          %5005 = vmatprep.subr.bf16.mxu0 %v3961
          %5006 = vmatpush1.bf16.msra.mxu0 %v3960
          %5007 = vmatprep.subr.bf16.mxu0 %v3969
          %5008 = vmatpush1.bf16.msra.mxu0 %v3968
          %5009 = vmatprep.subr.bf16.mxu0 %v3977
          %5010 = vmatpush1.bf16.msra.mxu0 %v3976
          %5011 = vmatprep.subr.bf16.mxu0 %v3985
          %5012 = vmatpush1.bf16.msra.mxu0 %v3984
          %5013 = vmatprep.subr.bf16.mxu0 %v3993
          %5014 = vmatpush1.bf16.msra.mxu0 %v3992
          %5015 = vmatprep.subr.bf16.mxu0 %v4001
          %5016 = vmatpush1.bf16.msra.mxu0 %v4000
          %5017 = vmatprep.subr.bf16.mxu0 %v4009
          %5018 = vmatpush1.bf16.msra.mxu0 %v4008
          %5019 = vmatprep.subr.bf16.mxu0 %v4017
          %5020 = vmatpush1.bf16.msra.mxu0 %v4016
          %5021 = vmatprep.subr.bf16.mxu0 %v4025
          %5022 = vmatpush1.bf16.msra.mxu0 %v4024
          %5023 = vmatprep.mubr.bf16.mxu0 %v1425
          %5024 = vmatmul.mubr.bf16.gmra.mrb[0].mxu0 %v1424
          %v5025 = vpop.f32.mrb[0].mxu0
          %v5026 = vadd.f32 %v4985, %v5025
          %v5027 = vpop.f32.mrb[0].mxu0
          %v5028 = vadd.f32 %v4987, %v5027
          %v5029 = vpop.f32.mrb[0].mxu0
          %v5030 = vpop.f32.mrb[0].mxu0
          %5031 = vdwg.mxu0
          %5032 = vmatprep.subr.bf16.mxu0 %v3523
          %5033 = vmatpush1.bf16.msra.mxu0 %v3522
          %5034 = vmatprep.subr.bf16.mxu0 %v3531
          %5035 = vmatpush1.bf16.msra.mxu0 %v3530
          %5036 = vmatprep.subr.bf16.mxu0 %v3539
          %5037 = vmatpush1.bf16.msra.mxu0 %v3538
          %5038 = vmatprep.subr.bf16.mxu0 %v3547
          %5039 = vmatpush1.bf16.msra.mxu0 %v3546
          %5040 = vmatprep.subr.bf16.mxu0 %v3555
          %5041 = vmatpush1.bf16.msra.mxu0 %v3554
          %5042 = vmatprep.subr.bf16.mxu0 %v3563
          %5043 = vmatpush1.bf16.msra.mxu0 %v3562
          %5044 = vmatprep.subr.bf16.mxu0 %v3571
          %5045 = vmatpush1.bf16.msra.mxu0 %v3570
          %5046 = vmatprep.subr.bf16.mxu0 %v3579
          %5047 = vmatpush1.bf16.msra.mxu0 %v3578
          %5048 = vmatprep.subr.bf16.mxu0 %v3587
          %5049 = vmatpush1.bf16.msra.mxu0 %v3586
          %5050 = vmatprep.subr.bf16.mxu0 %v3595
          %5051 = vmatpush1.bf16.msra.mxu0 %v3594
          %5052 = vmatprep.subr.bf16.mxu0 %v3603
          %5053 = vmatpush1.bf16.msra.mxu0 %v3602
          %5054 = vmatprep.subr.bf16.mxu0 %v3611
          %5055 = vmatpush1.bf16.msra.mxu0 %v3610
          %5056 = vmatprep.subr.bf16.mxu0 %v3619
          %5057 = vmatpush1.bf16.msra.mxu0 %v3618
          %5058 = vmatprep.subr.bf16.mxu0 %v3627
          %5059 = vmatpush1.bf16.msra.mxu0 %v3626
          %5060 = vmatprep.subr.bf16.mxu0 %v3635
          %5061 = vmatpush1.bf16.msra.mxu0 %v3634
          %5062 = vmatprep.subr.bf16.mxu0 %v3643
          %5063 = vmatpush1.bf16.msra.mxu0 %v3642
          %5064 = vmatprep.mubr.bf16.mxu0 %v1419
          %5065 = vmatmul.mubr.bf16.gmra.mrb[0].mxu0 %v1418
          %v5066 = vpop.f32.mrb[0].mxu0
          %v5067 = vadd.f32 %v1967, %v5066
          %v5068 = vpop.f32.mrb[0].mxu0
          %v5069 = vadd.f32 %v1971, %v5068
          %v5070 = vpop.f32.mrb[0].mxu0
          %v5071 = vpop.f32.mrb[0].mxu0
          %5072 = vdwg.mxu0
          %5073 = vmatprep.subr.bf16.mxu0 %v3651
          %5074 = vmatpush1.bf16.msra.mxu0 %v3650
          %5075 = vmatprep.subr.bf16.mxu0 %v3659
          %5076 = vmatpush1.bf16.msra.mxu0 %v3658
          %5077 = vmatprep.subr.bf16.mxu0 %v3667
          %5078 = vmatpush1.bf16.msra.mxu0 %v3666
          %5079 = vmatprep.subr.bf16.mxu0 %v3675
          %5080 = vmatpush1.bf16.msra.mxu0 %v3674
          %5081 = vmatprep.subr.bf16.mxu0 %v3683
          %5082 = vmatpush1.bf16.msra.mxu0 %v3682
          %5083 = vmatprep.subr.bf16.mxu0 %v3691
          %5084 = vmatpush1.bf16.msra.mxu0 %v3690
          %5085 = vmatprep.subr.bf16.mxu0 %v3699
          %5086 = vmatpush1.bf16.msra.mxu0 %v3698
          %5087 = vmatprep.subr.bf16.mxu0 %v3707
          %5088 = vmatpush1.bf16.msra.mxu0 %v3706
          %5089 = vmatprep.subr.bf16.mxu0 %v3715
          %5090 = vmatpush1.bf16.msra.mxu0 %v3714
          %5091 = vmatprep.subr.bf16.mxu0 %v3723
          %5092 = vmatpush1.bf16.msra.mxu0 %v3722
          %5093 = vmatprep.subr.bf16.mxu0 %v3731
          %5094 = vmatpush1.bf16.msra.mxu0 %v3730
          %5095 = vmatprep.subr.bf16.mxu0 %v3739
          %5096 = vmatpush1.bf16.msra.mxu0 %v3738
          %5097 = vmatprep.subr.bf16.mxu0 %v3747
          %5098 = vmatpush1.bf16.msra.mxu0 %v3746
          %5099 = vmatprep.subr.bf16.mxu0 %v3755
          %5100 = vmatpush1.bf16.msra.mxu0 %v3754
          %5101 = vmatprep.subr.bf16.mxu0 %v3763
          %5102 = vmatpush1.bf16.msra.mxu0 %v3762
          %5103 = vmatprep.subr.bf16.mxu0 %v3771
          %5104 = vmatpush1.bf16.msra.mxu0 %v3770
          %5105 = vmatprep.mubr.bf16.mxu0 %v1421
          %5106 = vmatmul.mubr.bf16.gmra.mrb[0].mxu0 %v1420
          %v5107 = vpop.f32.mrb[0].mxu0
          %v5108 = vadd.f32 %v5067, %v5107
          %v5109 = vpop.f32.mrb[0].mxu0
          %v5110 = vadd.f32 %v5069, %v5109
          %v5111 = vpop.f32.mrb[0].mxu0
          %v5112 = vpop.f32.mrb[0].mxu0
          %5113 = vdwg.mxu0
          %5114 = vmatprep.subr.bf16.mxu0 %v3779
          %5115 = vmatpush1.bf16.msra.mxu0 %v3778
          %5116 = vmatprep.subr.bf16.mxu0 %v3787
          %5117 = vmatpush1.bf16.msra.mxu0 %v3786
          %5118 = vmatprep.subr.bf16.mxu0 %v3795
          %5119 = vmatpush1.bf16.msra.mxu0 %v3794
          %5120 = vmatprep.subr.bf16.mxu0 %v3803
          %5121 = vmatpush1.bf16.msra.mxu0 %v3802
          %5122 = vmatprep.subr.bf16.mxu0 %v3811
          %5123 = vmatpush1.bf16.msra.mxu0 %v3810
          %5124 = vmatprep.subr.bf16.mxu0 %v3819
          %5125 = vmatpush1.bf16.msra.mxu0 %v3818
          %5126 = vmatprep.subr.bf16.mxu0 %v3827
          %5127 = vmatpush1.bf16.msra.mxu0 %v3826
          %5128 = vmatprep.subr.bf16.mxu0 %v3835
          %5129 = vmatpush1.bf16.msra.mxu0 %v3834
          %5130 = vmatprep.subr.bf16.mxu0 %v3843
          %5131 = vmatpush1.bf16.msra.mxu0 %v3842
          %5132 = vmatprep.subr.bf16.mxu0 %v3851
          %5133 = vmatpush1.bf16.msra.mxu0 %v3850
          %5134 = vmatprep.subr.bf16.mxu0 %v3859
          %5135 = vmatpush1.bf16.msra.mxu0 %v3858
          %5136 = vmatprep.subr.bf16.mxu0 %v3867
          %5137 = vmatpush1.bf16.msra.mxu0 %v3866
          %5138 = vmatprep.subr.bf16.mxu0 %v3875
          %5139 = vmatpush1.bf16.msra.mxu0 %v3874
          %5140 = vmatprep.subr.bf16.mxu0 %v3883
          %5141 = vmatpush1.bf16.msra.mxu0 %v3882
          %5142 = vmatprep.subr.bf16.mxu0 %v3891
          %5143 = vmatpush1.bf16.msra.mxu0 %v3890
          %5144 = vmatprep.subr.bf16.mxu0 %v3899
          %5145 = vmatpush1.bf16.msra.mxu0 %v3898
          %5146 = vmatprep.mubr.bf16.mxu0 %v1423
          %5147 = vmatmul.mubr.bf16.gmra.mrb[0].mxu0 %v1422
          %v5148 = vpop.f32.mrb[0].mxu0
          %v5149 = vadd.f32 %v5108, %v5148
          %v5150 = vpop.f32.mrb[0].mxu0
          %v5151 = vadd.f32 %v5110, %v5150
          %v5152 = vpop.f32.mrb[0].mxu0
          %v5153 = vpop.f32.mrb[0].mxu0
          %5154 = vdwg.mxu0
          %5155 = vmatprep.subr.bf16.mxu0 %v3907
          %5156 = vmatpush1.bf16.msra.mxu0 %v3906
          %5157 = vmatprep.subr.bf16.mxu0 %v3915
          %5158 = vmatpush1.bf16.msra.mxu0 %v3914
          %5159 = vmatprep.subr.bf16.mxu0 %v3923
          %5160 = vmatpush1.bf16.msra.mxu0 %v3922
          %5161 = vmatprep.subr.bf16.mxu0 %v3931
          %5162 = vmatpush1.bf16.msra.mxu0 %v3930
          %5163 = vmatprep.subr.bf16.mxu0 %v3939
          %5164 = vmatpush1.bf16.msra.mxu0 %v3938
          %5165 = vmatprep.subr.bf16.mxu0 %v3947
          %5166 = vmatpush1.bf16.msra.mxu0 %v3946
          %5167 = vmatprep.subr.bf16.mxu0 %v3955
          %5168 = vmatpush1.bf16.msra.mxu0 %v3954
          %5169 = vmatprep.subr.bf16.mxu0 %v3963
          %5170 = vmatpush1.bf16.msra.mxu0 %v3962
          %5171 = vmatprep.subr.bf16.mxu0 %v3971
          %5172 = vmatpush1.bf16.msra.mxu0 %v3970
          %5173 = vmatprep.subr.bf16.mxu0 %v3979
          %5174 = vmatpush1.bf16.msra.mxu0 %v3978
          %5175 = vmatprep.subr.bf16.mxu0 %v3987
          %5176 = vmatpush1.bf16.msra.mxu0 %v3986
          %5177 = vmatprep.subr.bf16.mxu0 %v3995
          %5178 = vmatpush1.bf16.msra.mxu0 %v3994
          %5179 = vmatprep.subr.bf16.mxu0 %v4003
          %5180 = vmatpush1.bf16.msra.mxu0 %v4002
          %5181 = vmatprep.subr.bf16.mxu0 %v4011
          %5182 = vmatpush1.bf16.msra.mxu0 %v4010
          %5183 = vmatprep.subr.bf16.mxu0 %v4019
          %5184 = vmatpush1.bf16.msra.mxu0 %v4018
          %5185 = vmatprep.subr.bf16.mxu0 %v4027
          %5186 = vmatpush1.bf16.msra.mxu0 %v4026
          %5187 = vmatprep.mubr.bf16.mxu0 %v1425
          %5188 = vmatmul.mubr.bf16.gmra.mrb[0].mxu0 %v1424
          %v5189 = vpop.f32.mrb[0].mxu0
          %v5190 = vadd.f32 %v5149, %v5189
          %v5191 = vpop.f32.mrb[0].mxu0
          %v5192 = vadd.f32 %v5151, %v5191
          %v5193 = vpop.f32.mrb[0].mxu0
          %v5194 = vpop.f32.mrb[0].mxu0
          %5195 = vdwg.mxu0
          %v5196 = vmax.f32 %v4698, 0.0
          %v5197 = vmax.f32 %v4700, 0.0
          %v5198 = vmax.f32 %v4862, 0.0
          %v5199 = vmax.f32 %v4864, 0.0
          %v5200 = vmax.f32 %v5026, 0.0
          %v5201 = vmax.f32 %v5028, 0.0
          %v5202 = vmax.f32 %v5190, 0.0
          %v5203 = vmax.f32 %v5192, 0.0
          %v5204 = vpack.c.bf16 %v5196, %v5196
          %v5205 = vpack.c.bf16 %v5197, %v5197
          %v5206 = vpack.c.bf16 %v5198, %v5198
          %v5207 = vpack.c.bf16 %v5199, %v5199
          %v5208 = vpack.c.bf16 %v5200, %v5200
          %v5209 = vpack.c.bf16 %v5201, %v5201
          %v5210 = vpack.c.bf16 %v5202, %v5202
          %v5211 = vpack.c.bf16 %v5203, %v5203
          %v5212 = vld [vmem:[#allocation12] sm:$0xf]
          %v5213 = vld [vmem:[#allocation12 + $0x4] sm:$0xf]
          %v5214 = vld [vmem:[#allocation12 + $0x8] sm:$0xf]
          %v5215 = vld [vmem:[#allocation12 + $0xc] sm:$0xf]
          %v5216 = vld [vmem:[#allocation12 + $0x10] sm:$0xf]
          %v5217 = vld [vmem:[#allocation12 + $0x14] sm:$0xf]
          %v5218 = vld [vmem:[#allocation12 + $0x18] sm:$0xf]
          %v5219 = vld [vmem:[#allocation12 + $0x1c] sm:$0xf]
          %v5220 = vld [vmem:[#allocation12 + $0x20] sm:$0xf]
          %v5221 = vld [vmem:[#allocation12 + $0x24] sm:$0xf]
          %v5222 = vld [vmem:[#allocation12 + $0x28] sm:$0xf]
          %v5223 = vld [vmem:[#allocation12 + $0x2c] sm:$0xf]
          %v5224 = vld [vmem:[#allocation12 + $0x30] sm:$0xf]
          %v5225 = vld [vmem:[#allocation12 + $0x34] sm:$0xf]
          %v5226 = vld [vmem:[#allocation12 + $0x38] sm:$0xf]
          %v5227 = vld [vmem:[#allocation12 + $0x3c] sm:$0xf]
          %v5228 = vld [vmem:[#allocation12 + $0x40] sm:$0xf]
          %v5229 = vld [vmem:[#allocation12 + $0x44] sm:$0xf]
          %v5230 = vld [vmem:[#allocation12 + $0x48] sm:$0xf]
          %v5231 = vld [vmem:[#allocation12 + $0x4c] sm:$0xf]
          %v5232 = vld [vmem:[#allocation12 + $0x50] sm:$0xf]
          %v5233 = vld [vmem:[#allocation12 + $0x54] sm:$0xf]
          %v5234 = vld [vmem:[#allocation12 + $0x58] sm:$0xf]
          %v5235 = vld [vmem:[#allocation12 + $0x5c] sm:$0xf]
          %v5236 = vld [vmem:[#allocation12 + $0x60] sm:$0xf]
          %v5237 = vld [vmem:[#allocation12 + $0x64] sm:$0xf]
          %v5238 = vld [vmem:[#allocation12 + $0x68] sm:$0xf]
          %v5239 = vld [vmem:[#allocation12 + $0x6c] sm:$0xf]
          %v5240 = vld [vmem:[#allocation12 + $0x70] sm:$0xf]
          %v5241 = vld [vmem:[#allocation12 + $0x74] sm:$0xf]
          %v5242 = vld [vmem:[#allocation12 + $0x78] sm:$0xf]
          %v5243 = vld [vmem:[#allocation12 + $0x7c] sm:$0xf]
          %v5244 = vld [vmem:[#allocation12 + $0x80] sm:$0xf]
          %v5245 = vld [vmem:[#allocation12 + $0x84] sm:$0xf]
          %v5246 = vld [vmem:[#allocation12 + $0x88] sm:$0xf]
          %v5247 = vld [vmem:[#allocation12 + $0x8c] sm:$0xf]
          %v5248 = vld [vmem:[#allocation12 + $0x90] sm:$0xf]
          %v5249 = vld [vmem:[#allocation12 + $0x94] sm:$0xf]
          %v5250 = vld [vmem:[#allocation12 + $0x98] sm:$0xf]
          %v5251 = vld [vmem:[#allocation12 + $0x9c] sm:$0xf]
          %v5252 = vld [vmem:[#allocation12 + $0xa0] sm:$0xf]
          %v5253 = vld [vmem:[#allocation12 + $0xa4] sm:$0xf]
          %v5254 = vld [vmem:[#allocation12 + $0xa8] sm:$0xf]
          %v5255 = vld [vmem:[#allocation12 + $0xac] sm:$0xf]
          %v5256 = vld [vmem:[#allocation12 + $0xb0] sm:$0xf]
          %v5257 = vld [vmem:[#allocation12 + $0xb4] sm:$0xf]
          %v5258 = vld [vmem:[#allocation12 + $0xb8] sm:$0xf]
          %v5259 = vld [vmem:[#allocation12 + $0xbc] sm:$0xf]
          %v5260 = vld [vmem:[#allocation12 + $0xc0] sm:$0xf]
          %v5261 = vld [vmem:[#allocation12 + $0xc4] sm:$0xf]
          %v5262 = vld [vmem:[#allocation12 + $0xc8] sm:$0xf]
          %v5263 = vld [vmem:[#allocation12 + $0xcc] sm:$0xf]
          %v5264 = vld [vmem:[#allocation12 + $0xd0] sm:$0xf]
          %v5265 = vld [vmem:[#allocation12 + $0xd4] sm:$0xf]
          %v5266 = vld [vmem:[#allocation12 + $0xd8] sm:$0xf]
          %v5267 = vld [vmem:[#allocation12 + $0xdc] sm:$0xf]
          %v5268 = vld [vmem:[#allocation12 + $0xe0] sm:$0xf]
          %v5269 = vld [vmem:[#allocation12 + $0xe4] sm:$0xf]
          %v5270 = vld [vmem:[#allocation12 + $0xe8] sm:$0xf]
          %v5271 = vld [vmem:[#allocation12 + $0xec] sm:$0xf]
          %v5272 = vld [vmem:[#allocation12 + $0xf0] sm:$0xf]
          %v5273 = vld [vmem:[#allocation12 + $0xf4] sm:$0xf]
          %v5274 = vld [vmem:[#allocation12 + $0xf8] sm:$0xf]
          %v5275 = vld [vmem:[#allocation12 + $0xfc] sm:$0xf]
          %v5276 = vld [vmem:[#allocation12 + $0x100] sm:$0xf]
          %v5277 = vld [vmem:[#allocation12 + $0x104] sm:$0xf]
          %v5278 = vld [vmem:[#allocation12 + $0x108] sm:$0xf]
          %v5279 = vld [vmem:[#allocation12 + $0x10c] sm:$0xf]
          %v5280 = vld [vmem:[#allocation12 + $0x110] sm:$0xf]
          %v5281 = vld [vmem:[#allocation12 + $0x114] sm:$0xf]
          %v5282 = vld [vmem:[#allocation12 + $0x118] sm:$0xf]
          %v5283 = vld [vmem:[#allocation12 + $0x11c] sm:$0xf]
          %v5284 = vld [vmem:[#allocation12 + $0x120] sm:$0xf]
          %v5285 = vld [vmem:[#allocation12 + $0x124] sm:$0xf]
          %v5286 = vld [vmem:[#allocation12 + $0x128] sm:$0xf]
          %v5287 = vld [vmem:[#allocation12 + $0x12c] sm:$0xf]
          %v5288 = vld [vmem:[#allocation12 + $0x130] sm:$0xf]
          %v5289 = vld [vmem:[#allocation12 + $0x134] sm:$0xf]
          %v5290 = vld [vmem:[#allocation12 + $0x138] sm:$0xf]
          %v5291 = vld [vmem:[#allocation12 + $0x13c] sm:$0xf]
          %v5292 = vld [vmem:[#allocation12 + $0x140] sm:$0xf]
          %v5293 = vld [vmem:[#allocation12 + $0x144] sm:$0xf]
          %v5294 = vld [vmem:[#allocation12 + $0x148] sm:$0xf]
          %v5295 = vld [vmem:[#allocation12 + $0x14c] sm:$0xf]
          %v5296 = vld [vmem:[#allocation12 + $0x150] sm:$0xf]
          %v5297 = vld [vmem:[#allocation12 + $0x154] sm:$0xf]
          %v5298 = vld [vmem:[#allocation12 + $0x158] sm:$0xf]
          %v5299 = vld [vmem:[#allocation12 + $0x15c] sm:$0xf]
          %v5300 = vld [vmem:[#allocation12 + $0x160] sm:$0xf]
          %v5301 = vld [vmem:[#allocation12 + $0x164] sm:$0xf]
          %v5302 = vld [vmem:[#allocation12 + $0x168] sm:$0xf]
          %v5303 = vld [vmem:[#allocation12 + $0x16c] sm:$0xf]
          %v5304 = vld [vmem:[#allocation12 + $0x170] sm:$0xf]
          %v5305 = vld [vmem:[#allocation12 + $0x174] sm:$0xf]
          %v5306 = vld [vmem:[#allocation12 + $0x178] sm:$0xf]
          %v5307 = vld [vmem:[#allocation12 + $0x17c] sm:$0xf]
          %v5308 = vld [vmem:[#allocation12 + $0x180] sm:$0xf]
          %v5309 = vld [vmem:[#allocation12 + $0x184] sm:$0xf]
          %v5310 = vld [vmem:[#allocation12 + $0x188] sm:$0xf]
          %v5311 = vld [vmem:[#allocation12 + $0x18c] sm:$0xf]
          %v5312 = vld [vmem:[#allocation12 + $0x190] sm:$0xf]
          %v5313 = vld [vmem:[#allocation12 + $0x194] sm:$0xf]
          %v5314 = vld [vmem:[#allocation12 + $0x198] sm:$0xf]
          %v5315 = vld [vmem:[#allocation12 + $0x19c] sm:$0xf]
          %v5316 = vld [vmem:[#allocation12 + $0x1a0] sm:$0xf]
          %v5317 = vld [vmem:[#allocation12 + $0x1a4] sm:$0xf]
          %v5318 = vld [vmem:[#allocation12 + $0x1a8] sm:$0xf]
          %v5319 = vld [vmem:[#allocation12 + $0x1ac] sm:$0xf]
          %v5320 = vld [vmem:[#allocation12 + $0x1b0] sm:$0xf]
          %v5321 = vld [vmem:[#allocation12 + $0x1b4] sm:$0xf]
          %v5322 = vld [vmem:[#allocation12 + $0x1b8] sm:$0xf]
          %v5323 = vld [vmem:[#allocation12 + $0x1bc] sm:$0xf]
          %v5324 = vld [vmem:[#allocation12 + $0x1c0] sm:$0xf]
          %v5325 = vld [vmem:[#allocation12 + $0x1c4] sm:$0xf]
          %v5326 = vld [vmem:[#allocation12 + $0x1c8] sm:$0xf]
          %v5327 = vld [vmem:[#allocation12 + $0x1cc] sm:$0xf]
          %v5328 = vld [vmem:[#allocation12 + $0x1d0] sm:$0xf]
          %v5329 = vld [vmem:[#allocation12 + $0x1d4] sm:$0xf]
          %v5330 = vld [vmem:[#allocation12 + $0x1d8] sm:$0xf]
          %v5331 = vld [vmem:[#allocation12 + $0x1dc] sm:$0xf]
          %v5332 = vld [vmem:[#allocation12 + $0x1e0] sm:$0xf]
          %v5333 = vld [vmem:[#allocation12 + $0x1e4] sm:$0xf]
          %v5334 = vld [vmem:[#allocation12 + $0x1e8] sm:$0xf]
          %v5335 = vld [vmem:[#allocation12 + $0x1ec] sm:$0xf]
          %v5336 = vld [vmem:[#allocation12 + $0x1f0] sm:$0xf]
          %v5337 = vld [vmem:[#allocation12 + $0x1f4] sm:$0xf]
          %v5338 = vld [vmem:[#allocation12 + $0x1f8] sm:$0xf]
          %v5339 = vld [vmem:[#allocation12 + $0x1fc] sm:$0xf]
          %v5340 = vld [vmem:[#allocation14] sm:$0x1]
          %v5342 = vlaneseq
          %v5343 = vshrl.u32 %v5342, 7
          %v5344 = vsub.s32 0, %v5343
          %v5345 = vrot.slane %v5340, %v5344
          %v5475 = vunpack.c.l.b16 %v5212
          %v5476 = vunpack.c.l.b16 %v5213
          %v5477 = vunpack.c.l.b16 %v5214
          %v5478 = vunpack.c.l.b16 %v5215
          %v5479 = vunpack.c.l.b16 %v5216
          %v5480 = vunpack.c.l.b16 %v5217
          %v5481 = vunpack.c.l.b16 %v5218
          %v5482 = vunpack.c.l.b16 %v5219
          %v5483 = vunpack.c.l.b16 %v5220
          %v5484 = vunpack.c.l.b16 %v5221
          %v5485 = vunpack.c.l.b16 %v5222
          %v5486 = vunpack.c.l.b16 %v5223
          %v5487 = vunpack.c.l.b16 %v5224
          %v5488 = vunpack.c.l.b16 %v5225
          %v5489 = vunpack.c.l.b16 %v5226
          %v5490 = vunpack.c.l.b16 %v5227
          %v5491 = vunpack.c.l.b16 %v5228
          %v5492 = vunpack.c.l.b16 %v5229
          %v5493 = vunpack.c.l.b16 %v5230
          %v5494 = vunpack.c.l.b16 %v5231
          %v5495 = vunpack.c.l.b16 %v5232
          %v5496 = vunpack.c.l.b16 %v5233
          %v5497 = vunpack.c.l.b16 %v5234
          %v5498 = vunpack.c.l.b16 %v5235
          %v5499 = vunpack.c.l.b16 %v5236
          %v5500 = vunpack.c.l.b16 %v5237
          %v5501 = vunpack.c.l.b16 %v5238
          %v5502 = vunpack.c.l.b16 %v5239
          %v5503 = vunpack.c.l.b16 %v5240
          %v5504 = vunpack.c.l.b16 %v5241
          %v5505 = vunpack.c.l.b16 %v5242
          %v5506 = vunpack.c.l.b16 %v5243
          %v5507 = vunpack.c.l.b16 %v5244
          %v5508 = vunpack.c.l.b16 %v5245
          %v5509 = vunpack.c.l.b16 %v5246
          %v5510 = vunpack.c.l.b16 %v5247
          %v5511 = vunpack.c.l.b16 %v5248
          %v5512 = vunpack.c.l.b16 %v5249
          %v5513 = vunpack.c.l.b16 %v5250
          %v5514 = vunpack.c.l.b16 %v5251
          %v5515 = vunpack.c.l.b16 %v5252
          %v5516 = vunpack.c.l.b16 %v5253
          %v5517 = vunpack.c.l.b16 %v5254
          %v5518 = vunpack.c.l.b16 %v5255
          %v5519 = vunpack.c.l.b16 %v5256
          %v5520 = vunpack.c.l.b16 %v5257
          %v5521 = vunpack.c.l.b16 %v5258
          %v5522 = vunpack.c.l.b16 %v5259
          %v5523 = vunpack.c.l.b16 %v5260
          %v5524 = vunpack.c.l.b16 %v5261
          %v5525 = vunpack.c.l.b16 %v5262
          %v5526 = vunpack.c.l.b16 %v5263
          %v5527 = vunpack.c.l.b16 %v5264
          %v5528 = vunpack.c.l.b16 %v5265
          %v5529 = vunpack.c.l.b16 %v5266
          %v5530 = vunpack.c.l.b16 %v5267
          %v5531 = vunpack.c.l.b16 %v5268
          %v5532 = vunpack.c.l.b16 %v5269
          %v5533 = vunpack.c.l.b16 %v5270
          %v5534 = vunpack.c.l.b16 %v5271
          %v5535 = vunpack.c.l.b16 %v5272
          %v5536 = vunpack.c.l.b16 %v5273
          %v5537 = vunpack.c.l.b16 %v5274
          %v5538 = vunpack.c.l.b16 %v5275
          %v5539 = vunpack.c.l.b16 %v5276
          %v5540 = vunpack.c.l.b16 %v5277
          %v5541 = vunpack.c.l.b16 %v5278
          %v5542 = vunpack.c.l.b16 %v5279
          %v5543 = vunpack.c.l.b16 %v5280
          %v5544 = vunpack.c.l.b16 %v5281
          %v5545 = vunpack.c.l.b16 %v5282
          %v5546 = vunpack.c.l.b16 %v5283
          %v5547 = vunpack.c.l.b16 %v5284
          %v5548 = vunpack.c.l.b16 %v5285
          %v5549 = vunpack.c.l.b16 %v5286
          %v5550 = vunpack.c.l.b16 %v5287
          %v5551 = vunpack.c.l.b16 %v5288
          %v5552 = vunpack.c.l.b16 %v5289
          %v5553 = vunpack.c.l.b16 %v5290
          %v5554 = vunpack.c.l.b16 %v5291
          %v5555 = vunpack.c.l.b16 %v5292
          %v5556 = vunpack.c.l.b16 %v5293
          %v5557 = vunpack.c.l.b16 %v5294
          %v5558 = vunpack.c.l.b16 %v5295
          %v5559 = vunpack.c.l.b16 %v5296
          %v5560 = vunpack.c.l.b16 %v5297
          %v5561 = vunpack.c.l.b16 %v5298
          %v5562 = vunpack.c.l.b16 %v5299
          %v5563 = vunpack.c.l.b16 %v5300
          %v5564 = vunpack.c.l.b16 %v5301
          %v5565 = vunpack.c.l.b16 %v5302
          %v5566 = vunpack.c.l.b16 %v5303
          %v5567 = vunpack.c.l.b16 %v5304
          %v5568 = vunpack.c.l.b16 %v5305
          %v5569 = vunpack.c.l.b16 %v5306
          %v5570 = vunpack.c.l.b16 %v5307
          %v5571 = vunpack.c.l.b16 %v5308
          %v5572 = vunpack.c.l.b16 %v5309
          %v5573 = vunpack.c.l.b16 %v5310
          %v5574 = vunpack.c.l.b16 %v5311
          %v5575 = vunpack.c.l.b16 %v5312
          %v5576 = vunpack.c.l.b16 %v5313
          %v5577 = vunpack.c.l.b16 %v5314
          %v5578 = vunpack.c.l.b16 %v5315
          %v5579 = vunpack.c.l.b16 %v5316
          %v5580 = vunpack.c.l.b16 %v5317
          %v5581 = vunpack.c.l.b16 %v5318
          %v5582 = vunpack.c.l.b16 %v5319
          %v5583 = vunpack.c.l.b16 %v5320
          %v5584 = vunpack.c.l.b16 %v5321
          %v5585 = vunpack.c.l.b16 %v5322
          %v5586 = vunpack.c.l.b16 %v5323
          %v5587 = vunpack.c.l.b16 %v5324
          %v5588 = vunpack.c.l.b16 %v5325
          %v5589 = vunpack.c.l.b16 %v5326
          %v5590 = vunpack.c.l.b16 %v5327
          %v5591 = vunpack.c.l.b16 %v5328
          %v5592 = vunpack.c.l.b16 %v5329
          %v5593 = vunpack.c.l.b16 %v5330
          %v5594 = vunpack.c.l.b16 %v5331
          %v5595 = vunpack.c.l.b16 %v5332
          %v5596 = vunpack.c.l.b16 %v5333
          %v5597 = vunpack.c.l.b16 %v5334
          %v5598 = vunpack.c.l.b16 %v5335
          %v5599 = vunpack.c.l.b16 %v5336
          %v5600 = vunpack.c.l.b16 %v5337
          %v5601 = vunpack.c.l.b16 %v5338
          %v5602 = vunpack.c.l.b16 %v5339
          %v5603 = vpack.c.b16 %v5476, %v5475
          %v5604 = vpack.c.b16 %v5478, %v5477
          %v5605 = vpack.c.b16 %v5480, %v5479
          %v5606 = vpack.c.b16 %v5482, %v5481
          %v5607 = vpack.c.b16 %v5484, %v5483
          %v5608 = vpack.c.b16 %v5486, %v5485
          %v5609 = vpack.c.b16 %v5488, %v5487
          %v5610 = vpack.c.b16 %v5490, %v5489
          %v5611 = vpack.c.b16 %v5492, %v5491
          %v5612 = vpack.c.b16 %v5494, %v5493
          %v5613 = vpack.c.b16 %v5496, %v5495
          %v5614 = vpack.c.b16 %v5498, %v5497
          %v5615 = vpack.c.b16 %v5500, %v5499
          %v5616 = vpack.c.b16 %v5502, %v5501
          %v5617 = vpack.c.b16 %v5504, %v5503
          %v5618 = vpack.c.b16 %v5506, %v5505
          %v5619 = vpack.c.b16 %v5508, %v5507
          %v5620 = vpack.c.b16 %v5510, %v5509
          %v5621 = vpack.c.b16 %v5512, %v5511
          %v5622 = vpack.c.b16 %v5514, %v5513
          %v5623 = vpack.c.b16 %v5516, %v5515
          %v5624 = vpack.c.b16 %v5518, %v5517
          %v5625 = vpack.c.b16 %v5520, %v5519
          %v5626 = vpack.c.b16 %v5522, %v5521
          %v5627 = vpack.c.b16 %v5524, %v5523
          %v5628 = vpack.c.b16 %v5526, %v5525
          %v5629 = vpack.c.b16 %v5528, %v5527
          %v5630 = vpack.c.b16 %v5530, %v5529
          %v5631 = vpack.c.b16 %v5532, %v5531
          %v5632 = vpack.c.b16 %v5534, %v5533
          %v5633 = vpack.c.b16 %v5536, %v5535
          %v5634 = vpack.c.b16 %v5538, %v5537
          %v5635 = vpack.c.b16 %v5540, %v5539
          %v5636 = vpack.c.b16 %v5542, %v5541
          %v5637 = vpack.c.b16 %v5544, %v5543
          %v5638 = vpack.c.b16 %v5546, %v5545
          %v5639 = vpack.c.b16 %v5548, %v5547
          %v5640 = vpack.c.b16 %v5550, %v5549
          %v5641 = vpack.c.b16 %v5552, %v5551
          %v5642 = vpack.c.b16 %v5554, %v5553
          %v5643 = vpack.c.b16 %v5556, %v5555
          %v5644 = vpack.c.b16 %v5558, %v5557
          %v5645 = vpack.c.b16 %v5560, %v5559
          %v5646 = vpack.c.b16 %v5562, %v5561
          %v5647 = vpack.c.b16 %v5564, %v5563
          %v5648 = vpack.c.b16 %v5566, %v5565
          %v5649 = vpack.c.b16 %v5568, %v5567
          %v5650 = vpack.c.b16 %v5570, %v5569
          %v5651 = vpack.c.b16 %v5572, %v5571
          %v5652 = vpack.c.b16 %v5574, %v5573
          %v5653 = vpack.c.b16 %v5576, %v5575
          %v5654 = vpack.c.b16 %v5578, %v5577
          %v5655 = vpack.c.b16 %v5580, %v5579
          %v5656 = vpack.c.b16 %v5582, %v5581
          %v5657 = vpack.c.b16 %v5584, %v5583
          %v5658 = vpack.c.b16 %v5586, %v5585
          %v5659 = vpack.c.b16 %v5588, %v5587
          %v5660 = vpack.c.b16 %v5590, %v5589
          %v5661 = vpack.c.b16 %v5592, %v5591
          %v5662 = vpack.c.b16 %v5594, %v5593
          %v5663 = vpack.c.b16 %v5596, %v5595
          %v5664 = vpack.c.b16 %v5598, %v5597
          %v5665 = vpack.c.b16 %v5600, %v5599
          %v5666 = vpack.c.b16 %v5602, %v5601
          %5731 = vmatprep.subr.bf16.mxu0 0
          %5732 = vmatpush1.bf16.msra.mxu0 %v5603
          %5733 = vmatprep.subr.bf16.mxu0 0
          %5734 = vmatpush1.bf16.msra.mxu0 %v5604
          %5735 = vmatprep.subr.bf16.mxu0 0
          %5736 = vmatpush1.bf16.msra.mxu0 %v5605
          %5737 = vmatprep.subr.bf16.mxu0 0
          %5738 = vmatpush1.bf16.msra.mxu0 %v5606
          %5739 = vmatprep.subr.bf16.mxu0 0
          %5740 = vmatpush1.bf16.msra.mxu0 %v5607
          %5741 = vmatprep.subr.bf16.mxu0 0
          %5742 = vmatpush1.bf16.msra.mxu0 %v5608
          %5743 = vmatprep.subr.bf16.mxu0 0
          %5744 = vmatpush1.bf16.msra.mxu0 %v5609
          %5745 = vmatprep.subr.bf16.mxu0 0
          %5746 = vmatpush1.bf16.msra.mxu0 %v5610
          %5747 = vmatprep.subr.bf16.mxu0 0
          %5748 = vmatpush1.bf16.msra.mxu0 %v5611
          %5749 = vmatprep.subr.bf16.mxu0 0
          %5750 = vmatpush1.bf16.msra.mxu0 %v5612
          %5751 = vmatprep.subr.bf16.mxu0 0
          %5752 = vmatpush1.bf16.msra.mxu0 %v5613
          %5753 = vmatprep.subr.bf16.mxu0 0
          %5754 = vmatpush1.bf16.msra.mxu0 %v5614
          %5755 = vmatprep.subr.bf16.mxu0 0
          %5756 = vmatpush1.bf16.msra.mxu0 %v5615
          %5757 = vmatprep.subr.bf16.mxu0 0
          %5758 = vmatpush1.bf16.msra.mxu0 %v5616
          %5759 = vmatprep.subr.bf16.mxu0 0
          %5760 = vmatpush1.bf16.msra.mxu0 %v5617
          %5761 = vmatprep.subr.bf16.mxu0 0
          %5762 = vmatpush1.bf16.msra.mxu0 %v5618
          %5763 = vmatprep.mubr.bf16.mxu0 %v5205
          %5764 = vmatmul.mubr.bf16.gmra.mrb[0].mxu0 %v5204
          %v5765 = vpop.f32.mrb[0].mxu0
          %v5766 = vadd.f32 %v5345, %v5765
          %v5767 = vpop.f32.mrb[0].mxu0
          %v5768 = vpop.f32.mrb[0].mxu0
          %v5769 = vpop.f32.mrb[0].mxu0
          %5770 = vdwg.mxu0
          %5771 = vmatprep.subr.bf16.mxu0 0
          %5772 = vmatpush1.bf16.msra.mxu0 %v5619
          %5773 = vmatprep.subr.bf16.mxu0 0
          %5774 = vmatpush1.bf16.msra.mxu0 %v5620
          %5775 = vmatprep.subr.bf16.mxu0 0
          %5776 = vmatpush1.bf16.msra.mxu0 %v5621
          %5777 = vmatprep.subr.bf16.mxu0 0
          %5778 = vmatpush1.bf16.msra.mxu0 %v5622
          %5779 = vmatprep.subr.bf16.mxu0 0
          %5780 = vmatpush1.bf16.msra.mxu0 %v5623
          %5781 = vmatprep.subr.bf16.mxu0 0
          %5782 = vmatpush1.bf16.msra.mxu0 %v5624
          %5783 = vmatprep.subr.bf16.mxu0 0
          %5784 = vmatpush1.bf16.msra.mxu0 %v5625
          %5785 = vmatprep.subr.bf16.mxu0 0
          %5786 = vmatpush1.bf16.msra.mxu0 %v5626
          %5787 = vmatprep.subr.bf16.mxu0 0
          %5788 = vmatpush1.bf16.msra.mxu0 %v5627
          %5789 = vmatprep.subr.bf16.mxu0 0
          %5790 = vmatpush1.bf16.msra.mxu0 %v5628
          %5791 = vmatprep.subr.bf16.mxu0 0
          %5792 = vmatpush1.bf16.msra.mxu0 %v5629
          %5793 = vmatprep.subr.bf16.mxu0 0
          %5794 = vmatpush1.bf16.msra.mxu0 %v5630
          %5795 = vmatprep.subr.bf16.mxu0 0
          %5796 = vmatpush1.bf16.msra.mxu0 %v5631
          %5797 = vmatprep.subr.bf16.mxu0 0
          %5798 = vmatpush1.bf16.msra.mxu0 %v5632
          %5799 = vmatprep.subr.bf16.mxu0 0
          %5800 = vmatpush1.bf16.msra.mxu0 %v5633
          %5801 = vmatprep.subr.bf16.mxu0 0
          %5802 = vmatpush1.bf16.msra.mxu0 %v5634
          %5803 = vmatprep.mubr.bf16.mxu0 %v5207
          %5804 = vmatmul.mubr.bf16.gmra.mrb[0].mxu0 %v5206
          %v5805 = vpop.f32.mrb[0].mxu0
          %v5806 = vadd.f32 %v5766, %v5805
          %v5807 = vpop.f32.mrb[0].mxu0
          %v5808 = vpop.f32.mrb[0].mxu0
          %v5809 = vpop.f32.mrb[0].mxu0
          %5810 = vdwg.mxu0
          %5811 = vmatprep.subr.bf16.mxu0 0
          %5812 = vmatpush1.bf16.msra.mxu0 %v5635
          %5813 = vmatprep.subr.bf16.mxu0 0
          %5814 = vmatpush1.bf16.msra.mxu0 %v5636
          %5815 = vmatprep.subr.bf16.mxu0 0
          %5816 = vmatpush1.bf16.msra.mxu0 %v5637
          %5817 = vmatprep.subr.bf16.mxu0 0
          %5818 = vmatpush1.bf16.msra.mxu0 %v5638
          %5819 = vmatprep.subr.bf16.mxu0 0
          %5820 = vmatpush1.bf16.msra.mxu0 %v5639
          %5821 = vmatprep.subr.bf16.mxu0 0
          %5822 = vmatpush1.bf16.msra.mxu0 %v5640
          %5823 = vmatprep.subr.bf16.mxu0 0
          %5824 = vmatpush1.bf16.msra.mxu0 %v5641
          %5825 = vmatprep.subr.bf16.mxu0 0
          %5826 = vmatpush1.bf16.msra.mxu0 %v5642
          %5827 = vmatprep.subr.bf16.mxu0 0
          %5828 = vmatpush1.bf16.msra.mxu0 %v5643
          %5829 = vmatprep.subr.bf16.mxu0 0
          %5830 = vmatpush1.bf16.msra.mxu0 %v5644
          %5831 = vmatprep.subr.bf16.mxu0 0
          %5832 = vmatpush1.bf16.msra.mxu0 %v5645
          %5833 = vmatprep.subr.bf16.mxu0 0
          %5834 = vmatpush1.bf16.msra.mxu0 %v5646
          %5835 = vmatprep.subr.bf16.mxu0 0
          %5836 = vmatpush1.bf16.msra.mxu0 %v5647
          %5837 = vmatprep.subr.bf16.mxu0 0
          %5838 = vmatpush1.bf16.msra.mxu0 %v5648
          %5839 = vmatprep.subr.bf16.mxu0 0
          %5840 = vmatpush1.bf16.msra.mxu0 %v5649
          %5841 = vmatprep.subr.bf16.mxu0 0
          %5842 = vmatpush1.bf16.msra.mxu0 %v5650
          %5843 = vmatprep.mubr.bf16.mxu0 %v5209
          %5844 = vmatmul.mubr.bf16.gmra.mrb[0].mxu0 %v5208
          %v5845 = vpop.f32.mrb[0].mxu0
          %v5846 = vadd.f32 %v5806, %v5845
          %v5847 = vpop.f32.mrb[0].mxu0
          %v5848 = vpop.f32.mrb[0].mxu0
          %v5849 = vpop.f32.mrb[0].mxu0
          %5850 = vdwg.mxu0
          %5851 = vmatprep.subr.bf16.mxu0 0
          %5852 = vmatpush1.bf16.msra.mxu0 %v5651
          %5853 = vmatprep.subr.bf16.mxu0 0
          %5854 = vmatpush1.bf16.msra.mxu0 %v5652
          %5855 = vmatprep.subr.bf16.mxu0 0
          %5856 = vmatpush1.bf16.msra.mxu0 %v5653
          %5857 = vmatprep.subr.bf16.mxu0 0
          %5858 = vmatpush1.bf16.msra.mxu0 %v5654
          %5859 = vmatprep.subr.bf16.mxu0 0
          %5860 = vmatpush1.bf16.msra.mxu0 %v5655
          %5861 = vmatprep.subr.bf16.mxu0 0
          %5862 = vmatpush1.bf16.msra.mxu0 %v5656
          %5863 = vmatprep.subr.bf16.mxu0 0
          %5864 = vmatpush1.bf16.msra.mxu0 %v5657
          %5865 = vmatprep.subr.bf16.mxu0 0
          %5866 = vmatpush1.bf16.msra.mxu0 %v5658
          %5867 = vmatprep.subr.bf16.mxu0 0
          %5868 = vmatpush1.bf16.msra.mxu0 %v5659
          %5869 = vmatprep.subr.bf16.mxu0 0
          %5870 = vmatpush1.bf16.msra.mxu0 %v5660
          %5871 = vmatprep.subr.bf16.mxu0 0
          %5872 = vmatpush1.bf16.msra.mxu0 %v5661
          %5873 = vmatprep.subr.bf16.mxu0 0
          %5874 = vmatpush1.bf16.msra.mxu0 %v5662
          %5875 = vmatprep.subr.bf16.mxu0 0
          %5876 = vmatpush1.bf16.msra.mxu0 %v5663
          %5877 = vmatprep.subr.bf16.mxu0 0
          %5878 = vmatpush1.bf16.msra.mxu0 %v5664
          %5879 = vmatprep.subr.bf16.mxu0 0
          %5880 = vmatpush1.bf16.msra.mxu0 %v5665
          %5881 = vmatprep.subr.bf16.mxu0 0
          %5882 = vmatpush1.bf16.msra.mxu0 %v5666
          %5883 = vmatprep.mubr.bf16.mxu0 %v5211
          %5884 = vmatmul.mubr.bf16.gmra.mrb[0].mxu0 %v5210
          %v5885 = vpop.f32.mrb[0].mxu0
          %v5886 = vadd.f32 %v5846, %v5885
          %v5887 = vpop.f32.mrb[0].mxu0
          %v5888 = vpop.f32.mrb[0].mxu0
          %v5889 = vpop.f32.mrb[0].mxu0
          %5890 = vdwg.mxu0
          %5891 = vst [vmem:[#allocation15] sm:$0xff] %v5886
        $region84: #{tpu_custom_call.1} parent=47 // pred_fallthru
          _
        // Predicated region
        $region85: #{tpu_custom_call.1} parent=47 // pred_check
          %p5892 = pneg %p190
        $region86: #{tpu_custom_call.1} parent=47 // pred_check_branch
          %5894 = sbr.rel (%p5892) target = $region88
        $region87: #{tpu_custom_call.1} parent=47 // pred_region
          %s5896 = ssub.s32 128, 128
          %5897 = vsyncadd [#allocation5], %s5896
          %s5899 = sshll.u32 [#allocation15], 4
          %s5900 = int_to_ptr.vmem [resolvable:$true] %s5899
          %5902 = dma.vmem_to_hbm [thread:$0]  %s5900, 128, %s7, [#allocation5]
        $region88: #{tpu_custom_call.1} parent=47 // pred_fallthru
          _
        // Predicated region
        $region89: #{tpu_custom_call.1} parent=47 // pred_check
          %p5903 = pneg %p190
        $region90: #{tpu_custom_call.1} parent=47 // pred_check_branch
          %5905 = sbr.rel (%p5903) target = $region92
        $region91: #{tpu_custom_call.1} parent=47 // pred_region
          %5906 = dma.done [#allocation5], 128
        $region92: #{tpu_custom_call.1} parent=47 // pred_fallthru
          _
      $region48: #{tpu_custom_call.1} parent=5 // pred_fallthru
        _
      %p5907 = scmp.le.s32.totalorder 2, %s20
      // Predicated region
      $region93: #{tpu_custom_call.1} parent=5 // pred_check
        %p5908 = pneg %p5907
      $region94: #{tpu_custom_call.1} parent=5 // pred_check_branch
        %5910 = sbr.rel (%p5908) target = $region96
      $region95: #{tpu_custom_call.1} parent=5 // pred_region
        %s5911 = ssub.s32 %s20, 2
      $region96: #{tpu_custom_call.1} parent=5 // pred_fallthru
        _
    $region6: #{tpu_custom_call.1} parent=1 // loop_footer
      %s24 = sadd.s32 1, %s20
    $region7: #{tpu_custom_call.1} parent=1 // loop_footer_branch
      %19 = sbr.rel target = $region3
    $region8: #{tpu_custom_call.1} parent=1 // loop_exit
      _
    %5912 = vsyncpa [#allocation4], 1
    %s5913 = scalar_lea.sflag [#allocation4], 1
    %5914 = vsyncpa %s5913, 1
    %5915 = vsyncpa [#allocation7], 1
    %s5916 = scalar_lea.sflag [#allocation7], 1
    %5917 = vsyncpa %s5916, 1
    %5918 = vsyncpa [#allocation10], 1
    %5919 = vsyncpa [#allocation13], 1
    %5920 = vsyncpa [#allocation5], 1
    %s5921 = scalar_lea.sflag [#allocation5], 1
    %5922 = vsyncpa %s5921, 1

</llo_original>
